<compile_context>
chip_gen: v6e
topology: v6e:2x2x1
jax: 0.10.0
libtpu: 0.0.40
codegen_flags: <defaults>
</compile_context>

<pallas_src>
import functools
import math
from dataclasses import dataclass

import jax
import jax.numpy as jnp
from jax.experimental import pallas as pl
from jax.experimental.pallas import tpu as pltpu


@dataclass
class Config:
    vocab_size: int = 64
    n_embd: int = 32
    n_heads: int = 4
    n_kv_heads: int = 2
    head_dim: int = 8          # n_embd == n_heads * head_dim
    int_size: int = 64
    n_layer: int = 2
    block_size: int = 16
    rope_theta: float = 10000.0


MASK_VALUE = -1e30  # finite "minus infinity" for masked logits (avoids inf-inf NaN paths)


# ----------------------------- hardware-dependent sizing -----------------------------

@functools.lru_cache(maxsize=None)
def _vmem_capacity_bytes():
    try:
        return int(pltpu.get_tpu_info().vmem_capacity_bytes)
    except Exception:
        return 64 * 1024 * 1024          # conservative (v7x-sized) fallback


def _big_vmem():
    return _vmem_capacity_bytes() >= 100 * 1024 * 1024   # v5e / v6e (128 MiB) vs v7x (64 MiB)


def _vmem_limit_bytes():
    return min((_vmem_capacity_bytes() * 3) // 4, 100 * 1024 * 1024)


def _proj_tn_target():
    return 1024 if _big_vmem() else 512


def _mlp_tm_target():
    return 256 if _big_vmem() else 128


def _mlp_ti_target():
    return 1024 if _big_vmem() else 256


def _pick_tile(dim, target, align):
    """Largest `align`-multiple <= target that divides dim; full dim if dim <= target or
    no aligned divisor exists (then the axis runs as a single block)."""
    if dim <= target:
        return dim
    t = (target // align) * align
    while t >= align:
        if dim % t == 0:
            return t
        t -= align
    return dim


def _mlp_tile_i(int_size):
    # Deterministic so init_params (weight interleaving) and fused_mlp_block agree.
    return _pick_tile(int_size, _mlp_ti_target(), 128)


def _heads_per_step(n_heads, head_dim):
    """Heads processed per o_proj grid step: fill a 256-deep contraction where possible."""
    target = max(1, 256 // head_dim)
    hps = 1
    for cand in range(1, n_heads + 1):
        if n_heads % cand == 0 and cand <= target:
            hps = cand
    return hps


def _cparams(dim_sem):
    return pltpu.CompilerParams(dimension_semantics=dim_sem,
                                vmem_limit_bytes=_vmem_limit_bytes())


# ------------------- fused RMSNorm + matmul (ln1+QKV, final-norm+lm_head) -------------------

def _ln_matmul_kernel(x_ref, g_ref, w_ref, o_ref, xn_ref, *, eps):
    # Normalized activations are computed once per M tile and cached (bf16) for all N tiles.
    @pl.when(pl.program_id(1) == 0)
    def _():
        x = x_ref[...].astype(jnp.float32)
        ms = jnp.mean(x * x, axis=-1, keepdims=True)
        xn_ref[...] = ((x * jax.lax.rsqrt(ms + eps)) * g_ref[...]).astype(jnp.bfloat16)

    o_ref[...] = jnp.dot(xn_ref[...], w_ref[...],
                         preferred_element_type=jnp.float32).astype(o_ref.dtype)


def fused_rmsnorm_matmul(x, gamma, w, *, eps=1e-5, out_dtype=jnp.float32, tm_target=256):
    """RMSNorm(x) @ w.  x: (M, C) f32, gamma: (C,) f32, w: (C, N) bf16."""
    M, C = x.shape
    C2, N = w.shape
    assert C == C2
    tm = _pick_tile(M, tm_target, 8)
    tn = _pick_tile(N, _proj_tn_target(), 128)
    return pl.pallas_call(
        functools.partial(_ln_matmul_kernel, eps=eps),
        out_shape=jax.ShapeDtypeStruct((M, N), out_dtype),
        grid=(M // tm, N // tn),
        in_specs=[pl.BlockSpec((tm, C), lambda i, j: (i, 0)),
                  pl.BlockSpec((1, C), lambda i, j: (0, 0)),
                  pl.BlockSpec((C, tn), lambda i, j: (0, j))],
        out_specs=pl.BlockSpec((tm, tn), lambda i, j: (i, j)),
        scratch_shapes=[pltpu.VMEM((tm, C), jnp.bfloat16)],
        # N axis is "arbitrary" because the xn scratch is filled at j == 0 and reused.
        compiler_params=_cparams(("parallel", "arbitrary")),
    )(x, gamma.reshape(1, C).astype(jnp.float32), w)


# ------------- fused MLP block: ln2 + SwiGLU + down-proj + residual, I-axis reduction -------------

def _mlp_kernel(x_ref, g_ref, wgu_ref, wd_ref, o_ref, acc_ref, xn_ref, *, eps, ti):
    ii = pl.program_id(1)

    @pl.when(ii == 0)
    def _():
        x = x_ref[...].astype(jnp.float32)
        ms = jnp.mean(x * x, axis=-1, keepdims=True)
        xn = (x * jax.lax.rsqrt(ms + eps)) * g_ref[...]
        xn_ref[...] = xn.astype(jnp.bfloat16)
        acc_ref[...] = x                      # residual initialises the accumulator

    # Single wide matmul per step: columns [0:ti] are the gate tile, [ti:2*ti] the up tile
    # (weights pre-interleaved per I tile at init).
    gu = jnp.dot(xn_ref[...], wgu_ref[...], preferred_element_type=jnp.float32)
    gate = gu[:, :ti]
    up = gu[:, ti:]
    h = (gate * jax.nn.sigmoid(gate)) * up    # SiLU(gate) * up, in f32
    acc_ref[...] += jnp.dot(h.astype(jnp.bfloat16), wd_ref[...],
                            preferred_element_type=jnp.float32)

    @pl.when(ii == pl.num_programs(1) - 1)
    def _():
        o_ref[...] = acc_ref[...].astype(o_ref.dtype)


def fused_mlp_block(x, gamma, w_gu, wd, *, eps=1e-5):
    """x + down(SiLU(gate(RMSNorm(x))) * up(RMSNorm(x))).  w_gu: (C, 2*I) tile-interleaved."""
    M, C = x.shape
    I = w_gu.shape[1] // 2
    tm = _pick_tile(M, _mlp_tm_target(), 8)
    ti = _mlp_tile_i(I)
    # TODO(synk): for v7x decode (M tiny -> grid (1, I/ti) has no parallel axis) add a parallel
    # output-C tile axis so both TensorCores get work.
    return pl.pallas_call(
        functools.partial(_mlp_kernel, eps=eps, ti=ti),
        out_shape=jax.ShapeDtypeStruct((M, C), jnp.float32),
        grid=(M // tm, I // ti),
        in_specs=[pl.BlockSpec((tm, C), lambda i, j: (i, 0)),
                  pl.BlockSpec((1, C), lambda i, j: (0, 0)),
                  pl.BlockSpec((C, 2 * ti), lambda i, j: (0, j)),
                  pl.BlockSpec((ti, C), lambda i, j: (j, 0))],
        out_specs=pl.BlockSpec((tm, C), lambda i, j: (i, 0)),
        scratch_shapes=[pltpu.VMEM((tm, C), jnp.float32),
                        pltpu.VMEM((tm, C), jnp.bfloat16)],
        compiler_params=_cparams(("parallel", "arbitrary")),
    )(x, gamma.reshape(1, C).astype(jnp.float32), w_gu, wd)


# ---------------- flash attention, GQA-blocked: one K/V tile serves n_rep query heads ----------------

def _flash_attn_kernel(q_ref, k_ref, v_ref, o_ref, m_ref, l_ref, acc_ref, qs_ref,
                       *, scale, n_rep, tq, tk):
    qi = pl.program_id(2)
    ki = pl.program_id(3)

    @pl.when(ki == 0)
    def _():
        m_ref[...] = jnp.full_like(m_ref, MASK_VALUE)
        l_ref[...] = jnp.zeros_like(l_ref)
        acc_ref[...] = jnp.zeros_like(acc_ref)
        # Scale + cast q once per Q tile (constant along the KV reduction axis).
        qs_ref[...] = (q_ref[0].astype(jnp.float32) * scale).astype(jnp.bfloat16)

    visible = qi * tq + (tq - 1) >= ki * tk           # tile has any causally-visible element
    fully_visible = qi * tq >= (ki + 1) * tk          # tile entirely below the diagonal

    def update(r, s):
        m_prev = m_ref[r]
        m_new = jnp.maximum(m_prev, jnp.max(s, axis=-1, keepdims=True))
        alpha = jnp.exp(m_prev - m_new)
        p = jnp.exp(s - m_new)
        l_ref[r] = alpha * l_ref[r] + jnp.sum(p, axis=-1, keepdims=True)
        acc_ref[r] = alpha * acc_ref[r] + jax.lax.dot_general(
            p.astype(jnp.bfloat16), v_ref[0, 0], (((1,), (0,)), ((), ())),
            preferred_element_type=jnp.float32)
        m_ref[r] = m_new

    # Fast path: no mask construction for tiles fully below the causal diagonal.
    @pl.when(fully_visible)
    def _():
        k = k_ref[0, 0]
        for r in range(n_rep):                         # n_rep query heads share this K/V tile
            s = jax.lax.dot_general(qs_ref[r], k, (((1,), (1,)), ((), ())),
                                    preferred_element_type=jnp.float32)
            update(r, s)

    # Diagonal tiles: build the causal mask in-kernel (no materialized (T,T) mask).
    @pl.when(jnp.logical_and(visible, jnp.logical_not(fully_visible)))
    def _():
        k = k_ref[0, 0]
        row = qi * tq + jax.lax.broadcasted_iota(jnp.int32, (tq, tk), 0)
        col = ki * tk + jax.lax.broadcasted_iota(jnp.int32, (tq, tk), 1)
        keep = row >= col
        for r in range(n_rep):
            s = jax.lax.dot_general(qs_ref[r], k, (((1,), (1,)), ((), ())),
                                    preferred_element_type=jnp.float32)
            s = jnp.where(keep, s, MASK_VALUE)
            update(r, s)

    @pl.when(ki == pl.num_programs(3) - 1)
    def _():
        o_ref[0] = (acc_ref[...] * pl.reciprocal(l_ref[...], approx=True)
                    ).astype(o_ref.dtype)


def flash_attention(q, k, v, *, n_rep, scale, tq_target=256, tk_target=1024):
    """q: (B, H, T, D) bf16; k, v: (B, KV, T, D) bf16 (un-repeated; GQA blocked in the grid)."""
    B, H, T, D = q.shape
    KV = H // n_rep
    tq = _pick_tile(T, tq_target, 8)
    tk = _pick_tile(T, tk_target, 128)
    return pl.pallas_call(
        functools.partial(_flash_attn_kernel, scale=scale, n_rep=n_rep, tq=tq, tk=tk),
        out_shape=jax.ShapeDtypeStruct((B, H, T, D), jnp.bfloat16),
        grid=(B, KV, T // tq, T // tk),
        in_specs=[pl.BlockSpec((1, n_rep, tq, D), lambda b, g, i, j: (b, g, i, 0)),
                  pl.BlockSpec((1, 1, tk, D), lambda b, g, i, j: (b, g, j, 0)),
                  pl.BlockSpec((1, 1, tk, D), lambda b, g, i, j: (b, g, j, 0))],
        out_specs=pl.BlockSpec((1, n_rep, tq, D), lambda b, g, i, j: (b, g, i, 0)),
        scratch_shapes=[pltpu.VMEM((n_rep, tq, 1), jnp.float32),
                        pltpu.VMEM((n_rep, tq, 1), jnp.float32),
                        pltpu.VMEM((n_rep, tq, D), jnp.float32),
                        pltpu.VMEM((n_rep, tq, D), jnp.bfloat16)],
        compiler_params=_cparams(("parallel", "parallel", "parallel", "arbitrary")),
    )(q, k, v)


# -------- output projection as a per-head-group reduction (no transpose glue), residual fused --------

def _oproj_kernel(o_ref, w_ref, r_ref, out_ref, acc_ref, *, hps):
    g = pl.program_id(3)

    @pl.when(g == 0)
    def _():
        acc_ref[...] = r_ref[0].astype(jnp.float32)     # residual initialises the accumulator

    for h in range(hps):                                # several heads per grid step
        acc_ref[...] += jax.lax.dot_general(o_ref[0, h], w_ref[h],
                                            (((1,), (0,)), ((), ())),
                                            preferred_element_type=jnp.float32)

    @pl.when(g == pl.num_programs(3) - 1)
    def _():
        out_ref[0] = acc_ref[...].astype(out_ref.dtype)


def attn_out_proj_residual(o, w, residual, *, tt_target=256):
    """residual + o_proj(attn_out).  o: (B, H, T, D) bf16; w: (H, D, C) bf16; residual: (B, T, C) f32."""
    B, H, T, D = o.shape
    _, _, C = w.shape
    tt = _pick_tile(T, tt_target, 8)
    tn = _pick_tile(C, _proj_tn_target(), 128)
    hps = _heads_per_step(H, D)
    return pl.pallas_call(
        functools.partial(_oproj_kernel, hps=hps),
        out_shape=jax.ShapeDtypeStruct((B, T, C), jnp.float32),
        grid=(B, T // tt, C // tn, H // hps),
        in_specs=[pl.BlockSpec((1, hps, tt, D), lambda b, i, j, g: (b, g, i, 0)),
                  pl.BlockSpec((hps, D, tn), lambda b, i, j, g: (g, 0, j)),
                  pl.BlockSpec((1, tt, tn), lambda b, i, j, g: (b, i, j))],
        out_specs=pl.BlockSpec((1, tt, tn), lambda b, i, j, g: (b, i, j)),
        scratch_shapes=[pltpu.VMEM((tt, tn), jnp.float32)],
        compiler_params=_cparams(("parallel", "parallel", "parallel", "arbitrary")),
    )(o, w, residual)


# ----------------------------------- JAX glue -----------------------------------

def precompute_rope(dim, end, theta):
    freqs = 1.0 / theta ** (jnp.arange(0, dim, 2)[: dim // 2].astype(jnp.float32) / dim)
    t = jnp.arange(end, dtype=jnp.float32)
    ang = jnp.outer(t, freqs)
    return jnp.cos(ang), jnp.sin(ang)


def apply_rope(x, cos, sin):
    # x: (B, T, H, D).  Even lanes = real, odd lanes = imag (torch.view_as_complex convention).
    dt = x.dtype
    xf = x.astype(jnp.float32)
    xr = xf[..., 0::2]
    xi = xf[..., 1::2]
    c = cos[None, :, None, :]
    s = sin[None, :, None, :]
    out_r = xr * c - xi * s
    out_i = xr * s + xi * c
    return jnp.stack([out_r, out_i], axis=-1).reshape(x.shape).astype(dt)


def _fuse_gate_up(wg, wu, ti):
    """Interleave gate/up columns per I tile of width ti: [g_tile0 | u_tile0 | g_tile1 | ...]."""
    C, I = wg.shape
    nj = I // ti
    wg_t = wg.reshape(C, nj, ti)
    wu_t = wu.reshape(C, nj, ti)
    return jnp.concatenate([wg_t, wu_t], axis=2).reshape(C, 2 * I)


def init_params(cfg: Config, key):
    def lin(k, fan_in, fan_out):
        # nn.Linear weight, stored pre-transposed (in, out), bf16 for MXU-native matmuls.
        # TODO(synk): int8 weight path for v5e/v6e projections (not portable to v7x fp8 MXU).
        return (jax.random.normal(k, (fan_in, fan_out), jnp.float32) * 0.02).astype(jnp.bfloat16)

    keys = jax.random.split(key, 3 + cfg.n_layer)
    kv_dim = cfg.n_kv_heads * cfg.head_dim
    params = {
        'embed': jax.random.normal(keys[0], (cfg.vocab_size, cfg.n_embd), jnp.float32) * 0.02,
        'lm_head': lin(keys[1], cfg.n_embd, cfg.vocab_size),
        'norm_w': jnp.ones((cfg.n_embd,), jnp.float32),
    }
    ti = _mlp_tile_i(cfg.int_size)
    layers = []
    for li in range(cfg.n_layer):
        lk = jax.random.split(keys[3 + li], 7)
        wq = lin(lk[0], cfg.n_embd, cfg.n_embd)
        wk = lin(lk[1], cfg.n_embd, kv_dim)
        wv = lin(lk[2], cfg.n_embd, kv_dim)
        wo = lin(lk[3], cfg.n_embd, cfg.n_embd)
        wg = lin(lk[4], cfg.n_embd, cfg.int_size)
        wu = lin(lk[5], cfg.n_embd, cfg.int_size)
        layers.append(dict(
            w_qkv=jnp.concatenate([wq, wk, wv], axis=1),                   # fused QKV weight
            w_o=wo.reshape(cfg.n_heads, cfg.head_dim, cfg.n_embd),         # per-head o_proj
            w_gu=_fuse_gate_up(wg, wu, ti),                                # tile-interleaved gate|up
            wd=lin(lk[6], cfg.int_size, cfg.n_embd),
            ln1=jnp.ones((cfg.n_embd,), jnp.float32),
            ln2=jnp.ones((cfg.n_embd,), jnp.float32),
        ))
    params['layers'] = layers
    cos, sin = precompute_rope(cfg.head_dim, cfg.block_size, cfg.rope_theta)
    params['rope_cos'], params['rope_sin'] = cos, sin
    return params


def llama_forward(toks, params, cfg: Config):
    B, T = toks.shape
    assert T <= cfg.block_size
    C, H, KV, D = cfg.n_embd, cfg.n_heads, cfg.n_kv_heads, cfg.head_dim
    n_rep = H // KV
    scale = 1.0 / math.sqrt(D)
    Nq, Nkv = H * D, KV * D

    x = params['embed'][toks].astype(jnp.float32)            # (B, T, C)
    cos = params['rope_cos'][:T]
    sin = params['rope_sin'][:T]

    for lp in params['layers']:
        # --- attention block: fused RMSNorm + QKV projection, emitted in bf16 ---
        qkv = fused_rmsnorm_matmul(x.reshape(B * T, C), lp['ln1'], lp['w_qkv'],
                                   out_dtype=jnp.bfloat16)
        xq = qkv[:, :Nq].reshape(B, T, H, D)
        xk = qkv[:, Nq:Nq + Nkv].reshape(B, T, KV, D)
        xv = qkv[:, Nq + Nkv:].reshape(B, T, KV, D)
        # TODO(synk): fuse RoPE + the (B,T,H,D)->(B,H,T,D) relayout into the QKV kernel epilogue
        # (pltpu.roll pair-swap with sign mask) to drop these activation round-trips.
        xq = apply_rope(xq, cos, sin)
        xk = apply_rope(xk, cos, sin)
        q = xq.transpose(0, 2, 1, 3).astype(jnp.bfloat16)     # (B, H, T, D)
        k = xk.transpose(0, 2, 1, 3).astype(jnp.bfloat16)     # (B, KV, T, D) — NOT repeated
        v = xv.transpose(0, 2, 1, 3).astype(jnp.bfloat16)     # (B, KV, T, D)
        o = flash_attention(q, k, v, n_rep=n_rep, scale=scale)            # (B, H, T, D) bf16
        x = attn_out_proj_residual(o, lp['w_o'], x)                        # (B, T, C) f32, residual fused

        # --- MLP block: fused RMSNorm + SwiGLU (single fused gate|up matmul) + down-proj + residual ---
        x = fused_mlp_block(x.reshape(B * T, C), lp['ln2'],
                            lp['w_gu'], lp['wd']).reshape(B, T, C)

    logits = fused_rmsnorm_matmul(x.reshape(B * T, C), params['norm_w'], params['lm_head'])
    return logits.reshape(B, T, cfg.vocab_size)


if __name__ == "__main__":
    cfg = Config()
    key = jax.random.PRNGKey(0)
    pkey, tkey = jax.random.split(key)
    params = init_params(cfg, pkey)

    B, T = 2, 8
    toks = jax.random.randint(tkey, (B, T), 0, cfg.vocab_size, dtype=jnp.int32)

    fwd = jax.jit(lambda t, p: llama_forward(t, p, cfg))
    logits = jax.block_until_ready(fwd(toks, params))

    assert logits.shape == (B, T, cfg.vocab_size), logits.shape
    assert bool(jnp.all(jnp.isfinite(logits)))
    print("KERNEL_OK")
</pallas_src>

<mosaic_0001>
module attributes {stable_mosaic.version = 11 : i64} {
  func.func @_ln_matmul_kernel(%arg0: i32, %arg1: i32, %arg2: memref<16x32xf32, #tpu.memory_space<vmem>>, %arg3: memref<1x32xf32, #tpu.memory_space<vmem>>, %arg4: memref<32x64xbf16, #tpu.memory_space<vmem>>, %arg5: memref<16x64xbf16, #tpu.memory_space<vmem>>, %arg6: memref<16x32xbf16, #tpu.memory_space<vmem>>) attributes {dimension_semantics = [#tpu.dimension_semantics<parallel>, #tpu.dimension_semantics<arbitrary>], iteration_bounds = array<i64: 1, 1>, scalar_prefetch = 0 : i64, scratch_operands = 1 : i64, tpu.core_type = #tpu.core_type<tc>, window_params = [{transform_indices = @transform_0, window_bounds = array<i64: 16, 32>}, {pipeline_mode = #tpu.pipeline_mode<synchronous>, transform_indices = @transform_1, window_bounds = array<i64: 1, 32>}, {transform_indices = @transform_2, window_bounds = array<i64: 32, 64>}, {transform_indices = @transform_3, window_bounds = array<i64: 16, 64>}]} {
    %c0_i32 = arith.constant 0 : i32
    %0 = arith.cmpi eq, %arg1, %c0_i32 : i32
    %1 = arith.extui %0 : i1 to i32
    %c0_i32_0 = arith.constant 0 : i32
    %2 = arith.cmpi ne, %1, %c0_i32_0 : i32
    scf.if %2 {
      %c0_6 = arith.constant 0 : index
      %c0_7 = arith.constant 0 : index
      %8 = vector.load %arg2[%c0_6, %c0_7] : memref<16x32xf32, #tpu.memory_space<vmem>>, vector<16x32xf32>
      %9 = arith.mulf %8, %8 : vector<16x32xf32>
      %cst_8 = arith.constant dense<0.000000e+00> : vector<16xf32>
      %10 = vector.multi_reduction <add>, %9, %cst_8 [1] : vector<16x32xf32> to vector<16xf32>
      %11 = vector.shape_cast %10 : vector<16xf32> to vector<16x1xf32>
      %cst_9 = arith.constant 3.200000e+01 : f32
      %12 = vector.broadcast %cst_9 : f32 to vector<16x1xf32>
      %13 = arith.divf %11, %12 : vector<16x1xf32>
      %cst_10 = arith.constant 9.99999974E-6 : f32
      %14 = vector.broadcast %cst_10 : f32 to vector<16x1xf32>
      %15 = arith.addf %13, %14 : vector<16x1xf32>
      %16 = math.rsqrt %15 : vector<16x1xf32>
      %17 = vector.broadcast %16 : vector<16x1xf32> to vector<16x32xf32>
      %18 = arith.mulf %8, %17 : vector<16x32xf32>
      %c0_11 = arith.constant 0 : index
      %c0_12 = arith.constant 0 : index
      %19 = vector.load %arg3[%c0_11, %c0_12] : memref<1x32xf32, #tpu.memory_space<vmem>>, vector<1x32xf32>
      %20 = vector.broadcast %19 : vector<1x32xf32> to vector<16x32xf32>
      %21 = arith.mulf %18, %20 : vector<16x32xf32>
      %22 = arith.truncf %21 : vector<16x32xf32> to vector<16x32xbf16>
      %c0_13 = arith.constant 0 : index
      %c0_14 = arith.constant 0 : index
      %23 = vector.load %arg6[%c0_13, %c0_14] : memref<16x32xbf16, #tpu.memory_space<vmem>>, vector<16x32xbf16>
      tpu.vector_store %arg6[%c0_13, %c0_14], %22 {strides = array<i32>} : memref<16x32xbf16, #tpu.memory_space<vmem>>, vector<16x32xbf16>,
    } else {
    }
    %c0 = arith.constant 0 : index
    %c0_1 = arith.constant 0 : index
    %3 = vector.load %arg6[%c0, %c0_1] : memref<16x32xbf16, #tpu.memory_space<vmem>>, vector<16x32xbf16>
    %c0_2 = arith.constant 0 : index
    %c0_3 = arith.constant 0 : index
    %4 = vector.load %arg4[%c0_2, %c0_3] : memref<32x64xbf16, #tpu.memory_space<vmem>>, vector<32x64xbf16>
    %cst = arith.constant dense<0.000000e+00> : vector<16x64xf32>
    %5 = tpu.matmul %3, %4, %cst {dimension_numbers = #tpu.dot_dimension_numbers<[1], [0], [0], [1], [0, 0, 1, 1], [], []>} : vector<16x32xbf16>, vector<32x64xbf16>, vector<16x64xf32> -> vector<16x64xf32>
    %6 = arith.truncf %5 : vector<16x64xf32> to vector<16x64xbf16>
    %c0_4 = arith.constant 0 : index
    %c0_5 = arith.constant 0 : index
    %7 = vector.load %arg5[%c0_4, %c0_5] : memref<16x64xbf16, #tpu.memory_space<vmem>>, vector<16x64xbf16>
    tpu.vector_store %arg5[%c0_4, %c0_5], %6 {strides = array<i32>} : memref<16x64xbf16, #tpu.memory_space<vmem>>, vector<16x64xbf16>,
    return
  }
  func.func @transform_0(%arg0: i32, %arg1: i32) -> (i32, i32) {
    %c0_i32 = arith.constant 0 : i32
    %c0_i32_0 = arith.constant 0 : i32
    return %arg0, %c0_i32 : i32, i32
  }
  func.func @transform_1(%arg0: i32, %arg1: i32) -> (i32, i32) {
    %c0_i32 = arith.constant 0 : i32
    %c0_i32_0 = arith.constant 0 : i32
    %c0_i32_1 = arith.constant 0 : i32
    return %c0_i32, %c0_i32_0 : i32, i32
  }
  func.func @transform_2(%arg0: i32, %arg1: i32) -> (i32, i32) {
    %c0_i32 = arith.constant 0 : i32
    %c0_i32_0 = arith.constant 0 : i32
    return %c0_i32, %arg1 : i32, i32
  }
  func.func @transform_3(%arg0: i32, %arg1: i32) -> (i32, i32) {
    %c0_i32 = arith.constant 0 : i32
    return %arg0, %arg1 : i32, i32
  }
}

module attributes {stable_mosaic.version = 11 : i64} {
  func.func @_oproj_kernel(%arg0: i32, %arg1: i32, %arg2: i32, %arg3: i32, %arg4: memref<1x4x8x8xbf16, #tpu.memory_space<vmem>>, %arg5: memref<4x8x32xbf16, #tpu.memory_space<vmem>>, %arg6: memref<1x8x32xf32, #tpu.memory_space<vmem>>, %arg7: memref<1x8x32xf32, #tpu.memory_space<vmem>>, %arg8: memref<8x32xf32, #tpu.memory_space<vmem>>) attributes {dimension_semantics = [#tpu.dimension_semantics<parallel>, #tpu.dimension_semantics<parallel>, #tpu.dimension_semantics<parallel>, #tpu.dimension_semantics<arbitrary>], iteration_bounds = array<i64: 2, 1, 1, 1>, scalar_prefetch = 0 : i64, scratch_operands = 1 : i64, tpu.core_type = #tpu.core_type<tc>, window_params = [{transform_indices = @transform_0, window_bounds = array<i64: 1, 4, 8, 8>}, {transform_indices = @transform_1, window_bounds = array<i64: 4, 8, 32>}, {transform_indices = @transform_2, window_bounds = array<i64: 1, 8, 32>}, {transform_indices = @transform_3, window_bounds = array<i64: 1, 8, 32>}]} {
    %c0_i32 = arith.constant 0 : i32
    %0 = arith.cmpi eq, %arg3, %c0_i32 : i32
    %1 = arith.extui %0 : i1 to i32
    %c0_i32_0 = arith.constant 0 : i32
    %2 = arith.cmpi ne, %1, %c0_i32_0 : i32
    scf.if %2 {
      %c0_46 = arith.constant 0 : index
      %c0_47 = arith.constant 0 : index
      %c0_48 = arith.constant 0 : index
      %38 = vector.load %arg6[%c0_46, %c0_47, %c0_48] : memref<1x8x32xf32, #tpu.memory_space<vmem>>, vector<1x8x32xf32>
      %39 = vector.shape_cast %38 : vector<1x8x32xf32> to vector<8x32xf32>
      %c0_49 = arith.constant 0 : index
      %c0_50 = arith.constant 0 : index
      %40 = vector.load %arg8[%c0_49, %c0_50] : memref<8x32xf32, #tpu.memory_space<vmem>>, vector<8x32xf32>
      tpu.vector_store %arg8[%c0_49, %c0_50], %39 {strides = array<i32>} : memref<8x32xf32, #tpu.memory_space<vmem>>, vector<8x32xf32>,
    } else {
    }
    %c0 = arith.constant 0 : index
    %c0_1 = arith.constant 0 : index
    %3 = vector.load %arg8[%c0, %c0_1] : memref<8x32xf32, #tpu.memory_space<vmem>>, vector<8x32xf32>
    %c0_2 = arith.constant 0 : index
    %c0_3 = arith.constant 0 : index
    %c0_4 = arith.constant 0 : index
    %c0_5 = arith.constant 0 : index
    %4 = vector.load %arg4[%c0_2, %c0_3, %c0_4, %c0_5] : memref<1x4x8x8xbf16, #tpu.memory_space<vmem>>, vector<1x1x8x8xbf16>
    %5 = vector.shape_cast %4 : vector<1x1x8x8xbf16> to vector<8x8xbf16>
    %c0_6 = arith.constant 0 : index
    %c0_7 = arith.constant 0 : index
    %c0_8 = arith.constant 0 : index
    %6 = vector.load %arg5[%c0_6, %c0_7, %c0_8] : memref<4x8x32xbf16, #tpu.memory_space<vmem>>, vector<1x8x32xbf16>
    %7 = vector.shape_cast %6 : vector<1x8x32xbf16> to vector<8x32xbf16>
    %cst = arith.constant dense<0.000000e+00> : vector<8x32xf32>
    %8 = tpu.matmul %5, %7, %cst {dimension_numbers = #tpu.dot_dimension_numbers<[1], [0], [0], [1], [0, 0, 1, 1], [], []>} : vector<8x8xbf16>, vector<8x32xbf16>, vector<8x32xf32> -> vector<8x32xf32>
    %9 = arith.addf %3, %8 : vector<8x32xf32>
    %c0_9 = arith.constant 0 : index
    %c0_10 = arith.constant 0 : index
    %10 = vector.load %arg8[%c0_9, %c0_10] : memref<8x32xf32, #tpu.memory_space<vmem>>, vector<8x32xf32>
    tpu.vector_store %arg8[%c0_9, %c0_10], %9 {strides = array<i32>} : memref<8x32xf32, #tpu.memory_space<vmem>>, vector<8x32xf32>,
    %c0_11 = arith.constant 0 : index
    %c0_12 = arith.constant 0 : index
    %11 = vector.load %arg8[%c0_11, %c0_12] : memref<8x32xf32, #tpu.memory_space<vmem>>, vector<8x32xf32>
    %c0_13 = arith.constant 0 : index
    %c1 = arith.constant 1 : index
    %c0_14 = arith.constant 0 : index
    %c0_15 = arith.constant 0 : index
    %12 = vector.load %arg4[%c0_13, %c1, %c0_14, %c0_15] : memref<1x4x8x8xbf16, #tpu.memory_space<vmem>>, vector<1x1x8x8xbf16>
    %13 = vector.shape_cast %12 : vector<1x1x8x8xbf16> to vector<8x8xbf16>
    %c1_16 = arith.constant 1 : index
    %c0_17 = arith.constant 0 : index
    %c0_18 = arith.constant 0 : index
    %14 = vector.load %arg5[%c1_16, %c0_17, %c0_18] : memref<4x8x32xbf16, #tpu.memory_space<vmem>>, vector<1x8x32xbf16>
    %15 = vector.shape_cast %14 : vector<1x8x32xbf16> to vector<8x32xbf16>
    %cst_19 = arith.constant dense<0.000000e+00> : vector<8x32xf32>
    %16 = tpu.matmul %13, %15, %cst_19 {dimension_numbers = #tpu.dot_dimension_numbers<[1], [0], [0], [1], [0, 0, 1, 1], [], []>} : vector<8x8xbf16>, vector<8x32xbf16>, vector<8x32xf32> -> vector<8x32xf32>
    %17 = arith.addf %11, %16 : vector<8x32xf32>
    %c0_20 = arith.constant 0 : index
    %c0_21 = arith.constant 0 : index
    %18 = vector.load %arg8[%c0_20, %c0_21] : memref<8x32xf32, #tpu.memory_space<vmem>>, vector<8x32xf32>
    tpu.vector_store %arg8[%c0_20, %c0_21], %17 {strides = array<i32>} : memref<8x32xf32, #tpu.memory_space<vmem>>, vector<8x32xf32>,
    %c0_22 = arith.constant 0 : index
    %c0_23 = arith.constant 0 : index
    %19 = vector.load %arg8[%c0_22, %c0_23] : memref<8x32xf32, #tpu.memory_space<vmem>>, vector<8x32xf32>
    %c0_24 = arith.constant 0 : index
    %c2 = arith.constant 2 : index
    %c0_25 = arith.constant 0 : index
    %c0_26 = arith.constant 0 : index
    %20 = vector.load %arg4[%c0_24, %c2, %c0_25, %c0_26] : memref<1x4x8x8xbf16, #tpu.memory_space<vmem>>, vector<1x1x8x8xbf16>
    %21 = vector.shape_cast %20 : vector<1x1x8x8xbf16> to vector<8x8xbf16>
    %c2_27 = arith.constant 2 : index
    %c0_28 = arith.constant 0 : index
    %c0_29 = arith.constant 0 : index
    %22 = vector.load %arg5[%c2_27, %c0_28, %c0_29] : memref<4x8x32xbf16, #tpu.memory_space<vmem>>, vector<1x8x32xbf16>
    %23 = vector.shape_cast %22 : vector<1x8x32xbf16> to vector<8x32xbf16>
    %cst_30 = arith.constant dense<0.000000e+00> : vector<8x32xf32>
    %24 = tpu.matmul %21, %23, %cst_30 {dimension_numbers = #tpu.dot_dimension_numbers<[1], [0], [0], [1], [0, 0, 1, 1], [], []>} : vector<8x8xbf16>, vector<8x32xbf16>, vector<8x32xf32> -> vector<8x32xf32>
    %25 = arith.addf %19, %24 : vector<8x32xf32>
    %c0_31 = arith.constant 0 : index
    %c0_32 = arith.constant 0 : index
    %26 = vector.load %arg8[%c0_31, %c0_32] : memref<8x32xf32, #tpu.memory_space<vmem>>, vector<8x32xf32>
    tpu.vector_store %arg8[%c0_31, %c0_32], %25 {strides = array<i32>} : memref<8x32xf32, #tpu.memory_space<vmem>>, vector<8x32xf32>,
    %c0_33 = arith.constant 0 : index
    %c0_34 = arith.constant 0 : index
    %27 = vector.load %arg8[%c0_33, %c0_34] : memref<8x32xf32, #tpu.memory_space<vmem>>, vector<8x32xf32>
    %c0_35 = arith.constant 0 : index
    %c3 = arith.constant 3 : index
    %c0_36 = arith.constant 0 : index
    %c0_37 = arith.constant 0 : index
    %28 = vector.load %arg4[%c0_35, %c3, %c0_36, %c0_37] : memref<1x4x8x8xbf16, #tpu.memory_space<vmem>>, vector<1x1x8x8xbf16>
    %29 = vector.shape_cast %28 : vector<1x1x8x8xbf16> to vector<8x8xbf16>
    %c3_38 = arith.constant 3 : index
    %c0_39 = arith.constant 0 : index
    %c0_40 = arith.constant 0 : index
    %30 = vector.load %arg5[%c3_38, %c0_39, %c0_40] : memref<4x8x32xbf16, #tpu.memory_space<vmem>>, vector<1x8x32xbf16>
    %31 = vector.shape_cast %30 : vector<1x8x32xbf16> to vector<8x32xbf16>
    %cst_41 = arith.constant dense<0.000000e+00> : vector<8x32xf32>
    %32 = tpu.matmul %29, %31, %cst_41 {dimension_numbers = #tpu.dot_dimension_numbers<[1], [0], [0], [1], [0, 0, 1, 1], [], []>} : vector<8x8xbf16>, vector<8x32xbf16>, vector<8x32xf32> -> vector<8x32xf32>
    %33 = arith.addf %27, %32 : vector<8x32xf32>
    %c0_42 = arith.constant 0 : index
    %c0_43 = arith.constant 0 : index
    %34 = vector.load %arg8[%c0_42, %c0_43] : memref<8x32xf32, #tpu.memory_space<vmem>>, vector<8x32xf32>
    tpu.vector_store %arg8[%c0_42, %c0_43], %33 {strides = array<i32>} : memref<8x32xf32, #tpu.memory_space<vmem>>, vector<8x32xf32>,
    %c0_i32_44 = arith.constant 0 : i32
    %35 = arith.cmpi eq, %arg3, %c0_i32_44 : i32
    %36 = arith.extui %35 : i1 to i32
    %c0_i32_45 = arith.constant 0 : i32
    %37 = arith.cmpi ne, %36, %c0_i32_45 : i32
    scf.if %37 {
      %c0_46 = arith.constant 0 : index
      %c0_47 = arith.constant 0 : index
      %38 = vector.load %arg8[%c0_46, %c0_47] : memref<8x32xf32, #tpu.memory_space<vmem>>, vector<8x32xf32>
      %c0_48 = arith.constant 0 : index
      %c0_49 = arith.constant 0 : index
      %c0_50 = arith.constant 0 : index
      %39 = vector.load %arg7[%c0_48, %c0_49, %c0_50] : memref<1x8x32xf32, #tpu.memory_space<vmem>>, vector<1x8x32xf32>
      %40 = vector.shape_cast %39 : vector<1x8x32xf32> to vector<8x32xf32>
      %41 = vector.shape_cast %38 : vector<8x32xf32> to vector<1x8x32xf32>
      tpu.vector_store %arg7[%c0_48, %c0_49, %c0_50], %41 {strides = array<i32>} : memref<1x8x32xf32, #tpu.memory_space<vmem>>, vector<1x8x32xf32>,
    } else {
    }
    return
  }
  func.func @transform_0(%arg0: i32, %arg1: i32, %arg2: i32, %arg3: i32) -> (i32, i32, i32, i32) {
    %c0_i32 = arith.constant 0 : i32
    %c0_i32_0 = arith.constant 0 : i32
    return %arg0, %arg3, %arg1, %c0_i32 : i32, i32, i32, i32
  }
  func.func @transform_1(%arg0: i32, %arg1: i32, %arg2: i32, %arg3: i32) -> (i32, i32, i32) {
    %c0_i32 = arith.constant 0 : i32
    %c0_i32_0 = arith.constant 0 : i32
    return %arg3, %c0_i32, %arg2 : i32, i32, i32
  }
  func.func @transform_2(%arg0: i32, %arg1: i32, %arg2: i32, %arg3: i32) -> (i32, i32, i32) {
    %c0_i32 = arith.constant 0 : i32
    return %arg0, %arg1, %arg2 : i32, i32, i32
  }
  func.func @transform_3(%arg0: i32, %arg1: i32, %arg2: i32, %arg3: i32) -> (i32, i32, i32) {
    %c0_i32 = arith.constant 0 : i32
    return %arg0, %arg1, %arg2 : i32, i32, i32
  }
}

module attributes {stable_mosaic.version = 11 : i64} {
  func.func @_flash_attn_kernel(%arg0: i32, %arg1: i32, %arg2: i32, %arg3: i32, %arg4: memref<1x2x8x8xbf16, #tpu.memory_space<vmem>>, %arg5: memref<1x1x8x8xbf16, #tpu.memory_space<vmem>>, %arg6: memref<1x1x8x8xbf16, #tpu.memory_space<vmem>>, %arg7: memref<1x2x8x8xbf16, #tpu.memory_space<vmem>>, %arg8: memref<2x8x1xf32, #tpu.memory_space<vmem>>, %arg9: memref<2x8x1xf32, #tpu.memory_space<vmem>>, %arg10: memref<2x8x8xf32, #tpu.memory_space<vmem>>, %arg11: memref<2x8x8xbf16, #tpu.memory_space<vmem>>) attributes {dimension_semantics = [#tpu.dimension_semantics<parallel>, #tpu.dimension_semantics<parallel>, #tpu.dimension_semantics<parallel>, #tpu.dimension_semantics<arbitrary>], iteration_bounds = array<i64: 2, 2, 1, 1>, scalar_prefetch = 0 : i64, scratch_operands = 4 : i64, tpu.core_type = #tpu.core_type<tc>, window_params = [{transform_indices = @transform_0, window_bounds = array<i64: 1, 2, 8, 8>}, {transform_indices = @transform_1, window_bounds = array<i64: 1, 1, 8, 8>}, {transform_indices = @transform_2, window_bounds = array<i64: 1, 1, 8, 8>}, {transform_indices = @transform_3, window_bounds = array<i64: 1, 2, 8, 8>}]} {
    %c0_i32 = arith.constant 0 : i32
    %0 = arith.cmpi eq, %arg3, %c0_i32 : i32
    %1 = arith.extui %0 : i1 to i32
    %c0_i32_0 = arith.constant 0 : i32
    %2 = arith.cmpi ne, %1, %c0_i32_0 : i32
    scf.if %2 {
      %cst = arith.constant -1.000000e+30 : f32
      %20 = vector.broadcast %cst : f32 to vector<2x8x1xf32>
      %c0 = arith.constant 0 : index
      %c0_8 = arith.constant 0 : index
      %c0_9 = arith.constant 0 : index
      %21 = vector.load %arg8[%c0, %c0_8, %c0_9] : memref<2x8x1xf32, #tpu.memory_space<vmem>>, vector<2x8x1xf32>
      tpu.vector_store %arg8[%c0, %c0_8, %c0_9], %20 {strides = array<i32>} : memref<2x8x1xf32, #tpu.memory_space<vmem>>, vector<2x8x1xf32>,
      %cst_10 = arith.constant 0.000000e+00 : f32
      %22 = vector.broadcast %cst_10 : f32 to vector<2x8x1xf32>
      %c0_11 = arith.constant 0 : index
      %c0_12 = arith.constant 0 : index
      %c0_13 = arith.constant 0 : index
      %23 = vector.load %arg9[%c0_11, %c0_12, %c0_13] : memref<2x8x1xf32, #tpu.memory_space<vmem>>, vector<2x8x1xf32>
      tpu.vector_store %arg9[%c0_11, %c0_12, %c0_13], %22 {strides = array<i32>} : memref<2x8x1xf32, #tpu.memory_space<vmem>>, vector<2x8x1xf32>,
      %cst_14 = arith.constant 0.000000e+00 : f32
      %24 = vector.broadcast %cst_14 : f32 to vector<2x8x8xf32>
      %c0_15 = arith.constant 0 : index
      %c0_16 = arith.constant 0 : index
      %c0_17 = arith.constant 0 : index
      %25 = vector.load %arg10[%c0_15, %c0_16, %c0_17] : memref<2x8x8xf32, #tpu.memory_space<vmem>>, vector<2x8x8xf32>
      tpu.vector_store %arg10[%c0_15, %c0_16, %c0_17], %24 {strides = array<i32>} : memref<2x8x8xf32, #tpu.memory_space<vmem>>, vector<2x8x8xf32>,
      %c0_18 = arith.constant 0 : index
      %c0_19 = arith.constant 0 : index
      %c0_20 = arith.constant 0 : index
      %c0_21 = arith.constant 0 : index
      %26 = vector.load %arg4[%c0_18, %c0_19, %c0_20, %c0_21] : memref<1x2x8x8xbf16, #tpu.memory_space<vmem>>, vector<1x2x8x8xbf16>
      %27 = vector.shape_cast %26 : vector<1x2x8x8xbf16> to vector<2x8x8xbf16>
      %28 = arith.extf %27 : vector<2x8x8xbf16> to vector<2x8x8xf32>
      %cst_22 = arith.constant 0.353553385 : f32
      %29 = vector.broadcast %cst_22 : f32 to vector<2x8x8xf32>
      %30 = arith.mulf %28, %29 : vector<2x8x8xf32>
      %31 = arith.truncf %30 : vector<2x8x8xf32> to vector<2x8x8xbf16>
      %c0_23 = arith.constant 0 : index
      %c0_24 = arith.constant 0 : index
      %c0_25 = arith.constant 0 : index
      %32 = vector.load %arg11[%c0_23, %c0_24, %c0_25] : memref<2x8x8xbf16, #tpu.memory_space<vmem>>, vector<2x8x8xbf16>
      tpu.vector_store %arg11[%c0_23, %c0_24, %c0_25], %31 {strides = array<i32>} : memref<2x8x8xbf16, #tpu.memory_space<vmem>>, vector<2x8x8xbf16>,
    } else {
    }
    %c8_i32 = arith.constant 8 : i32
    %3 = arith.muli %arg2, %c8_i32 : i32
    %c7_i32 = arith.constant 7 : i32
    %4 = arith.addi %3, %c7_i32 : i32
    %c8_i32_1 = arith.constant 8 : i32
    %5 = arith.muli %arg3, %c8_i32_1 : i32
    %6 = arith.cmpi sge, %4, %5 : i32
    %c8_i32_2 = arith.constant 8 : i32
    %7 = arith.muli %arg2, %c8_i32_2 : i32
    %c1_i32 = arith.constant 1 : i32
    %8 = arith.addi %arg3, %c1_i32 : i32
    %c8_i32_3 = arith.constant 8 : i32
    %9 = arith.muli %8, %c8_i32_3 : i32
    %10 = arith.cmpi sge, %7, %9 : i32
    %11 = arith.extui %10 : i1 to i32
    %c0_i32_4 = arith.constant 0 : i32
    %12 = arith.cmpi ne, %11, %c0_i32_4 : i32
    scf.if %12 {
      %c0 = arith.constant 0 : index
      %c0_8 = arith.constant 0 : index
      %c0_9 = arith.constant 0 : index
      %c0_10 = arith.constant 0 : index
      %20 = vector.load %arg5[%c0, %c0_8, %c0_9, %c0_10] : memref<1x1x8x8xbf16, #tpu.memory_space<vmem>>, vector<1x1x8x8xbf16>
      %21 = vector.shape_cast %20 : vector<1x1x8x8xbf16> to vector<8x8xbf16>
      %c0_11 = arith.constant 0 : index
      %c0_12 = arith.constant 0 : index
      %c0_13 = arith.constant 0 : index
      %22 = vector.load %arg11[%c0_11, %c0_12, %c0_13] : memref<2x8x8xbf16, #tpu.memory_space<vmem>>, vector<1x8x8xbf16>
      %23 = vector.shape_cast %22 : vector<1x8x8xbf16> to vector<8x8xbf16>
      %cst = arith.constant dense<0.000000e+00> : vector<8x8xf32>
      %24 = tpu.matmul %23, %21, %cst {dimension_numbers = #tpu.dot_dimension_numbers<[1], [1], [0], [0], [0, 0, 1, 0], [], []>} : vector<8x8xbf16>, vector<8x8xbf16>, vector<8x8xf32> -> vector<8x8xf32>
      %c0_14 = arith.constant 0 : index
      %c0_15 = arith.constant 0 : index
      %c0_16 = arith.constant 0 : index
      %25 = vector.load %arg8[%c0_14, %c0_15, %c0_16] : memref<2x8x1xf32, #tpu.memory_space<vmem>>, vector<1x8x1xf32>
      %26 = vector.shape_cast %25 : vector<1x8x1xf32> to vector<8x1xf32>
      %cst_17 = arith.constant dense<0xFF800000> : vector<8xf32>
      %27 = vector.multi_reduction <maximumf>, %24, %cst_17 [1] : vector<8x8xf32> to vector<8xf32>
      %28 = vector.shape_cast %27 : vector<8xf32> to vector<8x1xf32>
      %29 = arith.maximumf %26, %28 : vector<8x1xf32>
      %30 = arith.subf %26, %29 : vector<8x1xf32>
      %31 = math.exp %30 : vector<8x1xf32>
      %32 = vector.broadcast %29 : vector<8x1xf32> to vector<8x8xf32>
      %33 = arith.subf %24, %32 : vector<8x8xf32>
      %34 = math.exp %33 : vector<8x8xf32>
      %c0_18 = arith.constant 0 : index
      %c0_19 = arith.constant 0 : index
      %c0_20 = arith.constant 0 : index
      %35 = vector.load %arg9[%c0_18, %c0_19, %c0_20] : memref<2x8x1xf32, #tpu.memory_space<vmem>>, vector<1x8x1xf32>
      %36 = vector.shape_cast %35 : vector<1x8x1xf32> to vector<8x1xf32>
      %37 = arith.mulf %31, %36 : vector<8x1xf32>
      %cst_21 = arith.constant dense<0.000000e+00> : vector<8xf32>
      %38 = vector.multi_reduction <add>, %34, %cst_21 [1] : vector<8x8xf32> to vector<8xf32>
      %39 = vector.shape_cast %38 : vector<8xf32> to vector<8x1xf32>
      %40 = arith.addf %37, %39 : vector<8x1xf32>
      %c0_22 = arith.constant 0 : index
      %c0_23 = arith.constant 0 : index
      %c0_24 = arith.constant 0 : index
      %41 = vector.load %arg9[%c0_22, %c0_23, %c0_24] : memref<2x8x1xf32, #tpu.memory_space<vmem>>, vector<1x8x1xf32>
      %42 = vector.shape_cast %41 : vector<1x8x1xf32> to vector<8x1xf32>
      %43 = vector.shape_cast %40 : vector<8x1xf32> to vector<1x8x1xf32>
      tpu.vector_store %arg9[%c0_22, %c0_23, %c0_24], %43 {strides = array<i32>} : memref<2x8x1xf32, #tpu.memory_space<vmem>>, vector<1x8x1xf32>,
      %c0_25 = arith.constant 0 : index
      %c0_26 = arith.constant 0 : index
      %c0_27 = arith.constant 0 : index
      %44 = vector.load %arg10[%c0_25, %c0_26, %c0_27] : memref<2x8x8xf32, #tpu.memory_space<vmem>>, vector<1x8x8xf32>
      %45 = vector.shape_cast %44 : vector<1x8x8xf32> to vector<8x8xf32>
      %46 = vector.broadcast %31 : vector<8x1xf32> to vector<8x8xf32>
      %47 = arith.mulf %46, %45 : vector<8x8xf32>
      %48 = arith.truncf %34 : vector<8x8xf32> to vector<8x8xbf16>
      %c0_28 = arith.constant 0 : index
      %c0_29 = arith.constant 0 : index
      %c0_30 = arith.constant 0 : index
      %c0_31 = arith.constant 0 : index
      %49 = vector.load %arg6[%c0_28, %c0_29, %c0_30, %c0_31] : memref<1x1x8x8xbf16, #tpu.memory_space<vmem>>, vector<1x1x8x8xbf16>
      %50 = vector.shape_cast %49 : vector<1x1x8x8xbf16> to vector<8x8xbf16>
      %cst_32 = arith.constant dense<0.000000e+00> : vector<8x8xf32>
      %51 = tpu.matmul %48, %50, %cst_32 {dimension_numbers = #tpu.dot_dimension_numbers<[1], [0], [0], [1], [0, 0, 1, 1], [], []>} : vector<8x8xbf16>, vector<8x8xbf16>, vector<8x8xf32> -> vector<8x8xf32>
      %52 = arith.addf %47, %51 : vector<8x8xf32>
      %c0_33 = arith.constant 0 : index
      %c0_34 = arith.constant 0 : index
      %c0_35 = arith.constant 0 : index
      %53 = vector.load %arg10[%c0_33, %c0_34, %c0_35] : memref<2x8x8xf32, #tpu.memory_space<vmem>>, vector<1x8x8xf32>
      %54 = vector.shape_cast %53 : vector<1x8x8xf32> to vector<8x8xf32>
      %55 = vector.shape_cast %52 : vector<8x8xf32> to vector<1x8x8xf32>
      tpu.vector_store %arg10[%c0_33, %c0_34, %c0_35], %55 {strides = array<i32>} : memref<2x8x8xf32, #tpu.memory_space<vmem>>, vector<1x8x8xf32>,
      %c0_36 = arith.constant 0 : index
      %c0_37 = arith.constant 0 : index
      %c0_38 = arith.constant 0 : index
      %56 = vector.load %arg8[%c0_36, %c0_37, %c0_38] : memref<2x8x1xf32, #tpu.memory_space<vmem>>, vector<1x8x1xf32>
      %57 = vector.shape_cast %56 : vector<1x8x1xf32> to vector<8x1xf32>
      %58 = vector.shape_cast %29 : vector<8x1xf32> to vector<1x8x1xf32>
      tpu.vector_store %arg8[%c0_36, %c0_37, %c0_38], %58 {strides = array<i32>} : memref<2x8x1xf32, #tpu.memory_space<vmem>>, vector<1x8x1xf32>,
      %c1 = arith.constant 1 : index
      %c0_39 = arith.constant 0 : index
      %c0_40 = arith.constant 0 : index
      %59 = vector.load %arg11[%c1, %c0_39, %c0_40] : memref<2x8x8xbf16, #tpu.memory_space<vmem>>, vector<1x8x8xbf16>
      %60 = vector.shape_cast %59 : vector<1x8x8xbf16> to vector<8x8xbf16>
      %cst_41 = arith.constant dense<0.000000e+00> : vector<8x8xf32>
      %61 = tpu.matmul %60, %21, %cst_41 {dimension_numbers = #tpu.dot_dimension_numbers<[1], [1], [0], [0], [0, 0, 1, 0], [], []>} : vector<8x8xbf16>, vector<8x8xbf16>, vector<8x8xf32> -> vector<8x8xf32>
      %c1_42 = arith.constant 1 : index
      %c0_43 = arith.constant 0 : index
      %c0_44 = arith.constant 0 : index
      %62 = vector.load %arg8[%c1_42, %c0_43, %c0_44] : memref<2x8x1xf32, #tpu.memory_space<vmem>>, vector<1x8x1xf32>
      %63 = vector.shape_cast %62 : vector<1x8x1xf32> to vector<8x1xf32>
      %cst_45 = arith.constant dense<0xFF800000> : vector<8xf32>
      %64 = vector.multi_reduction <maximumf>, %61, %cst_45 [1] : vector<8x8xf32> to vector<8xf32>
      %65 = vector.shape_cast %64 : vector<8xf32> to vector<8x1xf32>
      %66 = arith.maximumf %63, %65 : vector<8x1xf32>
      %67 = arith.subf %63, %66 : vector<8x1xf32>
      %68 = math.exp %67 : vector<8x1xf32>
      %69 = vector.broadcast %66 : vector<8x1xf32> to vector<8x8xf32>
      %70 = arith.subf %61, %69 : vector<8x8xf32>
      %71 = math.exp %70 : vector<8x8xf32>
      %c1_46 = arith.constant 1 : index
      %c0_47 = arith.constant 0 : index
      %c0_48 = arith.constant 0 : index
      %72 = vector.load %arg9[%c1_46, %c0_47, %c0_48] : memref<2x8x1xf32, #tpu.memory_space<vmem>>, vector<1x8x1xf32>
      %73 = vector.shape_cast %72 : vector<1x8x1xf32> to vector<8x1xf32>
      %74 = arith.mulf %68, %73 : vector<8x1xf32>
      %cst_49 = arith.constant dense<0.000000e+00> : vector<8xf32>
      %75 = vector.multi_reduction <add>, %71, %cst_49 [1] : vector<8x8xf32> to vector<8xf32>
      %76 = vector.shape_cast %75 : vector<8xf32> to vector<8x1xf32>
      %77 = arith.addf %74, %76 : vector<8x1xf32>
      %c1_50 = arith.constant 1 : index
      %c0_51 = arith.constant 0 : index
      %c0_52 = arith.constant 0 : index
      %78 = vector.load %arg9[%c1_50, %c0_51, %c0_52] : memref<2x8x1xf32, #tpu.memory_space<vmem>>, vector<1x8x1xf32>
      %79 = vector.shape_cast %78 : vector<1x8x1xf32> to vector<8x1xf32>
      %80 = vector.shape_cast %77 : vector<8x1xf32> to vector<1x8x1xf32>
      tpu.vector_store %arg9[%c1_50, %c0_51, %c0_52], %80 {strides = array<i32>} : memref<2x8x1xf32, #tpu.memory_space<vmem>>, vector<1x8x1xf32>,
      %c1_53 = arith.constant 1 : index
      %c0_54 = arith.constant 0 : index
      %c0_55 = arith.constant 0 : index
      %81 = vector.load %arg10[%c1_53, %c0_54, %c0_55] : memref<2x8x8xf32, #tpu.memory_space<vmem>>, vector<1x8x8xf32>
      %82 = vector.shape_cast %81 : vector<1x8x8xf32> to vector<8x8xf32>
      %83 = vector.broadcast %68 : vector<8x1xf32> to vector<8x8xf32>
      %84 = arith.mulf %83, %82 : vector<8x8xf32>
      %85 = arith.truncf %71 : vector<8x8xf32> to vector<8x8xbf16>
      %c0_56 = arith.constant 0 : index
      %c0_57 = arith.constant 0 : index
      %c0_58 = arith.constant 0 : index
      %c0_59 = arith.constant 0 : index
      %86 = vector.load %arg6[%c0_56, %c0_57, %c0_58, %c0_59] : memref<1x1x8x8xbf16, #tpu.memory_space<vmem>>, vector<1x1x8x8xbf16>
      %87 = vector.shape_cast %86 : vector<1x1x8x8xbf16> to vector<8x8xbf16>
      %cst_60 = arith.constant dense<0.000000e+00> : vector<8x8xf32>
      %88 = tpu.matmul %85, %87, %cst_60 {dimension_numbers = #tpu.dot_dimension_numbers<[1], [0], [0], [1], [0, 0, 1, 1], [], []>} : vector<8x8xbf16>, vector<8x8xbf16>, vector<8x8xf32> -> vector<8x8xf32>
      %89 = arith.addf %84, %88 : vector<8x8xf32>
      %c1_61 = arith.constant 1 : index
      %c0_62 = arith.constant 0 : index
      %c0_63 = arith.constant 0 : index
      %90 = vector.load %arg10[%c1_61, %c0_62, %c0_63] : memref<2x8x8xf32, #tpu.memory_space<vmem>>, vector<1x8x8xf32>
      %91 = vector.shape_cast %90 : vector<1x8x8xf32> to vector<8x8xf32>
      %92 = vector.shape_cast %89 : vector<8x8xf32> to vector<1x8x8xf32>
      tpu.vector_store %arg10[%c1_61, %c0_62, %c0_63], %92 {strides = array<i32>} : memref<2x8x8xf32, #tpu.memory_space<vmem>>, vector<1x8x8xf32>,
      %c1_64 = arith.constant 1 : index
      %c0_65 = arith.constant 0 : index
      %c0_66 = arith.constant 0 : index
      %93 = vector.load %arg8[%c1_64, %c0_65, %c0_66] : memref<2x8x1xf32, #tpu.memory_space<vmem>>, vector<1x8x1xf32>
      %94 = vector.shape_cast %93 : vector<1x8x1xf32> to vector<8x1xf32>
      %95 = vector.shape_cast %66 : vector<8x1xf32> to vector<1x8x1xf32>
      tpu.vector_store %arg8[%c1_64, %c0_65, %c0_66], %95 {strides = array<i32>} : memref<2x8x1xf32, #tpu.memory_space<vmem>>, vector<1x8x1xf32>,
    } else {
    }
    %true = arith.constant true
    %13 = arith.xori %10, %true : i1
    %14 = arith.andi %6, %13 : i1
    %15 = arith.extui %14 : i1 to i32
    %c0_i32_5 = arith.constant 0 : i32
    %16 = arith.cmpi ne, %15, %c0_i32_5 : i32
    scf.if %16 {
      %c0 = arith.constant 0 : index
      %c0_8 = arith.constant 0 : index
      %c0_9 = arith.constant 0 : index
      %c0_10 = arith.constant 0 : index
      %20 = vector.load %arg5[%c0, %c0_8, %c0_9, %c0_10] : memref<1x1x8x8xbf16, #tpu.memory_space<vmem>>, vector<1x1x8x8xbf16>
      %21 = vector.shape_cast %20 : vector<1x1x8x8xbf16> to vector<8x8xbf16>
      %c8_i32_11 = arith.constant 8 : i32
      %22 = arith.muli %arg2, %c8_i32_11 : i32
      %23 = tpu.iota {dimensions = array<i32: 0>} : vector<8x8xi32>
      %24 = vector.broadcast %22 : i32 to vector<8x8xi32>
      %25 = arith.addi %24, %23 : vector<8x8xi32>
      %c8_i32_12 = arith.constant 8 : i32
      %26 = arith.muli %arg3, %c8_i32_12 : i32
      %27 = tpu.iota {dimensions = array<i32: 1>} : vector<8x8xi32>
      %28 = vector.broadcast %26 : i32 to vector<8x8xi32>
      %29 = arith.addi %28, %27 : vector<8x8xi32>
      %30 = arith.cmpi sge, %25, %29 : vector<8x8xi32>
      %c0_13 = arith.constant 0 : index
      %c0_14 = arith.constant 0 : index
      %c0_15 = arith.constant 0 : index
      %31 = vector.load %arg11[%c0_13, %c0_14, %c0_15] : memref<2x8x8xbf16, #tpu.memory_space<vmem>>, vector<1x8x8xbf16>
      %32 = vector.shape_cast %31 : vector<1x8x8xbf16> to vector<8x8xbf16>
      %cst = arith.constant dense<0.000000e+00> : vector<8x8xf32>
      %33 = tpu.matmul %32, %21, %cst {dimension_numbers = #tpu.dot_dimension_numbers<[1], [1], [0], [0], [0, 0, 1, 0], [], []>} : vector<8x8xbf16>, vector<8x8xbf16>, vector<8x8xf32> -> vector<8x8xf32>
      %cst_16 = arith.constant -1.000000e+30 : f32
      %34 = vector.broadcast %cst_16 : f32 to vector<8x8xf32>
      %35 = arith.select %30, %33, %34 : vector<8x8xi1>, vector<8x8xf32>
      %c0_17 = arith.constant 0 : index
      %c0_18 = arith.constant 0 : index
      %c0_19 = arith.constant 0 : index
      %36 = vector.load %arg8[%c0_17, %c0_18, %c0_19] : memref<2x8x1xf32, #tpu.memory_space<vmem>>, vector<1x8x1xf32>
      %37 = vector.shape_cast %36 : vector<1x8x1xf32> to vector<8x1xf32>
      %cst_20 = arith.constant dense<0xFF800000> : vector<8xf32>
      %38 = vector.multi_reduction <maximumf>, %35, %cst_20 [1] : vector<8x8xf32> to vector<8xf32>
      %39 = vector.shape_cast %38 : vector<8xf32> to vector<8x1xf32>
      %40 = arith.maximumf %37, %39 : vector<8x1xf32>
      %41 = arith.subf %37, %40 : vector<8x1xf32>
      %42 = math.exp %41 : vector<8x1xf32>
      %43 = vector.broadcast %40 : vector<8x1xf32> to vector<8x8xf32>
      %44 = arith.subf %35, %43 : vector<8x8xf32>
      %45 = math.exp %44 : vector<8x8xf32>
      %c0_21 = arith.constant 0 : index
      %c0_22 = arith.constant 0 : index
      %c0_23 = arith.constant 0 : index
      %46 = vector.load %arg9[%c0_21, %c0_22, %c0_23] : memref<2x8x1xf32, #tpu.memory_space<vmem>>, vector<1x8x1xf32>
      %47 = vector.shape_cast %46 : vector<1x8x1xf32> to vector<8x1xf32>
      %48 = arith.mulf %42, %47 : vector<8x1xf32>
      %cst_24 = arith.constant dense<0.000000e+00> : vector<8xf32>
      %49 = vector.multi_reduction <add>, %45, %cst_24 [1] : vector<8x8xf32> to vector<8xf32>
      %50 = vector.shape_cast %49 : vector<8xf32> to vector<8x1xf32>
      %51 = arith.addf %48, %50 : vector<8x1xf32>
      %c0_25 = arith.constant 0 : index
      %c0_26 = arith.constant 0 : index
      %c0_27 = arith.constant 0 : index
      %52 = vector.load %arg9[%c0_25, %c0_26, %c0_27] : memref<2x8x1xf32, #tpu.memory_space<vmem>>, vector<1x8x1xf32>
      %53 = vector.shape_cast %52 : vector<1x8x1xf32> to vector<8x1xf32>
      %54 = vector.shape_cast %51 : vector<8x1xf32> to vector<1x8x1xf32>
      tpu.vector_store %arg9[%c0_25, %c0_26, %c0_27], %54 {strides = array<i32>} : memref<2x8x1xf32, #tpu.memory_space<vmem>>, vector<1x8x1xf32>,
      %c0_28 = arith.constant 0 : index
      %c0_29 = arith.constant 0 : index
      %c0_30 = arith.constant 0 : index
      %55 = vector.load %arg10[%c0_28, %c0_29, %c0_30] : memref<2x8x8xf32, #tpu.memory_space<vmem>>, vector<1x8x8xf32>
      %56 = vector.shape_cast %55 : vector<1x8x8xf32> to vector<8x8xf32>
      %57 = vector.broadcast %42 : vector<8x1xf32> to vector<8x8xf32>
      %58 = arith.mulf %57, %56 : vector<8x8xf32>
      %59 = arith.truncf %45 : vector<8x8xf32> to vector<8x8xbf16>
      %c0_31 = arith.constant 0 : index
      %c0_32 = arith.constant 0 : index
      %c0_33 = arith.constant 0 : index
      %c0_34 = arith.constant 0 : index
      %60 = vector.load %arg6[%c0_31, %c0_32, %c0_33, %c0_34] : memref<1x1x8x8xbf16, #tpu.memory_space<vmem>>, vector<1x1x8x8xbf16>
      %61 = vector.shape_cast %60 : vector<1x1x8x8xbf16> to vector<8x8xbf16>
      %cst_35 = arith.constant dense<0.000000e+00> : vector<8x8xf32>
      %62 = tpu.matmul %59, %61, %cst_35 {dimension_numbers = #tpu.dot_dimension_numbers<[1], [0], [0], [1], [0, 0, 1, 1], [], []>} : vector<8x8xbf16>, vector<8x8xbf16>, vector<8x8xf32> -> vector<8x8xf32>
      %63 = arith.addf %58, %62 : vector<8x8xf32>
      %c0_36 = arith.constant 0 : index
      %c0_37 = arith.constant 0 : index
      %c0_38 = arith.constant 0 : index
      %64 = vector.load %arg10[%c0_36, %c0_37, %c0_38] : memref<2x8x8xf32, #tpu.memory_space<vmem>>, vector<1x8x8xf32>
      %65 = vector.shape_cast %64 : vector<1x8x8xf32> to vector<8x8xf32>
      %66 = vector.shape_cast %63 : vector<8x8xf32> to vector<1x8x8xf32>
      tpu.vector_store %arg10[%c0_36, %c0_37, %c0_38], %66 {strides = array<i32>} : memref<2x8x8xf32, #tpu.memory_space<vmem>>, vector<1x8x8xf32>,
      %c0_39 = arith.constant 0 : index
      %c0_40 = arith.constant 0 : index
      %c0_41 = arith.constant 0 : index
      %67 = vector.load %arg8[%c0_39, %c0_40, %c0_41] : memref<2x8x1xf32, #tpu.memory_space<vmem>>, vector<1x8x1xf32>
      %68 = vector.shape_cast %67 : vector<1x8x1xf32> to vector<8x1xf32>
      %69 = vector.shape_cast %40 : vector<8x1xf32> to vector<1x8x1xf32>
      tpu.vector_store %arg8[%c0_39, %c0_40, %c0_41], %69 {strides = array<i32>} : memref<2x8x1xf32, #tpu.memory_space<vmem>>, vector<1x8x1xf32>,
      %c1 = arith.constant 1 : index
      %c0_42 = arith.constant 0 : index
      %c0_43 = arith.constant 0 : index
      %70 = vector.load %arg11[%c1, %c0_42, %c0_43] : memref<2x8x8xbf16, #tpu.memory_space<vmem>>, vector<1x8x8xbf16>
      %71 = vector.shape_cast %70 : vector<1x8x8xbf16> to vector<8x8xbf16>
      %cst_44 = arith.constant dense<0.000000e+00> : vector<8x8xf32>
      %72 = tpu.matmul %71, %21, %cst_44 {dimension_numbers = #tpu.dot_dimension_numbers<[1], [1], [0], [0], [0, 0, 1, 0], [], []>} : vector<8x8xbf16>, vector<8x8xbf16>, vector<8x8xf32> -> vector<8x8xf32>
      %cst_45 = arith.constant -1.000000e+30 : f32
      %73 = vector.broadcast %cst_45 : f32 to vector<8x8xf32>
      %74 = arith.select %30, %72, %73 : vector<8x8xi1>, vector<8x8xf32>
      %c1_46 = arith.constant 1 : index
      %c0_47 = arith.constant 0 : index
      %c0_48 = arith.constant 0 : index
      %75 = vector.load %arg8[%c1_46, %c0_47, %c0_48] : memref<2x8x1xf32, #tpu.memory_space<vmem>>, vector<1x8x1xf32>
      %76 = vector.shape_cast %75 : vector<1x8x1xf32> to vector<8x1xf32>
      %cst_49 = arith.constant dense<0xFF800000> : vector<8xf32>
      %77 = vector.multi_reduction <maximumf>, %74, %cst_49 [1] : vector<8x8xf32> to vector<8xf32>
      %78 = vector.shape_cast %77 : vector<8xf32> to vector<8x1xf32>
      %79 = arith.maximumf %76, %78 : vector<8x1xf32>
      %80 = arith.subf %76, %79 : vector<8x1xf32>
      %81 = math.exp %80 : vector<8x1xf32>
      %82 = vector.broadcast %79 : vector<8x1xf32> to vector<8x8xf32>
      %83 = arith.subf %74, %82 : vector<8x8xf32>
      %84 = math.exp %83 : vector<8x8xf32>
      %c1_50 = arith.constant 1 : index
      %c0_51 = arith.constant 0 : index
      %c0_52 = arith.constant 0 : index
      %85 = vector.load %arg9[%c1_50, %c0_51, %c0_52] : memref<2x8x1xf32, #tpu.memory_space<vmem>>, vector<1x8x1xf32>
      %86 = vector.shape_cast %85 : vector<1x8x1xf32> to vector<8x1xf32>
      %87 = arith.mulf %81, %86 : vector<8x1xf32>
      %cst_53 = arith.constant dense<0.000000e+00> : vector<8xf32>
      %88 = vector.multi_reduction <add>, %84, %cst_53 [1] : vector<8x8xf32> to vector<8xf32>
      %89 = vector.shape_cast %88 : vector<8xf32> to vector<8x1xf32>
      %90 = arith.addf %87, %89 : vector<8x1xf32>
      %c1_54 = arith.constant 1 : index
      %c0_55 = arith.constant 0 : index
      %c0_56 = arith.constant 0 : index
      %91 = vector.load %arg9[%c1_54, %c0_55, %c0_56] : memref<2x8x1xf32, #tpu.memory_space<vmem>>, vector<1x8x1xf32>
      %92 = vector.shape_cast %91 : vector<1x8x1xf32> to vector<8x1xf32>
      %93 = vector.shape_cast %90 : vector<8x1xf32> to vector<1x8x1xf32>
      tpu.vector_store %arg9[%c1_54, %c0_55, %c0_56], %93 {strides = array<i32>} : memref<2x8x1xf32, #tpu.memory_space<vmem>>, vector<1x8x1xf32>,
      %c1_57 = arith.constant 1 : index
      %c0_58 = arith.constant 0 : index
      %c0_59 = arith.constant 0 : index
      %94 = vector.load %arg10[%c1_57, %c0_58, %c0_59] : memref<2x8x8xf32, #tpu.memory_space<vmem>>, vector<1x8x8xf32>
      %95 = vector.shape_cast %94 : vector<1x8x8xf32> to vector<8x8xf32>
      %96 = vector.broadcast %81 : vector<8x1xf32> to vector<8x8xf32>
      %97 = arith.mulf %96, %95 : vector<8x8xf32>
      %98 = arith.truncf %84 : vector<8x8xf32> to vector<8x8xbf16>
      %c0_60 = arith.constant 0 : index
      %c0_61 = arith.constant 0 : index
      %c0_62 = arith.constant 0 : index
      %c0_63 = arith.constant 0 : index
      %99 = vector.load %arg6[%c0_60, %c0_61, %c0_62, %c0_63] : memref<1x1x8x8xbf16, #tpu.memory_space<vmem>>, vector<1x1x8x8xbf16>
      %100 = vector.shape_cast %99 : vector<1x1x8x8xbf16> to vector<8x8xbf16>
      %cst_64 = arith.constant dense<0.000000e+00> : vector<8x8xf32>
      %101 = tpu.matmul %98, %100, %cst_64 {dimension_numbers = #tpu.dot_dimension_numbers<[1], [0], [0], [1], [0, 0, 1, 1], [], []>} : vector<8x8xbf16>, vector<8x8xbf16>, vector<8x8xf32> -> vector<8x8xf32>
      %102 = arith.addf %97, %101 : vector<8x8xf32>
      %c1_65 = arith.constant 1 : index
      %c0_66 = arith.constant 0 : index
      %c0_67 = arith.constant 0 : index
      %103 = vector.load %arg10[%c1_65, %c0_66, %c0_67] : memref<2x8x8xf32, #tpu.memory_space<vmem>>, vector<1x8x8xf32>
      %104 = vector.shape_cast %103 : vector<1x8x8xf32> to vector<8x8xf32>
      %105 = vector.shape_cast %102 : vector<8x8xf32> to vector<1x8x8xf32>
      tpu.vector_store %arg10[%c1_65, %c0_66, %c0_67], %105 {strides = array<i32>} : memref<2x8x8xf32, #tpu.memory_space<vmem>>, vector<1x8x8xf32>,
      %c1_68 = arith.constant 1 : index
      %c0_69 = arith.constant 0 : index
      %c0_70 = arith.constant 0 : index
      %106 = vector.load %arg8[%c1_68, %c0_69, %c0_70] : memref<2x8x1xf32, #tpu.memory_space<vmem>>, vector<1x8x1xf32>
      %107 = vector.shape_cast %106 : vector<1x8x1xf32> to vector<8x1xf32>
      %108 = vector.shape_cast %79 : vector<8x1xf32> to vector<1x8x1xf32>
      tpu.vector_store %arg8[%c1_68, %c0_69, %c0_70], %108 {strides = array<i32>} : memref<2x8x1xf32, #tpu.memory_space<vmem>>, vector<1x8x1xf32>,
    } else {
    }
    %c0_i32_6 = arith.constant 0 : i32
    %17 = arith.cmpi eq, %arg3, %c0_i32_6 : i32
    %18 = arith.extui %17 : i1 to i32
    %c0_i32_7 = arith.constant 0 : i32
    %19 = arith.cmpi ne, %18, %c0_i32_7 : i32
    scf.if %19 {
      %c0 = arith.constant 0 : index
      %c0_8 = arith.constant 0 : index
      %c0_9 = arith.constant 0 : index
      %20 = vector.load %arg10[%c0, %c0_8, %c0_9] : memref<2x8x8xf32, #tpu.memory_space<vmem>>, vector<2x8x8xf32>
      %c0_10 = arith.constant 0 : index
      %c0_11 = arith.constant 0 : index
      %c0_12 = arith.constant 0 : index
      %21 = vector.load %arg9[%c0_10, %c0_11, %c0_12] : memref<2x8x1xf32, #tpu.memory_space<vmem>>, vector<2x8x1xf32>
      %22 = tpu.reciprocal %21 {approx = true} : vector<2x8x1xf32> -> vector<2x8x1xf32>
      %23 = vector.broadcast %22 : vector<2x8x1xf32> to vector<2x8x8xf32>
      %24 = arith.mulf %20, %23 : vector<2x8x8xf32>
      %25 = arith.truncf %24 : vector<2x8x8xf32> to vector<2x8x8xbf16>
      %c0_13 = arith.constant 0 : index
      %c0_14 = arith.constant 0 : index
      %c0_15 = arith.constant 0 : index
      %c0_16 = arith.constant 0 : index
      %26 = vector.load %arg7[%c0_13, %c0_14, %c0_15, %c0_16] : memref<1x2x8x8xbf16, #tpu.memory_space<vmem>>, vector<1x2x8x8xbf16>
      %27 = vector.shape_cast %26 : vector<1x2x8x8xbf16> to vector<2x8x8xbf16>
      %28 = vector.shape_cast %25 : vector<2x8x8xbf16> to vector<1x2x8x8xbf16>
      tpu.vector_store %arg7[%c0_13, %c0_14, %c0_15, %c0_16], %28 {strides = array<i32>} : memref<1x2x8x8xbf16, #tpu.memory_space<vmem>>, vector<1x2x8x8xbf16>,
    } else {
    }
    return
  }
  func.func @transform_0(%arg0: i32, %arg1: i32, %arg2: i32, %arg3: i32) -> (i32, i32, i32, i32) {
    %c0_i32 = arith.constant 0 : i32
    %c0_i32_0 = arith.constant 0 : i32
    return %arg0, %arg1, %arg2, %c0_i32 : i32, i32, i32, i32
  }
  func.func @transform_1(%arg0: i32, %arg1: i32, %arg2: i32, %arg3: i32) -> (i32, i32, i32, i32) {
    %c0_i32 = arith.constant 0 : i32
    %c0_i32_0 = arith.constant 0 : i32
    return %arg0, %arg1, %arg3, %c0_i32 : i32, i32, i32, i32
  }
  func.func @transform_2(%arg0: i32, %arg1: i32, %arg2: i32, %arg3: i32) -> (i32, i32, i32, i32) {
    %c0_i32 = arith.constant 0 : i32
    %c0_i32_0 = arith.constant 0 : i32
    return %arg0, %arg1, %arg3, %c0_i32 : i32, i32, i32, i32
  }
  func.func @transform_3(%arg0: i32, %arg1: i32, %arg2: i32, %arg3: i32) -> (i32, i32, i32, i32) {
    %c0_i32 = arith.constant 0 : i32
    %c0_i32_0 = arith.constant 0 : i32
    return %arg0, %arg1, %arg2, %c0_i32 : i32, i32, i32, i32
  }
}

module attributes {stable_mosaic.version = 11 : i64} {
  func.func @_mlp_kernel(%arg0: i32, %arg1: i32, %arg2: memref<16x32xf32, #tpu.memory_space<vmem>>, %arg3: memref<1x32xf32, #tpu.memory_space<vmem>>, %arg4: memref<32x128xbf16, #tpu.memory_space<vmem>>, %arg5: memref<64x32xbf16, #tpu.memory_space<vmem>>, %arg6: memref<16x32xf32, #tpu.memory_space<vmem>>, %arg7: memref<16x32xf32, #tpu.memory_space<vmem>>, %arg8: memref<16x32xbf16, #tpu.memory_space<vmem>>) attributes {dimension_semantics = [#tpu.dimension_semantics<parallel>, #tpu.dimension_semantics<arbitrary>], iteration_bounds = array<i64: 1, 1>, scalar_prefetch = 0 : i64, scratch_operands = 2 : i64, tpu.core_type = #tpu.core_type<tc>, window_params = [{transform_indices = @transform_0, window_bounds = array<i64: 16, 32>}, {pipeline_mode = #tpu.pipeline_mode<synchronous>, transform_indices = @transform_1, window_bounds = array<i64: 1, 32>}, {transform_indices = @transform_2, window_bounds = array<i64: 32, 128>}, {transform_indices = @transform_3, window_bounds = array<i64: 64, 32>}, {transform_indices = @transform_4, window_bounds = array<i64: 16, 32>}]} {
    %c0_i32 = arith.constant 0 : i32
    %0 = arith.cmpi eq, %arg1, %c0_i32 : i32
    %1 = arith.extui %0 : i1 to i32
    %c0_i32_0 = arith.constant 0 : i32
    %2 = arith.cmpi ne, %1, %c0_i32_0 : i32
    scf.if %2 {
      %c0_14 = arith.constant 0 : index
      %c0_15 = arith.constant 0 : index
      %24 = vector.load %arg2[%c0_14, %c0_15] : memref<16x32xf32, #tpu.memory_space<vmem>>, vector<16x32xf32>
      %25 = arith.mulf %24, %24 : vector<16x32xf32>
      %cst_16 = arith.constant dense<0.000000e+00> : vector<16xf32>
      %26 = vector.multi_reduction <add>, %25, %cst_16 [1] : vector<16x32xf32> to vector<16xf32>
      %27 = vector.shape_cast %26 : vector<16xf32> to vector<16x1xf32>
      %cst_17 = arith.constant 3.200000e+01 : f32
      %28 = vector.broadcast %cst_17 : f32 to vector<16x1xf32>
      %29 = arith.divf %27, %28 : vector<16x1xf32>
      %cst_18 = arith.constant 9.99999974E-6 : f32
      %30 = vector.broadcast %cst_18 : f32 to vector<16x1xf32>
      %31 = arith.addf %29, %30 : vector<16x1xf32>
      %32 = math.rsqrt %31 : vector<16x1xf32>
      %33 = vector.broadcast %32 : vector<16x1xf32> to vector<16x32xf32>
      %34 = arith.mulf %24, %33 : vector<16x32xf32>
      %c0_19 = arith.constant 0 : index
      %c0_20 = arith.constant 0 : index
      %35 = vector.load %arg3[%c0_19, %c0_20] : memref<1x32xf32, #tpu.memory_space<vmem>>, vector<1x32xf32>
      %36 = vector.broadcast %35 : vector<1x32xf32> to vector<16x32xf32>
      %37 = arith.mulf %34, %36 : vector<16x32xf32>
      %38 = arith.truncf %37 : vector<16x32xf32> to vector<16x32xbf16>
      %c0_21 = arith.constant 0 : index
      %c0_22 = arith.constant 0 : index
      %39 = vector.load %arg8[%c0_21, %c0_22] : memref<16x32xbf16, #tpu.memory_space<vmem>>, vector<16x32xbf16>
      tpu.vector_store %arg8[%c0_21, %c0_22], %38 {strides = array<i32>} : memref<16x32xbf16, #tpu.memory_space<vmem>>, vector<16x32xbf16>,
      %c0_23 = arith.constant 0 : index
      %c0_24 = arith.constant 0 : index
      %40 = vector.load %arg7[%c0_23, %c0_24] : memref<16x32xf32, #tpu.memory_space<vmem>>, vector<16x32xf32>
      tpu.vector_store %arg7[%c0_23, %c0_24], %24 {strides = array<i32>} : memref<16x32xf32, #tpu.memory_space<vmem>>, vector<16x32xf32>,
    } else {
    }
    %c0 = arith.constant 0 : index
    %c0_1 = arith.constant 0 : index
    %3 = vector.load %arg8[%c0, %c0_1] : memref<16x32xbf16, #tpu.memory_space<vmem>>, vector<16x32xbf16>
    %c0_2 = arith.constant 0 : index
    %c0_3 = arith.constant 0 : index
    %4 = vector.load %arg4[%c0_2, %c0_3] : memref<32x128xbf16, #tpu.memory_space<vmem>>, vector<32x128xbf16>
    %cst = arith.constant dense<0.000000e+00> : vector<16x128xf32>
    %5 = tpu.matmul %3, %4, %cst {dimension_numbers = #tpu.dot_dimension_numbers<[1], [0], [0], [1], [0, 0, 1, 1], [], []>} : vector<16x32xbf16>, vector<32x128xbf16>, vector<16x128xf32> -> vector<16x128xf32>
    %6 = vector.extract_strided_slice %5 {offsets = [0, 0], sizes = [16, 64], strides = [1, 1]} : vector<16x128xf32> to vector<16x64xf32>
    %7 = vector.extract_strided_slice %5 {offsets = [0, 64], sizes = [16, 64], strides = [1, 1]} : vector<16x128xf32> to vector<16x64xf32>
    %8 = arith.negf %6 : vector<16x64xf32>
    %9 = math.exp %8 : vector<16x64xf32>
    %cst_4 = arith.constant 1.000000e+00 : f32
    %10 = vector.broadcast %cst_4 : f32 to vector<16x64xf32>
    %11 = arith.addf %10, %9 : vector<16x64xf32>
    %12 = arith.divf %10, %11 : vector<16x64xf32>
    %13 = arith.mulf %6, %12 : vector<16x64xf32>
    %14 = arith.mulf %13, %7 : vector<16x64xf32>
    %c0_5 = arith.constant 0 : index
    %c0_6 = arith.constant 0 : index
    %15 = vector.load %arg7[%c0_5, %c0_6] : memref<16x32xf32, #tpu.memory_space<vmem>>, vector<16x32xf32>
    %16 = arith.truncf %14 : vector<16x64xf32> to vector<16x64xbf16>
    %c0_7 = arith.constant 0 : index
    %c0_8 = arith.constant 0 : index
    %17 = vector.load %arg5[%c0_7, %c0_8] : memref<64x32xbf16, #tpu.memory_space<vmem>>, vector<64x32xbf16>
    %cst_9 = arith.constant dense<0.000000e+00> : vector<16x32xf32>
    %18 = tpu.matmul %16, %17, %cst_9 {dimension_numbers = #tpu.dot_dimension_numbers<[1], [0], [0], [1], [0, 0, 1, 1], [], []>} : vector<16x64xbf16>, vector<64x32xbf16>, vector<16x32xf32> -> vector<16x32xf32>
    %19 = arith.addf %15, %18 : vector<16x32xf32>
    %c0_10 = arith.constant 0 : index
    %c0_11 = arith.constant 0 : index
    %20 = vector.load %arg7[%c0_10, %c0_11] : memref<16x32xf32, #tpu.memory_space<vmem>>, vector<16x32xf32>
    tpu.vector_store %arg7[%c0_10, %c0_11], %19 {strides = array<i32>} : memref<16x32xf32, #tpu.memory_space<vmem>>, vector<16x32xf32>,
    %c0_i32_12 = arith.constant 0 : i32
    %21 = arith.cmpi eq, %arg1, %c0_i32_12 : i32
    %22 = arith.extui %21 : i1 to i32
    %c0_i32_13 = arith.constant 0 : i32
    %23 = arith.cmpi ne, %22, %c0_i32_13 : i32
    scf.if %23 {
      %c0_14 = arith.constant 0 : index
      %c0_15 = arith.constant 0 : index
      %24 = vector.load %arg7[%c0_14, %c0_15] : memref<16x32xf32, #tpu.memory_space<vmem>>, vector<16x32xf32>
      %c0_16 = arith.constant 0 : index
      %c0_17 = arith.constant 0 : index
      %25 = vector.load %arg6[%c0_16, %c0_17] : memref<16x32xf32, #tpu.memory_space<vmem>>, vector<16x32xf32>
      tpu.vector_store %arg6[%c0_16, %c0_17], %24 {strides = array<i32>} : memref<16x32xf32, #tpu.memory_space<vmem>>, vector<16x32xf32>,
    } else {
    }
    return
  }
  func.func @transform_0(%arg0: i32, %arg1: i32) -> (i32, i32) {
    %c0_i32 = arith.constant 0 : i32
    %c0_i32_0 = arith.constant 0 : i32
    return %arg0, %c0_i32 : i32, i32
  }
  func.func @transform_1(%arg0: i32, %arg1: i32) -> (i32, i32) {
    %c0_i32 = arith.constant 0 : i32
    %c0_i32_0 = arith.constant 0 : i32
    %c0_i32_1 = arith.constant 0 : i32
    return %c0_i32, %c0_i32_0 : i32, i32
  }
  func.func @transform_2(%arg0: i32, %arg1: i32) -> (i32, i32) {
    %c0_i32 = arith.constant 0 : i32
    %c0_i32_0 = arith.constant 0 : i32
    return %c0_i32, %arg1 : i32, i32
  }
  func.func @transform_3(%arg0: i32, %arg1: i32) -> (i32, i32) {
    %c0_i32 = arith.constant 0 : i32
    %c0_i32_0 = arith.constant 0 : i32
    return %arg1, %c0_i32 : i32, i32
  }
  func.func @transform_4(%arg0: i32, %arg1: i32) -> (i32, i32) {
    %c0_i32 = arith.constant 0 : i32
    %c0_i32_0 = arith.constant 0 : i32
    return %arg0, %c0_i32 : i32, i32
  }
}

module attributes {stable_mosaic.version = 11 : i64} {
  func.func @_ln_matmul_kernel(%arg0: i32, %arg1: i32, %arg2: memref<16x32xf32, #tpu.memory_space<vmem>>, %arg3: memref<1x32xf32, #tpu.memory_space<vmem>>, %arg4: memref<32x64xbf16, #tpu.memory_space<vmem>>, %arg5: memref<16x64xf32, #tpu.memory_space<vmem>>, %arg6: memref<16x32xbf16, #tpu.memory_space<vmem>>) attributes {dimension_semantics = [#tpu.dimension_semantics<parallel>, #tpu.dimension_semantics<arbitrary>], iteration_bounds = array<i64: 1, 1>, scalar_prefetch = 0 : i64, scratch_operands = 1 : i64, tpu.core_type = #tpu.core_type<tc>, window_params = [{transform_indices = @transform_0, window_bounds = array<i64: 16, 32>}, {pipeline_mode = #tpu.pipeline_mode<synchronous>, transform_indices = @transform_1, window_bounds = array<i64: 1, 32>}, {transform_indices = @transform_2, window_bounds = array<i64: 32, 64>}, {transform_indices = @transform_3, window_bounds = array<i64: 16, 64>}]} {
    %c0_i32 = arith.constant 0 : i32
    %0 = arith.cmpi eq, %arg1, %c0_i32 : i32
    %1 = arith.extui %0 : i1 to i32
    %c0_i32_0 = arith.constant 0 : i32
    %2 = arith.cmpi ne, %1, %c0_i32_0 : i32
    scf.if %2 {
      %c0_6 = arith.constant 0 : index
      %c0_7 = arith.constant 0 : index
      %7 = vector.load %arg2[%c0_6, %c0_7] : memref<16x32xf32, #tpu.memory_space<vmem>>, vector<16x32xf32>
      %8 = arith.mulf %7, %7 : vector<16x32xf32>
      %cst_8 = arith.constant dense<0.000000e+00> : vector<16xf32>
      %9 = vector.multi_reduction <add>, %8, %cst_8 [1] : vector<16x32xf32> to vector<16xf32>
      %10 = vector.shape_cast %9 : vector<16xf32> to vector<16x1xf32>
      %cst_9 = arith.constant 3.200000e+01 : f32
      %11 = vector.broadcast %cst_9 : f32 to vector<16x1xf32>
      %12 = arith.divf %10, %11 : vector<16x1xf32>
      %cst_10 = arith.constant 9.99999974E-6 : f32
      %13 = vector.broadcast %cst_10 : f32 to vector<16x1xf32>
      %14 = arith.addf %12, %13 : vector<16x1xf32>
      %15 = math.rsqrt %14 : vector<16x1xf32>
      %16 = vector.broadcast %15 : vector<16x1xf32> to vector<16x32xf32>
      %17 = arith.mulf %7, %16 : vector<16x32xf32>
      %c0_11 = arith.constant 0 : index
      %c0_12 = arith.constant 0 : index
      %18 = vector.load %arg3[%c0_11, %c0_12] : memref<1x32xf32, #tpu.memory_space<vmem>>, vector<1x32xf32>
      %19 = vector.broadcast %18 : vector<1x32xf32> to vector<16x32xf32>
      %20 = arith.mulf %17, %19 : vector<16x32xf32>
      %21 = arith.truncf %20 : vector<16x32xf32> to vector<16x32xbf16>
      %c0_13 = arith.constant 0 : index
      %c0_14 = arith.constant 0 : index
      %22 = vector.load %arg6[%c0_13, %c0_14] : memref<16x32xbf16, #tpu.memory_space<vmem>>, vector<16x32xbf16>
      tpu.vector_store %arg6[%c0_13, %c0_14], %21 {strides = array<i32>} : memref<16x32xbf16, #tpu.memory_space<vmem>>, vector<16x32xbf16>,
    } else {
    }
    %c0 = arith.constant 0 : index
    %c0_1 = arith.constant 0 : index
    %3 = vector.load %arg6[%c0, %c0_1] : memref<16x32xbf16, #tpu.memory_space<vmem>>, vector<16x32xbf16>
    %c0_2 = arith.constant 0 : index
    %c0_3 = arith.constant 0 : index
    %4 = vector.load %arg4[%c0_2, %c0_3] : memref<32x64xbf16, #tpu.memory_space<vmem>>, vector<32x64xbf16>
    %cst = arith.constant dense<0.000000e+00> : vector<16x64xf32>
    %5 = tpu.matmul %3, %4, %cst {dimension_numbers = #tpu.dot_dimension_numbers<[1], [0], [0], [1], [0, 0, 1, 1], [], []>} : vector<16x32xbf16>, vector<32x64xbf16>, vector<16x64xf32> -> vector<16x64xf32>
    %c0_4 = arith.constant 0 : index
    %c0_5 = arith.constant 0 : index
    %6 = vector.load %arg5[%c0_4, %c0_5] : memref<16x64xf32, #tpu.memory_space<vmem>>, vector<16x64xf32>
    tpu.vector_store %arg5[%c0_4, %c0_5], %5 {strides = array<i32>} : memref<16x64xf32, #tpu.memory_space<vmem>>, vector<16x64xf32>,
    return
  }
  func.func @transform_0(%arg0: i32, %arg1: i32) -> (i32, i32) {
    %c0_i32 = arith.constant 0 : i32
    %c0_i32_0 = arith.constant 0 : i32
    return %arg0, %c0_i32 : i32, i32
  }
  func.func @transform_1(%arg0: i32, %arg1: i32) -> (i32, i32) {
    %c0_i32 = arith.constant 0 : i32
    %c0_i32_0 = arith.constant 0 : i32
    %c0_i32_1 = arith.constant 0 : i32
    return %c0_i32, %c0_i32_0 : i32, i32
  }
  func.func @transform_2(%arg0: i32, %arg1: i32) -> (i32, i32) {
    %c0_i32 = arith.constant 0 : i32
    %c0_i32_0 = arith.constant 0 : i32
    return %c0_i32, %arg1 : i32, i32
  }
  func.func @transform_3(%arg0: i32, %arg1: i32) -> (i32, i32) {
    %c0_i32 = arith.constant 0 : i32
    return %arg0, %arg1 : i32, i32
  }
}

</mosaic_0001>

<llo_original>
// kernel: _lambda_.9
$region0: #{_lambda_.9}
  #allocation0 [shape = 'u32[]', space=smem, size = 0x4, offset = 0x4, fixed_abs, tag = 'smem constant byte address 0x4 - core index']
  #allocation1 [shape = 'u32[144,128]{1,0:T(1,128)}', space=vmem, size = 0x12000, scoped, tag = 'internal scratch']
  #allocation2 [shape = 'bf16[16,32]{1,0:T(8,128)(2,1)}', space=vmem, size = 0x1000, scoped, tag = 'scratch operand']
  %s0 = inlined_call_operand.vmem [shape: f32[16,32], index: 0, kind: input, shape index: {}]
  %s1 = inlined_call_operand.vmem [shape: f32[1,32], index: 1, kind: input, shape index: {}]
  %s2 = inlined_call_operand.vmem [shape: bf16[32,64], index: 2, kind: input, shape index: {}]
  %s3 = inlined_call_operand.vmem [shape: bf16[16,64], index: 3, kind: output, shape index: {}]
  %s4 = sld [smem:[#allocation0]]
  $region26: #{_lambda_.9} parent=0
    _
  %s6 = ssub.s32 1, %s4
  %s7 = scalar_select 0, %s6, %s4
  // Predicated region
  $region2: #{_lambda_.9} parent=0 // pred_check
    _
  $region3: #{_lambda_.9} parent=0 // pred_check_branch
    %9 = sbr.rel (0) target = $region5
  $region4: #{_lambda_.9} parent=0 // pred_region
    _
  $region5: #{_lambda_.9} parent=0 // pred_fallthru
    _
  // Predicated region
  $region6: #{_lambda_.9} parent=0 // pred_check
    _
  $region7: #{_lambda_.9} parent=0 // pred_check_branch
    %11 = sbr.rel (0) target = $region9
  $region8: #{_lambda_.9} parent=0 // pred_region
    _
  $region9: #{_lambda_.9} parent=0 // pred_fallthru
    _
  // Predicated region
  $region10: #{_lambda_.9} parent=0 // pred_check
    _
  $region11: #{_lambda_.9} parent=0 // pred_check_branch
    %13 = sbr.rel (0) target = $region13
  $region12: #{_lambda_.9} parent=0 // pred_region
    _
  $region13: #{_lambda_.9} parent=0 // pred_fallthru
    _
  %p15 = scmp.eq.s32.totalorder 0, 0
  // Predicated region
  $region14: #{_lambda_.9} parent=0 // pred_check
    %p16 = pneg %p15
  $region15: #{_lambda_.9} parent=0 // pred_check_branch
    %18 = sbr.rel (%p16) target = $region17
  $region16: #{_lambda_.9} parent=0 // pred_region
    %v19 = vld [vmem:[%s0] sm:$0xff]
    %v20 = vld [vmem:[%s0 + $0x8] sm:$0xff]
    %v21 = vmul.f32 %v19, %v19
    %v22 = vmul.f32 %v20, %v20
    %vm23 = vcmask 261120
    %v24 = vsel %vm23, %v21, 0.0
    %25 = vadd.xlane.f32.xlu0 %v24
    %v26 = vpop.xlane.xlu0 %25
    %v27 = vsel %vm23, %v22, 0.0
    %28 = vadd.xlane.f32.xlu0 %v27
    %v29 = vpop.xlane.xlu0 %28
    %v30 = vrcp.pop 32.0
    %v31 = vmul.f32 %v26, %v30
    %v32 = vmul.f32 %v29, %v30
    %v33 = vadd.f32 %v31, 1e-05
    %v34 = vadd.f32 %v32, 1e-05
    %v35 = vrsqrt.pop %v33
    %v36 = vrsqrt.pop %v34
    %v37 = vmul.f32 %v19, %v35
    %v38 = vmul.f32 %v20, %v36
    %v39 = vld [vmem:[%s1] sm:$0x1]
    %v41 = vlaneseq
    %v42 = vshrl.u32 %v41, 7
    %v43 = vsub.s32 0, %v42
    %v44 = vrot.slane %v39, %v43
    %v46 = vmul.f32 %v37, %v44
    %v47 = vmul.f32 %v38, %v44
    %v48 = vpack.c.bf16 %v47, %v46
    %v50 = vunpack.c.l.b16 %v48
    %v51 = vunpack.c.h.b16 %v48
    %v52 = vpack.c.b16 %v50, %v50
    %v53 = vpack.c.b16 %v51, %v51
    %vm56 = vcmask 257024
    %57 = vst.msk [vmem:[#allocation2] sm:$0xf] %vm56, %v52
    %58 = vst.msk [vmem:[#allocation2 + $0x4] sm:$0xf] %vm56, %v53
  $region17: #{_lambda_.9} parent=0 // pred_fallthru
    _
  %v59 = vld [vmem:[#allocation2] sm:$0xf]
  %v60 = vld [vmem:[#allocation2 + $0x4] sm:$0xf]
  %v61 = vld [vmem:[%s2] sm:$0xf]
  %v62 = vld [vmem:[%s2 + $0x4] sm:$0xf]
  %v63 = vld [vmem:[%s2 + $0x8] sm:$0xf]
  %v64 = vld [vmem:[%s2 + $0xc] sm:$0xf]
  %v67 = vunpack.c.l.b16 %v59
  %v68 = vunpack.c.l.b16 %v60
  %v69 = vpack.c.b16 %v68, %v67
  %v74 = vunpack.c.l.b16 %v61
  %v75 = vunpack.c.l.b16 %v62
  %v76 = vunpack.c.l.b16 %v63
  %v77 = vunpack.c.l.b16 %v64
  %v78 = vpack.c.b16 %v75, %v74
  %v79 = vpack.c.b16 %v77, %v76
  %vm82 = vcmask 261120
  %v84 = vsel %vm82, %v69, 0
  %86 = vmatprep.subr.bf16.mxu0 0
  %87 = vmatpush1.bf16.msra.mxu0 0
  %88 = vmatprep.subr.bf16.mxu0 0
  %89 = vmatpush1.bf16.msra.mxu0 0
  %90 = vmatprep.subr.bf16.mxu0 0
  %91 = vmatpush1.bf16.msra.mxu0 0
  %92 = vmatprep.subr.bf16.mxu0 0
  %93 = vmatpush1.bf16.msra.mxu0 0
  %94 = vmatprep.subr.bf16.mxu0 0
  %95 = vmatpush1.bf16.msra.mxu0 0
  %96 = vmatprep.subr.bf16.mxu0 0
  %97 = vmatpush1.bf16.msra.mxu0 0
  %98 = vmatprep.subr.bf16.mxu0 0
  %99 = vmatpush1.bf16.msra.mxu0 %v79
  %100 = vmatprep.subr.bf16.mxu0 0
  %101 = vmatpush1.bf16.msra.mxu0 %v78
  %102 = vmatprep.subr.bf16.mxu0 0
  %103 = vmatpush2.bf16.msra.mxu0 0
  %104 = vmatprep.subr.bf16.mxu0 0
  %105 = vmatpush2.bf16.msra.mxu0 0
  %106 = vmatprep.subr.bf16.mxu0 0
  %107 = vmatpush2.bf16.msra.mxu0 0
  %108 = vmatprep.subr.bf16.mxu0 0
  %109 = vmatpush2.bf16.msra.mxu0 0
  %110 = vmatprep.subr.bf16.mxu0 0
  %111 = vmatpush2.bf16.msra.mxu0 0
  %112 = vmatprep.subr.bf16.mxu0 0
  %113 = vmatpush2.bf16.msra.mxu0 0
  %114 = vmatprep.subr.bf16.mxu0 0
  %115 = vmatpush2.bf16.msra.mxu0 0
  %116 = vmatprep.subr.bf16.mxu0 0
  %117 = vmatpush2.bf16.msra.mxu0 0
  %118 = vmatprep.mubr.bf16.mxu0 0
  %119 = vmatmul.mubr.bf16.gmra.mxu0 %v84
  %v120 = vpop.f32.mrf.mxu0
  %v121 = vadd.f32 0.0, %v120
  %v122 = vpop.f32.mrf.mxu0
  %v123 = vpop.f32.mrf.mxu0
  %v124 = vadd.f32 0.0, %v123
  %v125 = vpop.f32.mrf.mxu0
  %126 = vdwg.mxu0
  %v127 = vpack.c.bf16 %v124, %v121
  %v129 = vunpack.c.l.b16 %v127
  %v130 = vunpack.c.h.b16 %v127
  %v131 = vpack.c.b16 %v129, %v129
  %v132 = vpack.c.b16 %v130, %v130
  %vm135 = vcmask 519168
  %136 = vst.msk [vmem:[%s3] sm:$0xf] %vm135, %v131
  %137 = vst.msk [vmem:[%s3 + $0x4] sm:$0xf] %vm135, %v132
  // Predicated region
  $region18: #{_lambda_.9} parent=0 // pred_check
    _
  $region19: #{_lambda_.9} parent=0 // pred_check_branch
    %139 = sbr.rel (0) target = $region21
  $region20: #{_lambda_.9} parent=0 // pred_region
    _
  $region21: #{_lambda_.9} parent=0 // pred_fallthru
    _
  // Predicated region
  $region22: #{_lambda_.9} parent=0 // pred_check
    _
  $region23: #{_lambda_.9} parent=0 // pred_check_branch
    %141 = sbr.rel (0) target = $region25
  $region24: #{_lambda_.9} parent=0 // pred_region
    _
  $region25: #{_lambda_.9} parent=0 // pred_fallthru
    _

// kernel: _lambda_.11
$region0: #{_lambda_.11}
  #allocation0 [shape = 'u32[]', space=smem, size = 0x4, offset = 0x4, fixed_abs, tag = 'smem constant byte address 0x4 - core index']
  #allocation1 [shape = 'u32[144,128]{1,0:T(1,128)}', space=vmem, size = 0x12000, scoped, tag = 'internal scratch']
  #allocation2 [shape = 'f32[8,32]{1,0:T(8,128)}', space=vmem, size = 0x1000, scoped, tag = 'scratch operand']
  %s0 = inlined_call_operand.vmem [shape: bf16[2,4,8,8], index: 0, kind: input, shape index: {}]
  %s1 = inlined_call_operand.vmem [shape: bf16[4,8,32], index: 1, kind: input, shape index: {}]
  %s2 = inlined_call_operand.vmem [shape: f32[2,8,32], index: 2, kind: input, shape index: {}]
  %s3 = inlined_call_operand.vmem [shape: f32[2,8,32], index: 3, kind: output, shape index: {}]
  %s4 = sld [smem:[#allocation0]]
  $region53: #{_lambda_.11} parent=0
    _
  %s6 = ssub.s32 1, %s4
  %s7 = scalar_select 0, %s6, %s4
  loop: start=0, step=1, limit=4
  $region2: #{_lambda_.11} parent=0 // loop_pre_header
    _
  $region3: #{_lambda_.11} parent=0 // loop_header
    %s9 = sphi 0, %s13
    %p10 = scmp.ge.s32.totalorder %s9, 4
    %s16 = sphi 0, %s42
    %s17 = sphi 0, %s38
    %s18 = sphi 0, %s34
    %s19 = sphi 0, %s30
    %s20 = sphi 0, %s16
    %s21 = sphi 0, %s17
    %s22 = sphi 0, %s18
    %s23 = sphi 0, %s19
    %s24 = sphi 0, %s20
    %s25 = sphi 0, %s21
    %s26 = sphi 0, %s22
    %s27 = sphi 0, %s23
    %s49 = sphi 0, %s51
    %s52 = sphi 0, %s49
    %s53 = sphi 0, %s52
    %s69 = sphi 0, %s53
    %s77 = sphi 0, %s79
    %s80 = sphi 0, %s77
    %s81 = sphi 0, %s80
    %s97 = sphi 0, %s81
    %s107 = sphi 0, %s109
    %s110 = sphi 0, %s107
    %s111 = sphi 0, %s110
    %s127 = sphi 0, %s111
    %s137 = sphi 0, %s139
    %s140 = sphi 0, %s137
    %s141 = sphi 0, %s140
    %s157 = sphi 0, %s141
  $region4: #{_lambda_.11} parent=0 // loop_header_branch
    %12 = sbr.rel (%p10) target = $region8
  $region5: #{_lambda_.11} parent=0 // loop_body
    %s14 = ssub.s32 %s9, 1
    %s15 = ssub.s32 %s9, 2
    %s28 = sadd.s32 1, %s19
    %p29 = scmp.ge.s32.totalorder %s28, 1
    %s30 = scalar_select %p29, 0, %s28
    %s31 = sadd.s32 1, %s18
    %s32 = scalar_select %p29, %s31, %s18
    %p33 = scmp.ge.s32.totalorder %s32, 1
    %s34 = scalar_select %p33, 0, %s32
    %s35 = sadd.s32 1, %s17
    %s36 = scalar_select %p33, %s35, %s17
    %p37 = scmp.ge.s32.totalorder %s36, 1
    %s38 = scalar_select %p37, 0, %s36
    %s39 = sadd.s32 1, %s16
    %s40 = scalar_select %p37, %s39, %s16
    %p41 = scmp.ge.s32.totalorder %s40, 2
    %s42 = scalar_select %p41, 0, %s40
    %s43 = ssub.s32 %s16, %s42
    %s44 = ssub.s32 %s19, %s30
    %s45 = sor.u32 %s43, %s44
    %s46 = ssub.s32 %s17, %s38
    %s47 = sor.u32 %s45, %s46
    %p48 = scmp.eq.s32.totalorder %s47, 0
    %s50 = sadd.s32 %s49, 1
    %s51 = scalar_select %p48, %s49, %s50
    %p54 = pneg %p48
    %p55 = scmp.eq.s32.totalorder %s9, 1
    %p56 = por %p54, %p55
    %p57 = scmp.ne.s32.totalorder %s49, %s52
    %p58 = scmp.eq.s32.totalorder %s9, 0
    %p59 = por %p57, %p58
    %p60 = scmp.ne.s32.totalorder %s49, %s52
    %p61 = scmp.eq.s32.totalorder %s14, 1
    %p62 = por %p60, %p61
    %p63 = scmp.ne.s32.totalorder %s52, %s53
    %p64 = scmp.eq.s32.totalorder %s14, 0
    %p65 = por %p63, %p64
    %p66 = scmp.ne.s32.totalorder %s52, %s53
    %p67 = scmp.eq.s32.totalorder %s15, 1
    %p68 = por %p66, %p67
    %p70 = scmp.ne.s32.totalorder %s53, %s69
    %p71 = scmp.eq.s32.totalorder %s15, 0
    %p72 = por %p70, %p71
    %s73 = ssub.s32 %s19, %s30
    %s74 = ssub.s32 %s18, %s34
    %s75 = sor.u32 %s73, %s74
    %p76 = scmp.eq.s32.totalorder %s75, 0
    %s78 = sadd.s32 %s77, 1
    %s79 = scalar_select %p76, %s77, %s78
    %p82 = pneg %p76
    %p83 = scmp.eq.s32.totalorder %s9, 1
    %p84 = por %p82, %p83
    %p85 = scmp.ne.s32.totalorder %s77, %s80
    %p86 = scmp.eq.s32.totalorder %s9, 0
    %p87 = por %p85, %p86
    %p88 = scmp.ne.s32.totalorder %s77, %s80
    %p89 = scmp.eq.s32.totalorder %s14, 1
    %p90 = por %p88, %p89
    %p91 = scmp.ne.s32.totalorder %s80, %s81
    %p92 = scmp.eq.s32.totalorder %s14, 0
    %p93 = por %p91, %p92
    %p94 = scmp.ne.s32.totalorder %s80, %s81
    %p95 = scmp.eq.s32.totalorder %s15, 1
    %p96 = por %p94, %p95
    %p98 = scmp.ne.s32.totalorder %s81, %s97
    %p99 = scmp.eq.s32.totalorder %s15, 0
    %p100 = por %p98, %p99
    %s101 = ssub.s32 %s16, %s42
    %s102 = ssub.s32 %s17, %s38
    %s103 = sor.u32 %s101, %s102
    %s104 = ssub.s32 %s18, %s34
    %s105 = sor.u32 %s103, %s104
    %p106 = scmp.eq.s32.totalorder %s105, 0
    %s108 = sadd.s32 %s107, 1
    %s109 = scalar_select %p106, %s107, %s108
    %p112 = pneg %p106
    %p113 = scmp.eq.s32.totalorder %s9, 1
    %p114 = por %p112, %p113
    %p115 = scmp.ne.s32.totalorder %s107, %s110
    %p116 = scmp.eq.s32.totalorder %s9, 0
    %p117 = por %p115, %p116
    %p118 = scmp.ne.s32.totalorder %s107, %s110
    %p119 = scmp.eq.s32.totalorder %s14, 1
    %p120 = por %p118, %p119
    %p121 = scmp.ne.s32.totalorder %s110, %s111
    %p122 = scmp.eq.s32.totalorder %s14, 0
    %p123 = por %p121, %p122
    %p124 = scmp.ne.s32.totalorder %s110, %s111
    %p125 = scmp.eq.s32.totalorder %s15, 1
    %p126 = por %p124, %p125
    %p128 = scmp.ne.s32.totalorder %s111, %s127
    %p129 = scmp.eq.s32.totalorder %s15, 0
    %p130 = por %p128, %p129
    %s131 = ssub.s32 %s16, %s42
    %s132 = ssub.s32 %s17, %s38
    %s133 = sor.u32 %s131, %s132
    %s134 = ssub.s32 %s18, %s34
    %s135 = sor.u32 %s133, %s134
    %p136 = scmp.eq.s32.totalorder %s135, 0
    %s138 = sadd.s32 %s137, 1
    %s139 = scalar_select %p136, %s137, %s138
    %p142 = pneg %p136
    %p143 = scmp.eq.s32.totalorder %s9, 1
    %p144 = por %p142, %p143
    %p145 = scmp.ne.s32.totalorder %s137, %s140
    %p146 = scmp.eq.s32.totalorder %s9, 0
    %p147 = por %p145, %p146
    %p148 = scmp.ne.s32.totalorder %s137, %s140
    %p149 = scmp.eq.s32.totalorder %s14, 1
    %p150 = por %p148, %p149
    %p151 = scmp.ne.s32.totalorder %s140, %s141
    %p152 = scmp.eq.s32.totalorder %s14, 0
    %p153 = por %p151, %p152
    %p154 = scmp.ne.s32.totalorder %s140, %s141
    %p155 = scmp.eq.s32.totalorder %s15, 1
    %p156 = por %p154, %p155
    %p158 = scmp.ne.s32.totalorder %s141, %s157
    %p159 = scmp.eq.s32.totalorder %s15, 0
    %p160 = por %p158, %p159
    %p161 = scmp.le.s32.totalorder 1, %s9
    %p162 = scmp.lt.s32.totalorder %s9, 3
    %p163 = pnand %p161, %p162
    %p164 = pneg %p163
    // Predicated region
    $region9: #{_lambda_.11} parent=5 // pred_check
      _
    $region10: #{_lambda_.11} parent=5 // pred_check_branch
      %166 = sbr.rel (%p163) target = $region12
    $region11: #{_lambda_.11} parent=5 // pred_region
      %s167 = ssub.s32 %s9, 1
      // Predicated region
      $region13: #{_lambda_.11} parent=11 // pred_check
        %p168 = pneg %p93
      $region14: #{_lambda_.11} parent=11 // pred_check_branch
        %170 = sbr.rel (%p168) target = $region16
      $region15: #{_lambda_.11} parent=11 // pred_region
        %s171 = smul.u32 4, %s23
        %p172 = scmp.lt.s32.totalorder %s171, 3
        %s173 = scalar_select %p172, %s171, 3
        %p174 = scmp.lt.s32.totalorder %s22, 0
        %s175 = scalar_select %p174, %s22, 0
        %s176 = sadd.s32 %s175, %s173
        %s177 = smul.addr %s176, 4
        %s178 = scalar_lea.vmem %s1, %s177
        %s179 = smul.u32 4, %s23
      $region16: #{_lambda_.11} parent=11 // pred_fallthru
        _
    $region12: #{_lambda_.11} parent=5 // pred_fallthru
      _
    %p180 = scmp.lt.s32.totalorder %s9, 2
    // Predicated region
    $region17: #{_lambda_.11} parent=5 // pred_check
      %p181 = pneg %p180
    $region18: #{_lambda_.11} parent=5 // pred_check_branch
      %183 = sbr.rel (%p181) target = $region20
    $region19: #{_lambda_.11} parent=5 // pred_region
      // Predicated region
      $region21: #{_lambda_.11} parent=19 // pred_check
        %p184 = pneg %p59
      $region22: #{_lambda_.11} parent=19 // pred_check_branch
        %186 = sbr.rel (%p184) target = $region24
      $region23: #{_lambda_.11} parent=19 // pred_region
        %s187 = smul.u32 4, %s19
        %p188 = scmp.lt.s32.totalorder %s16, 1
        %s189 = scalar_select %p188, %s16, 1
        %p190 = scmp.lt.s32.totalorder %s187, 3
        %s191 = scalar_select %p190, %s187, 3
        %p192 = scmp.lt.s32.totalorder %s17, 0
        %s193 = scalar_select %p192, %s17, 0
        %s194 = sadd.s32 %s193, %s191
        %s195 = smul.addr %s189, 4
        %s196 = sadd.s32 %s194, %s195
        %s197 = smul.addr %s196, 4
        %s198 = scalar_lea.vmem %s0, %s197
        %s199 = smul.u32 4, %s19
      $region24: #{_lambda_.11} parent=19 // pred_fallthru
        _
      // Predicated region
      $region25: #{_lambda_.11} parent=19 // pred_check
        %p200 = pneg %p117
      $region26: #{_lambda_.11} parent=19 // pred_check_branch
        %202 = sbr.rel (%p200) target = $region28
      $region27: #{_lambda_.11} parent=19 // pred_region
        %p203 = scmp.lt.s32.totalorder %s16, 1
        %s204 = scalar_select %p203, %s16, 1
        %p205 = scmp.lt.s32.totalorder %s17, 0
        %s206 = scalar_select %p205, %s17, 0
        %p207 = scmp.lt.s32.totalorder %s18, 0
        %s208 = scalar_select %p207, %s18, 0
        %s209 = sadd.s32 %s208, %s206
        %s210 = sadd.s32 %s209, %s204
        %s211 = smul.addr %s210, 8
        %s212 = scalar_lea.vmem %s2, %s211
      $region28: #{_lambda_.11} parent=19 // pred_fallthru
        _
    $region20: #{_lambda_.11} parent=5 // pred_fallthru
      _
    %p213 = scmp.le.s32.totalorder 1, %s9
    %p214 = scmp.lt.s32.totalorder %s9, 3
    %p215 = pnand %p213, %p214
    %p216 = pneg %p215
    // Predicated region
    $region29: #{_lambda_.11} parent=5 // pred_check
      _
    $region30: #{_lambda_.11} parent=5 // pred_check_branch
      %218 = sbr.rel (%p215) target = $region32
    $region31: #{_lambda_.11} parent=5 // pred_region
      %s219 = ssub.s32 %s9, 1
      %s220 = smul.u32 4, %s23
      %p221 = scmp.lt.s32.totalorder %s20, 1
      %s222 = scalar_select %p221, %s20, 1
      %p223 = scmp.lt.s32.totalorder %s220, 3
      %s224 = scalar_select %p223, %s220, 3
      %p225 = scmp.lt.s32.totalorder %s21, 0
      %s226 = scalar_select %p225, %s21, 0
      %s227 = sadd.s32 %s226, %s224
      %s228 = smul.addr %s222, 4
      %s229 = sadd.s32 %s227, %s228
      %s230 = smul.addr %s229, 4
      %s231 = scalar_lea.vmem %s0, %s230
      %p232 = pneg %p65
      %p233 = pneg %p62
      %s234 = smul.u32 4, %s23
      %p235 = scmp.lt.s32.totalorder %s234, 3
      %s236 = scalar_select %p235, %s234, 3
      %p237 = scmp.lt.s32.totalorder %s22, 0
      %s238 = scalar_select %p237, %s22, 0
      %s239 = sadd.s32 %s238, %s236
      %s240 = smul.addr %s239, 4
      %s241 = scalar_lea.vmem %s1, %s240
      %p242 = pneg %p93
      %p243 = pneg %p90
      %p244 = scmp.lt.s32.totalorder %s20, 1
      %s245 = scalar_select %p244, %s20, 1
      %p246 = scmp.lt.s32.totalorder %s21, 0
      %s247 = scalar_select %p246, %s21, 0
      %p248 = scmp.lt.s32.totalorder %s22, 0
      %s249 = scalar_select %p248, %s22, 0
      %s250 = sadd.s32 %s249, %s247
      %s251 = sadd.s32 %s250, %s245
      %s252 = smul.addr %s251, 8
      %s253 = scalar_lea.vmem %s2, %s252
      %p254 = pneg %p123
      %p255 = pneg %p120
      %p256 = pneg %p153
      %p257 = pneg %p150
      %p258 = scmp.lt.s32.totalorder %s20, 1
      %s259 = scalar_select %p258, %s20, 1
      %p260 = scmp.lt.s32.totalorder %s21, 0
      %s261 = scalar_select %p260, %s21, 0
      %p262 = scmp.lt.s32.totalorder %s22, 0
      %s263 = scalar_select %p262, %s22, 0
      %s264 = sadd.s32 %s263, %s261
      %s265 = sadd.s32 %s264, %s259
      %s266 = smul.addr %s265, 8
      %s267 = scalar_lea.vmem %s3, %s266
      %s268 = smul.u32 4, %s23
      %p269 = scmp.lt.s32.totalorder %s20, 1
      %s270 = scalar_select %p269, %s20, 1
      %p271 = scmp.lt.s32.totalorder %s268, 3
      %s272 = scalar_select %p271, %s268, 3
      %p273 = scmp.lt.s32.totalorder %s21, 0
      %s274 = scalar_select %p273, %s21, 0
      %s275 = sadd.s32 %s274, %s272
      %s276 = smul.addr %s270, 4
      %s277 = sadd.s32 %s275, %s276
      %s278 = smul.addr %s277, 4
      %s279 = scalar_lea.vmem %s0, %s278
      %s280 = smul.u32 4, %s23
      %s281 = smul.u32 4, %s23
      %p282 = scmp.lt.s32.totalorder %s281, 3
      %s283 = scalar_select %p282, %s281, 3
      %p284 = scmp.lt.s32.totalorder %s22, 0
      %s285 = scalar_select %p284, %s22, 0
      %s286 = sadd.s32 %s285, %s283
      %s287 = smul.addr %s286, 4
      %s288 = scalar_lea.vmem %s1, %s287
      %s289 = smul.u32 4, %s23
      %p290 = scmp.lt.s32.totalorder %s20, 1
      %s291 = scalar_select %p290, %s20, 1
      %p292 = scmp.lt.s32.totalorder %s21, 0
      %s293 = scalar_select %p292, %s21, 0
      %p294 = scmp.lt.s32.totalorder %s22, 0
      %s295 = scalar_select %p294, %s22, 0
      %s296 = sadd.s32 %s295, %s293
      %s297 = sadd.s32 %s296, %s291
      %s298 = smul.addr %s297, 8
      %s299 = scalar_lea.vmem %s2, %s298
      %p300 = scmp.lt.s32.totalorder %s20, 1
      %s301 = scalar_select %p300, %s20, 1
      %p302 = scmp.lt.s32.totalorder %s21, 0
      %s303 = scalar_select %p302, %s21, 0
      %p304 = scmp.lt.s32.totalorder %s22, 0
      %s305 = scalar_select %p304, %s22, 0
      %s306 = sadd.s32 %s305, %s303
      %s307 = sadd.s32 %s306, %s301
      %s308 = smul.addr %s307, 8
      %s309 = scalar_lea.vmem %s3, %s308
      %p311 = scmp.eq.s32.totalorder %s23, 0
      // Predicated region
      $region33: #{_lambda_.11} parent=31 // pred_check
        %p312 = pneg %p311
      $region34: #{_lambda_.11} parent=31 // pred_check_branch
        %314 = sbr.rel (%p312) target = $region36
      $region35: #{_lambda_.11} parent=31 // pred_region
        %v315 = vld [vmem:[%s299] sm:$0xff]
        %vm316 = vcmask 261120
        %317 = vst.msk [vmem:[#allocation2] sm:$0xff] %vm316, %v315
      $region36: #{_lambda_.11} parent=31 // pred_fallthru
        _
      %v318 = vld [vmem:[#allocation2] sm:$0xff]
      %v319 = vld [vmem:[%s279] sm:$0xf]
      %v320 = vld [vmem:[%s288] sm:$0xf]
      %vm321 = vcmask 64512
      %v323 = vsel %vm321, %v319, 0
      %vm325 = vcmask 1043456
      %v327 = vsel %vm325, %v320, 0
      %329 = vmatprep.subr.bf16.mxu0 0
      %330 = vmatpush1.bf16.msra.mxu0 0
      %331 = vmatprep.subr.bf16.mxu0 0
      %332 = vmatpush1.bf16.msra.mxu0 0
      %333 = vmatprep.subr.bf16.mxu0 0
      %334 = vmatpush1.bf16.msra.mxu0 0
      %335 = vmatprep.subr.bf16.mxu0 0
      %336 = vmatpush1.bf16.msra.mxu0 0
      %337 = vmatprep.subr.bf16.mxu0 0
      %338 = vmatpush1.bf16.msra.mxu0 0
      %339 = vmatprep.subr.bf16.mxu0 0
      %340 = vmatpush1.bf16.msra.mxu0 0
      %341 = vmatprep.subr.bf16.mxu0 0
      %342 = vmatpush1.bf16.msra.mxu0 0
      %343 = vmatprep.subr.bf16.mxu0 0
      %344 = vmatpush1.bf16.msra.mxu0 %v327
      %345 = vmatprep.subr.bf16.mxu0 0
      %346 = vmatpush2.bf16.msra.mxu0 0
      %347 = vmatprep.subr.bf16.mxu0 0
      %348 = vmatpush2.bf16.msra.mxu0 0
      %349 = vmatprep.subr.bf16.mxu0 0
      %350 = vmatpush2.bf16.msra.mxu0 0
      %351 = vmatprep.subr.bf16.mxu0 0
      %352 = vmatpush2.bf16.msra.mxu0 0
      %353 = vmatprep.subr.bf16.mxu0 0
      %354 = vmatpush2.bf16.msra.mxu0 0
      %355 = vmatprep.subr.bf16.mxu0 0
      %356 = vmatpush2.bf16.msra.mxu0 0
      %357 = vmatprep.subr.bf16.mxu0 0
      %358 = vmatpush2.bf16.msra.mxu0 0
      %359 = vmatprep.subr.bf16.mxu0 0
      %360 = vmatpush2.bf16.msra.mxu0 0
      %361 = vmatprep.mubr.bf16.mxu0 0
      %362 = vmatmul.mubr.bf16.gmra.mxu0 %v323
      %v363 = vpop.f32.mrf.mxu0
      %v364 = vadd.f32 0.0, %v363
      %v365 = vpop.f32.mrf.mxu0
      %v366 = vpop.f32.mrf.mxu0
      %v367 = vpop.f32.mrf.mxu0
      %368 = vdwg.mxu0
      %v369 = vadd.f32 %v318, %v364
      %vm370 = vcmask 261120
      %371 = vst.msk [vmem:[#allocation2] sm:$0xff] %vm370, %v369
      %v372 = vld [vmem:[#allocation2] sm:$0xff]
      %s373 = scalar_lea.vmem %s279, 4
      %v374 = vld [vmem:[%s373] sm:$0xf]
      %s375 = scalar_lea.vmem %s288, 4
      %v376 = vld [vmem:[%s375] sm:$0xf]
      %v378 = vsel %vm321, %v374, 0
      %v381 = vsel %vm325, %v376, 0
      %383 = vmatprep.subr.bf16.mxu0 0
      %384 = vmatpush1.bf16.msra.mxu0 0
      %385 = vmatprep.subr.bf16.mxu0 0
      %386 = vmatpush1.bf16.msra.mxu0 0
      %387 = vmatprep.subr.bf16.mxu0 0
      %388 = vmatpush1.bf16.msra.mxu0 0
      %389 = vmatprep.subr.bf16.mxu0 0
      %390 = vmatpush1.bf16.msra.mxu0 0
      %391 = vmatprep.subr.bf16.mxu0 0
      %392 = vmatpush1.bf16.msra.mxu0 0
      %393 = vmatprep.subr.bf16.mxu0 0
      %394 = vmatpush1.bf16.msra.mxu0 0
      %395 = vmatprep.subr.bf16.mxu0 0
      %396 = vmatpush1.bf16.msra.mxu0 0
      %397 = vmatprep.subr.bf16.mxu0 0
      %398 = vmatpush1.bf16.msra.mxu0 %v381
      %399 = vmatprep.subr.bf16.mxu0 0
      %400 = vmatpush2.bf16.msra.mxu0 0
      %401 = vmatprep.subr.bf16.mxu0 0
      %402 = vmatpush2.bf16.msra.mxu0 0
      %403 = vmatprep.subr.bf16.mxu0 0
      %404 = vmatpush2.bf16.msra.mxu0 0
      %405 = vmatprep.subr.bf16.mxu0 0
      %406 = vmatpush2.bf16.msra.mxu0 0
      %407 = vmatprep.subr.bf16.mxu0 0
      %408 = vmatpush2.bf16.msra.mxu0 0
      %409 = vmatprep.subr.bf16.mxu0 0
      %410 = vmatpush2.bf16.msra.mxu0 0
      %411 = vmatprep.subr.bf16.mxu0 0
      %412 = vmatpush2.bf16.msra.mxu0 0
      %413 = vmatprep.subr.bf16.mxu0 0
      %414 = vmatpush2.bf16.msra.mxu0 0
      %415 = vmatprep.mubr.bf16.mxu0 0
      %416 = vmatmul.mubr.bf16.gmra.mxu0 %v378
      %v417 = vpop.f32.mrf.mxu0
      %v418 = vadd.f32 0.0, %v417
      %v419 = vpop.f32.mrf.mxu0
      %v420 = vpop.f32.mrf.mxu0
      %v421 = vpop.f32.mrf.mxu0
      %422 = vdwg.mxu0
      %v423 = vadd.f32 %v372, %v418
      %424 = vst.msk [vmem:[#allocation2] sm:$0xff] %vm370, %v423
      %v425 = vld [vmem:[#allocation2] sm:$0xff]
      %s426 = scalar_lea.vmem %s279, 8
      %v427 = vld [vmem:[%s426] sm:$0xf]
      %s428 = scalar_lea.vmem %s288, 8
      %v429 = vld [vmem:[%s428] sm:$0xf]
      %v431 = vsel %vm321, %v427, 0
      %v434 = vsel %vm325, %v429, 0
      %436 = vmatprep.subr.bf16.mxu0 0
      %437 = vmatpush1.bf16.msra.mxu0 0
      %438 = vmatprep.subr.bf16.mxu0 0
      %439 = vmatpush1.bf16.msra.mxu0 0
      %440 = vmatprep.subr.bf16.mxu0 0
      %441 = vmatpush1.bf16.msra.mxu0 0
      %442 = vmatprep.subr.bf16.mxu0 0
      %443 = vmatpush1.bf16.msra.mxu0 0
      %444 = vmatprep.subr.bf16.mxu0 0
      %445 = vmatpush1.bf16.msra.mxu0 0
      %446 = vmatprep.subr.bf16.mxu0 0
      %447 = vmatpush1.bf16.msra.mxu0 0
      %448 = vmatprep.subr.bf16.mxu0 0
      %449 = vmatpush1.bf16.msra.mxu0 0
      %450 = vmatprep.subr.bf16.mxu0 0
      %451 = vmatpush1.bf16.msra.mxu0 %v434
      %452 = vmatprep.subr.bf16.mxu0 0
      %453 = vmatpush2.bf16.msra.mxu0 0
      %454 = vmatprep.subr.bf16.mxu0 0
      %455 = vmatpush2.bf16.msra.mxu0 0
      %456 = vmatprep.subr.bf16.mxu0 0
      %457 = vmatpush2.bf16.msra.mxu0 0
      %458 = vmatprep.subr.bf16.mxu0 0
      %459 = vmatpush2.bf16.msra.mxu0 0
      %460 = vmatprep.subr.bf16.mxu0 0
      %461 = vmatpush2.bf16.msra.mxu0 0
      %462 = vmatprep.subr.bf16.mxu0 0
      %463 = vmatpush2.bf16.msra.mxu0 0
      %464 = vmatprep.subr.bf16.mxu0 0
      %465 = vmatpush2.bf16.msra.mxu0 0
      %466 = vmatprep.subr.bf16.mxu0 0
      %467 = vmatpush2.bf16.msra.mxu0 0
      %468 = vmatprep.mubr.bf16.mxu0 0
      %469 = vmatmul.mubr.bf16.gmra.mxu0 %v431
      %v470 = vpop.f32.mrf.mxu0
      %v471 = vadd.f32 0.0, %v470
      %v472 = vpop.f32.mrf.mxu0
      %v473 = vpop.f32.mrf.mxu0
      %v474 = vpop.f32.mrf.mxu0
      %475 = vdwg.mxu0
      %v476 = vadd.f32 %v425, %v471
      %477 = vst.msk [vmem:[#allocation2] sm:$0xff] %vm370, %v476
      %v478 = vld [vmem:[#allocation2] sm:$0xff]
      %s479 = scalar_lea.vmem %s279, 12
      %v480 = vld [vmem:[%s479] sm:$0xf]
      %s481 = scalar_lea.vmem %s288, 12
      %v482 = vld [vmem:[%s481] sm:$0xf]
      %v484 = vsel %vm321, %v480, 0
      %v487 = vsel %vm325, %v482, 0
      %489 = vmatprep.subr.bf16.mxu0 0
      %490 = vmatpush1.bf16.msra.mxu0 0
      %491 = vmatprep.subr.bf16.mxu0 0
      %492 = vmatpush1.bf16.msra.mxu0 0
      %493 = vmatprep.subr.bf16.mxu0 0
      %494 = vmatpush1.bf16.msra.mxu0 0
      %495 = vmatprep.subr.bf16.mxu0 0
      %496 = vmatpush1.bf16.msra.mxu0 0
      %497 = vmatprep.subr.bf16.mxu0 0
      %498 = vmatpush1.bf16.msra.mxu0 0
      %499 = vmatprep.subr.bf16.mxu0 0
      %500 = vmatpush1.bf16.msra.mxu0 0
      %501 = vmatprep.subr.bf16.mxu0 0
      %502 = vmatpush1.bf16.msra.mxu0 0
      %503 = vmatprep.subr.bf16.mxu0 0
      %504 = vmatpush1.bf16.msra.mxu0 %v487
      %505 = vmatprep.subr.bf16.mxu0 0
      %506 = vmatpush2.bf16.msra.mxu0 0
      %507 = vmatprep.subr.bf16.mxu0 0
      %508 = vmatpush2.bf16.msra.mxu0 0
      %509 = vmatprep.subr.bf16.mxu0 0
      %510 = vmatpush2.bf16.msra.mxu0 0
      %511 = vmatprep.subr.bf16.mxu0 0
      %512 = vmatpush2.bf16.msra.mxu0 0
      %513 = vmatprep.subr.bf16.mxu0 0
      %514 = vmatpush2.bf16.msra.mxu0 0
      %515 = vmatprep.subr.bf16.mxu0 0
      %516 = vmatpush2.bf16.msra.mxu0 0
      %517 = vmatprep.subr.bf16.mxu0 0
      %518 = vmatpush2.bf16.msra.mxu0 0
      %519 = vmatprep.subr.bf16.mxu0 0
      %520 = vmatpush2.bf16.msra.mxu0 0
      %521 = vmatprep.mubr.bf16.mxu0 0
      %522 = vmatmul.mubr.bf16.gmra.mxu0 %v484
      %v523 = vpop.f32.mrf.mxu0
      %v524 = vadd.f32 0.0, %v523
      %v525 = vpop.f32.mrf.mxu0
      %v526 = vpop.f32.mrf.mxu0
      %v527 = vpop.f32.mrf.mxu0
      %528 = vdwg.mxu0
      %v529 = vadd.f32 %v478, %v524
      %530 = vst.msk [vmem:[#allocation2] sm:$0xff] %vm370, %v529
      // Predicated region
      $region37: #{_lambda_.11} parent=31 // pred_check
        %p531 = pneg %p311
      $region38: #{_lambda_.11} parent=31 // pred_check_branch
        %533 = sbr.rel (%p531) target = $region40
      $region39: #{_lambda_.11} parent=31 // pred_region
        %v534 = vld [vmem:[#allocation2] sm:$0xff]
        %535 = vst.msk [vmem:[%s309] sm:$0xff] %vm370, %v534
      $region40: #{_lambda_.11} parent=31 // pred_fallthru
        _
      %p536 = scmp.lt.s32.totalorder %s20, 1
      %s537 = scalar_select %p536, %s20, 1
      %p538 = scmp.lt.s32.totalorder %s21, 0
      %s539 = scalar_select %p538, %s21, 0
      %p540 = scmp.lt.s32.totalorder %s22, 0
      %s541 = scalar_select %p540, %s22, 0
      %s542 = sadd.s32 %s541, %s539
      %s543 = sadd.s32 %s542, %s537
      %s544 = smul.addr %s543, 8
      %s545 = scalar_lea.vmem %s3, %s544
      // Predicated region
      $region41: #{_lambda_.11} parent=31 // pred_check
        %p546 = pneg %p150
      $region42: #{_lambda_.11} parent=31 // pred_check_branch
        %548 = sbr.rel (%p546) target = $region44
      $region43: #{_lambda_.11} parent=31 // pred_region
        _
      $region44: #{_lambda_.11} parent=31 // pred_fallthru
        _
    $region32: #{_lambda_.11} parent=5 // pred_fallthru
      _
    %p549 = scmp.le.s32.totalorder 2, %s9
    // Predicated region
    $region45: #{_lambda_.11} parent=5 // pred_check
      %p550 = pneg %p549
    $region46: #{_lambda_.11} parent=5 // pred_check_branch
      %552 = sbr.rel (%p550) target = $region48
    $region47: #{_lambda_.11} parent=5 // pred_region
      %s553 = ssub.s32 %s9, 2
      // Predicated region
      $region49: #{_lambda_.11} parent=47 // pred_check
        %p554 = pneg %p156
      $region50: #{_lambda_.11} parent=47 // pred_check_branch
        %556 = sbr.rel (%p554) target = $region52
      $region51: #{_lambda_.11} parent=47 // pred_region
        %p557 = scmp.lt.s32.totalorder %s24, 1
        %s558 = scalar_select %p557, %s24, 1
        %p559 = scmp.lt.s32.totalorder %s25, 0
        %s560 = scalar_select %p559, %s25, 0
        %p561 = scmp.lt.s32.totalorder %s26, 0
        %s562 = scalar_select %p561, %s26, 0
        %s563 = sadd.s32 %s562, %s560
        %s564 = sadd.s32 %s563, %s558
        %s565 = smul.addr %s564, 8
        %s566 = scalar_lea.vmem %s3, %s565
      $region52: #{_lambda_.11} parent=47 // pred_fallthru
        _
    $region48: #{_lambda_.11} parent=5 // pred_fallthru
      _
  $region6: #{_lambda_.11} parent=0 // loop_footer
    %s13 = sadd.s32 1, %s9
  $region7: #{_lambda_.11} parent=0 // loop_footer_branch
    %8 = sbr.rel target = $region3
  $region8: #{_lambda_.11} parent=0 // loop_exit
    _

// kernel: _lambda_.12
$region0: #{_lambda_.12}
  #allocation0 [shape = 'u32[]', space=smem, size = 0x4, offset = 0x4, fixed_abs, tag = 'smem constant byte address 0x4 - core index']
  #allocation1 [shape = 'u32[144,128]{1,0:T(1,128)}', space=vmem, size = 0x12000, scoped, tag = 'internal scratch']
  #allocation2 [shape = 'f32[16,32]{1,0:T(8,128)}', space=vmem, size = 0x2000, scoped, tag = 'scratch operand']
  #allocation3 [shape = 'bf16[16,32]{1,0:T(8,128)(2,1)}', space=vmem, size = 0x1000, scoped, tag = 'scratch operand']
  %s0 = inlined_call_operand.vmem [shape: f32[16,32], index: 0, kind: input, shape index: {}]
  %s1 = inlined_call_operand.vmem [shape: f32[1,32], index: 1, kind: input, shape index: {}]
  %s2 = inlined_call_operand.vmem [shape: bf16[32,128], index: 2, kind: input, shape index: {}]
  %s3 = inlined_call_operand.vmem [shape: bf16[64,32], index: 3, kind: input, shape index: {}]
  %s4 = inlined_call_operand.vmem [shape: f32[16,32], index: 4, kind: output, shape index: {}]
  %s5 = sld [smem:[#allocation0]]
  $region34: #{_lambda_.12} parent=0
    _
  %s7 = ssub.s32 1, %s5
  %s8 = scalar_select 0, %s7, %s5
  // Predicated region
  $region2: #{_lambda_.12} parent=0 // pred_check
    _
  $region3: #{_lambda_.12} parent=0 // pred_check_branch
    %10 = sbr.rel (0) target = $region5
  $region4: #{_lambda_.12} parent=0 // pred_region
    _
  $region5: #{_lambda_.12} parent=0 // pred_fallthru
    _
  // Predicated region
  $region6: #{_lambda_.12} parent=0 // pred_check
    _
  $region7: #{_lambda_.12} parent=0 // pred_check_branch
    %12 = sbr.rel (0) target = $region9
  $region8: #{_lambda_.12} parent=0 // pred_region
    _
  $region9: #{_lambda_.12} parent=0 // pred_fallthru
    _
  // Predicated region
  $region10: #{_lambda_.12} parent=0 // pred_check
    _
  $region11: #{_lambda_.12} parent=0 // pred_check_branch
    %14 = sbr.rel (0) target = $region13
  $region12: #{_lambda_.12} parent=0 // pred_region
    _
  $region13: #{_lambda_.12} parent=0 // pred_fallthru
    _
  // Predicated region
  $region14: #{_lambda_.12} parent=0 // pred_check
    _
  $region15: #{_lambda_.12} parent=0 // pred_check_branch
    %16 = sbr.rel (0) target = $region17
  $region16: #{_lambda_.12} parent=0 // pred_region
    _
  $region17: #{_lambda_.12} parent=0 // pred_fallthru
    _
  %p18 = scmp.eq.s32.totalorder 0, 0
  // Predicated region
  $region18: #{_lambda_.12} parent=0 // pred_check
    %p19 = pneg %p18
  $region19: #{_lambda_.12} parent=0 // pred_check_branch
    %21 = sbr.rel (%p19) target = $region21
  $region20: #{_lambda_.12} parent=0 // pred_region
    %v22 = vld [vmem:[%s0] sm:$0xff]
    %v23 = vld [vmem:[%s0 + $0x8] sm:$0xff]
    %v24 = vmul.f32 %v22, %v22
    %v25 = vmul.f32 %v23, %v23
    %vm26 = vcmask 261120
    %v27 = vsel %vm26, %v24, 0.0
    %28 = vadd.xlane.f32.xlu0 %v27
    %v29 = vpop.xlane.xlu0 %28
    %v30 = vsel %vm26, %v25, 0.0
    %31 = vadd.xlane.f32.xlu0 %v30
    %v32 = vpop.xlane.xlu0 %31
    %v33 = vrcp.pop 32.0
    %v34 = vmul.f32 %v29, %v33
    %v35 = vmul.f32 %v32, %v33
    %v36 = vadd.f32 %v34, 1e-05
    %v37 = vadd.f32 %v35, 1e-05
    %v38 = vrsqrt.pop %v36
    %v39 = vrsqrt.pop %v37
    %v40 = vmul.f32 %v22, %v38
    %v41 = vmul.f32 %v23, %v39
    %v42 = vld [vmem:[%s1] sm:$0x1]
    %v44 = vlaneseq
    %v45 = vshrl.u32 %v44, 7
    %v46 = vsub.s32 0, %v45
    %v47 = vrot.slane %v42, %v46
    %v49 = vmul.f32 %v40, %v47
    %v50 = vmul.f32 %v41, %v47
    %v51 = vpack.c.bf16 %v50, %v49
    %v53 = vunpack.c.l.b16 %v51
    %v54 = vunpack.c.h.b16 %v51
    %v55 = vpack.c.b16 %v53, %v53
    %v56 = vpack.c.b16 %v54, %v54
    %vm59 = vcmask 257024
    %60 = vst.msk [vmem:[#allocation3] sm:$0xf] %vm59, %v55
    %61 = vst.msk [vmem:[#allocation3 + $0x4] sm:$0xf] %vm59, %v56
    %62 = vst.msk [vmem:[#allocation2] sm:$0xff] %vm26, %v22
    %63 = vst.msk [vmem:[#allocation2 + $0x8] sm:$0xff] %vm26, %v23
  $region21: #{_lambda_.12} parent=0 // pred_fallthru
    _
  %v64 = vld [vmem:[#allocation3] sm:$0xf]
  %v65 = vld [vmem:[#allocation3 + $0x4] sm:$0xf]
  %v66 = vld [vmem:[%s2] sm:$0xf]
  %v67 = vld [vmem:[%s2 + $0x4] sm:$0xf]
  %v68 = vld [vmem:[%s2 + $0x8] sm:$0xf]
  %v69 = vld [vmem:[%s2 + $0xc] sm:$0xf]
  %v72 = vunpack.c.l.b16 %v64
  %v73 = vunpack.c.l.b16 %v65
  %v74 = vpack.c.b16 %v73, %v72
  %v79 = vunpack.c.l.b16 %v66
  %v80 = vunpack.c.l.b16 %v67
  %v81 = vunpack.c.l.b16 %v68
  %v82 = vunpack.c.l.b16 %v69
  %v83 = vpack.c.b16 %v80, %v79
  %v84 = vpack.c.b16 %v82, %v81
  %vm87 = vcmask 261120
  %v89 = vsel %vm87, %v74, 0
  %91 = vmatprep.subr.bf16.mxu0 0
  %92 = vmatpush1.bf16.msra.mxu0 0
  %93 = vmatprep.subr.bf16.mxu0 0
  %94 = vmatpush1.bf16.msra.mxu0 0
  %95 = vmatprep.subr.bf16.mxu0 0
  %96 = vmatpush1.bf16.msra.mxu0 0
  %97 = vmatprep.subr.bf16.mxu0 0
  %98 = vmatpush1.bf16.msra.mxu0 0
  %99 = vmatprep.subr.bf16.mxu0 0
  %100 = vmatpush1.bf16.msra.mxu0 0
  %101 = vmatprep.subr.bf16.mxu0 0
  %102 = vmatpush1.bf16.msra.mxu0 0
  %103 = vmatprep.subr.bf16.mxu0 0
  %104 = vmatpush1.bf16.msra.mxu0 %v84
  %105 = vmatprep.subr.bf16.mxu0 0
  %106 = vmatpush1.bf16.msra.mxu0 %v83
  %107 = vmatprep.subr.bf16.mxu0 0
  %108 = vmatpush2.bf16.msra.mxu0 0
  %109 = vmatprep.subr.bf16.mxu0 0
  %110 = vmatpush2.bf16.msra.mxu0 0
  %111 = vmatprep.subr.bf16.mxu0 0
  %112 = vmatpush2.bf16.msra.mxu0 0
  %113 = vmatprep.subr.bf16.mxu0 0
  %114 = vmatpush2.bf16.msra.mxu0 0
  %115 = vmatprep.subr.bf16.mxu0 0
  %116 = vmatpush2.bf16.msra.mxu0 0
  %117 = vmatprep.subr.bf16.mxu0 0
  %118 = vmatpush2.bf16.msra.mxu0 0
  %119 = vmatprep.subr.bf16.mxu0 0
  %120 = vmatpush2.bf16.msra.mxu0 0
  %121 = vmatprep.subr.bf16.mxu0 0
  %122 = vmatpush2.bf16.msra.mxu0 0
  %123 = vmatprep.mubr.bf16.mxu0 0
  %124 = vmatmul.mubr.bf16.gmra.mxu0 %v89
  %v125 = vpop.f32.mrf.mxu0
  %v126 = vadd.f32 0.0, %v125
  %v127 = vpop.f32.mrf.mxu0
  %v128 = vpop.f32.mrf.mxu0
  %v129 = vadd.f32 0.0, %v128
  %v130 = vpop.f32.mrf.mxu0
  %131 = vdwg.mxu0
  %v132 = vxor.u32 %v126, 2147483648
  %v133 = vxor.u32 %v129, 2147483648
  %v134 = vmul.f32 %v132, 1.442695
  %v135 = vpow.pop %v134
  %v136 = vmul.f32 %v133, 1.442695
  %v137 = vpow.pop %v136
  %v138 = vadd.f32 %v135, 1.0
  %v139 = vadd.f32 %v137, 1.0
  %v140 = vrcp.pop %v138
  %v141 = vmul.f32 1.0, %v140
  %v142 = vrcp.pop %v139
  %v143 = vmul.f32 1.0, %v142
  %v144 = vmul.f32 %v126, %v141
  %v145 = vmul.f32 %v129, %v143
  %148 = vrot.lane.b32.xlu0 %v126, 64
  %v149 = vpop.permute.xlu0 %148
  %150 = vrot.lane.b32.xlu0 %v129, 64
  %v151 = vpop.permute.xlu0 %150
  %v154 = vmul.f32 %v144, %v149
  %v155 = vmul.f32 %v145, %v151
  %v156 = vld [vmem:[#allocation2] sm:$0xff]
  %v157 = vld [vmem:[#allocation2 + $0x8] sm:$0xff]
  %v158 = vpack.c.bf16 %v155, %v154
  %v159 = vld [vmem:[%s3] sm:$0xf]
  %v160 = vld [vmem:[%s3 + $0x4] sm:$0xf]
  %v161 = vld [vmem:[%s3 + $0x8] sm:$0xf]
  %v162 = vld [vmem:[%s3 + $0xc] sm:$0xf]
  %v163 = vld [vmem:[%s3 + $0x10] sm:$0xf]
  %v164 = vld [vmem:[%s3 + $0x14] sm:$0xf]
  %v165 = vld [vmem:[%s3 + $0x18] sm:$0xf]
  %v166 = vld [vmem:[%s3 + $0x1c] sm:$0xf]
  %v175 = vunpack.c.l.b16 %v159
  %v176 = vunpack.c.l.b16 %v160
  %v177 = vunpack.c.l.b16 %v161
  %v178 = vunpack.c.l.b16 %v162
  %v179 = vunpack.c.l.b16 %v163
  %v180 = vunpack.c.l.b16 %v164
  %v181 = vunpack.c.l.b16 %v165
  %v182 = vunpack.c.l.b16 %v166
  %v183 = vpack.c.b16 %v176, %v175
  %v184 = vpack.c.b16 %v178, %v177
  %v185 = vpack.c.b16 %v180, %v179
  %v186 = vpack.c.b16 %v182, %v181
  %vm191 = vcmask 523264
  %v193 = vsel %vm191, %v158, 0
  %195 = vmatprep.subr.bf16.mxu0 0
  %196 = vmatpush1.bf16.msra.mxu0 0
  %197 = vmatprep.subr.bf16.mxu0 0
  %198 = vmatpush1.bf16.msra.mxu0 0
  %199 = vmatprep.subr.bf16.mxu0 0
  %200 = vmatpush1.bf16.msra.mxu0 0
  %201 = vmatprep.subr.bf16.mxu0 0
  %202 = vmatpush1.bf16.msra.mxu0 0
  %203 = vmatprep.subr.bf16.mxu0 0
  %204 = vmatpush1.bf16.msra.mxu0 %v186
  %205 = vmatprep.subr.bf16.mxu0 0
  %206 = vmatpush1.bf16.msra.mxu0 %v185
  %207 = vmatprep.subr.bf16.mxu0 0
  %208 = vmatpush1.bf16.msra.mxu0 %v184
  %209 = vmatprep.subr.bf16.mxu0 0
  %210 = vmatpush1.bf16.msra.mxu0 %v183
  %211 = vmatprep.subr.bf16.mxu0 0
  %212 = vmatpush2.bf16.msra.mxu0 0
  %213 = vmatprep.subr.bf16.mxu0 0
  %214 = vmatpush2.bf16.msra.mxu0 0
  %215 = vmatprep.subr.bf16.mxu0 0
  %216 = vmatpush2.bf16.msra.mxu0 0
  %217 = vmatprep.subr.bf16.mxu0 0
  %218 = vmatpush2.bf16.msra.mxu0 0
  %219 = vmatprep.subr.bf16.mxu0 0
  %220 = vmatpush2.bf16.msra.mxu0 0
  %221 = vmatprep.subr.bf16.mxu0 0
  %222 = vmatpush2.bf16.msra.mxu0 0
  %223 = vmatprep.subr.bf16.mxu0 0
  %224 = vmatpush2.bf16.msra.mxu0 0
  %225 = vmatprep.subr.bf16.mxu0 0
  %226 = vmatpush2.bf16.msra.mxu0 0
  %227 = vmatprep.mubr.bf16.mxu0 0
  %228 = vmatmul.mubr.bf16.gmra.mxu0 %v193
  %v229 = vpop.f32.mrf.mxu0
  %v230 = vadd.f32 0.0, %v229
  %v231 = vpop.f32.mrf.mxu0
  %v232 = vpop.f32.mrf.mxu0
  %v233 = vadd.f32 0.0, %v232
  %v234 = vpop.f32.mrf.mxu0
  %235 = vdwg.mxu0
  %v236 = vadd.f32 %v156, %v230
  %v237 = vadd.f32 %v157, %v233
  %238 = vst.msk [vmem:[#allocation2] sm:$0xff] %vm87, %v236
  %239 = vst.msk [vmem:[#allocation2 + $0x8] sm:$0xff] %vm87, %v237
  // Predicated region
  $region22: #{_lambda_.12} parent=0 // pred_check
    %p240 = pneg %p18
  $region23: #{_lambda_.12} parent=0 // pred_check_branch
    %242 = sbr.rel (%p240) target = $region25
  $region24: #{_lambda_.12} parent=0 // pred_region
    %v243 = vld [vmem:[#allocation2] sm:$0xff]
    %v244 = vld [vmem:[#allocation2 + $0x8] sm:$0xff]
    %245 = vst.msk [vmem:[%s4] sm:$0xff] %vm87, %v243
    %246 = vst.msk [vmem:[%s4 + $0x8] sm:$0xff] %vm87, %v244
  $region25: #{_lambda_.12} parent=0 // pred_fallthru
    _
  // Predicated region
  $region26: #{_lambda_.12} parent=0 // pred_check
    _
  $region27: #{_lambda_.12} parent=0 // pred_check_branch
    %248 = sbr.rel (0) target = $region29
  $region28: #{_lambda_.12} parent=0 // pred_region
    _
  $region29: #{_lambda_.12} parent=0 // pred_fallthru
    _
  // Predicated region
  $region30: #{_lambda_.12} parent=0 // pred_check
    _
  $region31: #{_lambda_.12} parent=0 // pred_check_branch
    %250 = sbr.rel (0) target = $region33
  $region32: #{_lambda_.12} parent=0 // pred_region
    _
  $region33: #{_lambda_.12} parent=0 // pred_fallthru
    _

// kernel: _lambda_.17
$region0: #{_lambda_.17}
  #allocation0 [shape = 'u32[]', space=smem, size = 0x4, offset = 0x4, fixed_abs, tag = 'smem constant byte address 0x4 - core index']
  #allocation1 [shape = 'u32[144,128]{1,0:T(1,128)}', space=vmem, size = 0x12000, scoped, tag = 'internal scratch']
  #allocation2 [shape = 'bf16[16,32]{1,0:T(8,128)(2,1)}', space=vmem, size = 0x1000, scoped, tag = 'scratch operand']
  %s0 = inlined_call_operand.vmem [shape: f32[16,32], index: 0, kind: input, shape index: {}]
  %s1 = inlined_call_operand.vmem [shape: f32[1,32], index: 1, kind: input, shape index: {}]
  %s2 = inlined_call_operand.vmem [shape: bf16[32,64], index: 2, kind: input, shape index: {}]
  %s3 = inlined_call_operand.hbm [shape: f32[16,64], index: 3, kind: output, shape index: {}]
  %s4 = sld [smem:[#allocation0]]
  $region26: #{_lambda_.17} parent=0
    _
  %s6 = ssub.s32 1, %s4
  %s7 = scalar_select 0, %s6, %s4
  $region1: #{_lambda_.17} parent=0
    #allocation3 [shape = 'u8[8192]{0}', space=vmem, size = 0x2000, scoped, tag = 'output window, operand 0, single buffered']
    #allocation4 [shape = 's32[1]{0}', space=sflag, size = 0x4, scoped, tag = 'scoped memory for _lambda_.17']
    %8 = vsyncpa [#allocation4], 0
    // Predicated region
    $region2: #{_lambda_.17} parent=1 // pred_check
      _
    $region3: #{_lambda_.17} parent=1 // pred_check_branch
      %10 = sbr.rel (0) target = $region5
    $region4: #{_lambda_.17} parent=1 // pred_region
      _
    $region5: #{_lambda_.17} parent=1 // pred_fallthru
      _
    // Predicated region
    $region6: #{_lambda_.17} parent=1 // pred_check
      _
    $region7: #{_lambda_.17} parent=1 // pred_check_branch
      %12 = sbr.rel (0) target = $region9
    $region8: #{_lambda_.17} parent=1 // pred_region
      _
    $region9: #{_lambda_.17} parent=1 // pred_fallthru
      _
    // Predicated region
    $region10: #{_lambda_.17} parent=1 // pred_check
      _
    $region11: #{_lambda_.17} parent=1 // pred_check_branch
      %14 = sbr.rel (0) target = $region13
    $region12: #{_lambda_.17} parent=1 // pred_region
      _
    $region13: #{_lambda_.17} parent=1 // pred_fallthru
      _
    %p16 = scmp.eq.s32.totalorder 0, 0
    // Predicated region
    $region14: #{_lambda_.17} parent=1 // pred_check
      %p17 = pneg %p16
    $region15: #{_lambda_.17} parent=1 // pred_check_branch
      %19 = sbr.rel (%p17) target = $region17
    $region16: #{_lambda_.17} parent=1 // pred_region
      %v20 = vld [vmem:[%s0] sm:$0xff]
      %v21 = vld [vmem:[%s0 + $0x8] sm:$0xff]
      %v22 = vmul.f32 %v20, %v20
      %v23 = vmul.f32 %v21, %v21
      %vm24 = vcmask 261120
      %v25 = vsel %vm24, %v22, 0.0
      %26 = vadd.xlane.f32.xlu0 %v25
      %v27 = vpop.xlane.xlu0 %26
      %v28 = vsel %vm24, %v23, 0.0
      %29 = vadd.xlane.f32.xlu0 %v28
      %v30 = vpop.xlane.xlu0 %29
      %v31 = vrcp.pop 32.0
      %v32 = vmul.f32 %v27, %v31
      %v33 = vmul.f32 %v30, %v31
      %v34 = vadd.f32 %v32, 1e-05
      %v35 = vadd.f32 %v33, 1e-05
      %v36 = vrsqrt.pop %v34
      %v37 = vrsqrt.pop %v35
      %v38 = vmul.f32 %v20, %v36
      %v39 = vmul.f32 %v21, %v37
      %v40 = vld [vmem:[%s1] sm:$0x1]
      %v42 = vlaneseq
      %v43 = vshrl.u32 %v42, 7
      %v44 = vsub.s32 0, %v43
      %v45 = vrot.slane %v40, %v44
      %v47 = vmul.f32 %v38, %v45
      %v48 = vmul.f32 %v39, %v45
      %v49 = vpack.c.bf16 %v48, %v47
      %v51 = vunpack.c.l.b16 %v49
      %v52 = vunpack.c.h.b16 %v49
      %v53 = vpack.c.b16 %v51, %v51
      %v54 = vpack.c.b16 %v52, %v52
      %vm57 = vcmask 257024
      %58 = vst.msk [vmem:[#allocation2] sm:$0xf] %vm57, %v53
      %59 = vst.msk [vmem:[#allocation2 + $0x4] sm:$0xf] %vm57, %v54
    $region17: #{_lambda_.17} parent=1 // pred_fallthru
      _
    %v60 = vld [vmem:[#allocation2] sm:$0xf]
    %v61 = vld [vmem:[#allocation2 + $0x4] sm:$0xf]
    %v62 = vld [vmem:[%s2] sm:$0xf]
    %v63 = vld [vmem:[%s2 + $0x4] sm:$0xf]
    %v64 = vld [vmem:[%s2 + $0x8] sm:$0xf]
    %v65 = vld [vmem:[%s2 + $0xc] sm:$0xf]
    %v68 = vunpack.c.l.b16 %v60
    %v69 = vunpack.c.l.b16 %v61
    %v70 = vpack.c.b16 %v69, %v68
    %v75 = vunpack.c.l.b16 %v62
    %v76 = vunpack.c.l.b16 %v63
    %v77 = vunpack.c.l.b16 %v64
    %v78 = vunpack.c.l.b16 %v65
    %v79 = vpack.c.b16 %v76, %v75
    %v80 = vpack.c.b16 %v78, %v77
    %vm83 = vcmask 261120
    %v85 = vsel %vm83, %v70, 0
    %87 = vmatprep.subr.bf16.mxu0 0
    %88 = vmatpush1.bf16.msra.mxu0 0
    %89 = vmatprep.subr.bf16.mxu0 0
    %90 = vmatpush1.bf16.msra.mxu0 0
    %91 = vmatprep.subr.bf16.mxu0 0
    %92 = vmatpush1.bf16.msra.mxu0 0
    %93 = vmatprep.subr.bf16.mxu0 0
    %94 = vmatpush1.bf16.msra.mxu0 0
    %95 = vmatprep.subr.bf16.mxu0 0
    %96 = vmatpush1.bf16.msra.mxu0 0
    %97 = vmatprep.subr.bf16.mxu0 0
    %98 = vmatpush1.bf16.msra.mxu0 0
    %99 = vmatprep.subr.bf16.mxu0 0
    %100 = vmatpush1.bf16.msra.mxu0 %v80
    %101 = vmatprep.subr.bf16.mxu0 0
    %102 = vmatpush1.bf16.msra.mxu0 %v79
    %103 = vmatprep.subr.bf16.mxu0 0
    %104 = vmatpush2.bf16.msra.mxu0 0
    %105 = vmatprep.subr.bf16.mxu0 0
    %106 = vmatpush2.bf16.msra.mxu0 0
    %107 = vmatprep.subr.bf16.mxu0 0
    %108 = vmatpush2.bf16.msra.mxu0 0
    %109 = vmatprep.subr.bf16.mxu0 0
    %110 = vmatpush2.bf16.msra.mxu0 0
    %111 = vmatprep.subr.bf16.mxu0 0
    %112 = vmatpush2.bf16.msra.mxu0 0
    %113 = vmatprep.subr.bf16.mxu0 0
    %114 = vmatpush2.bf16.msra.mxu0 0
    %115 = vmatprep.subr.bf16.mxu0 0
    %116 = vmatpush2.bf16.msra.mxu0 0
    %117 = vmatprep.subr.bf16.mxu0 0
    %118 = vmatpush2.bf16.msra.mxu0 0
    %119 = vmatprep.mubr.bf16.mxu0 0
    %120 = vmatmul.mubr.bf16.gmra.mxu0 %v85
    %v121 = vpop.f32.mrf.mxu0
    %v122 = vadd.f32 0.0, %v121
    %v123 = vpop.f32.mrf.mxu0
    %v124 = vpop.f32.mrf.mxu0
    %v125 = vadd.f32 0.0, %v124
    %v126 = vpop.f32.mrf.mxu0
    %127 = vdwg.mxu0
    %vm128 = vcmask 523264
    %129 = vst.msk [vmem:[#allocation3] sm:$0xff] %vm128, %v122
    %130 = vst.msk [vmem:[#allocation3 + $0x8] sm:$0xff] %vm128, %v125
    // Predicated region
    $region18: #{_lambda_.17} parent=1 // pred_check
      _
    $region19: #{_lambda_.17} parent=1 // pred_check_branch
      %132 = sbr.rel (0) target = $region21
    $region20: #{_lambda_.17} parent=1 // pred_region
      %s134 = ssub.s32 256, 256
      %135 = vsyncadd [#allocation4], %s134
      %s136 = sshll.u32 [#allocation3], 4
      %s137 = int_to_ptr.vmem [resolvable:$true] %s136
      %142 = dma.vmem_to_hbm [thread:$0]  %s137, 256, %s3, [#allocation4], 128, 128, 8
    $region21: #{_lambda_.17} parent=1 // pred_fallthru
      _
    // Predicated region
    $region22: #{_lambda_.17} parent=1 // pred_check
      _
    $region23: #{_lambda_.17} parent=1 // pred_check_branch
      %144 = sbr.rel (0) target = $region25
    $region24: #{_lambda_.17} parent=1 // pred_region
      %145 = dma.done [#allocation4], 256
    $region25: #{_lambda_.17} parent=1 // pred_fallthru
      _
    %146 = vsyncpa [#allocation4], 1

// kernel: _lambda_.10
$region0: #{_lambda_.10}
  #allocation0 [shape = 'u32[]', space=smem, size = 0x4, offset = 0x4, fixed_abs, tag = 'smem constant byte address 0x4 - core index']
  #allocation1 [shape = 'u32[144,128]{1,0:T(1,128)}', space=vmem, size = 0x12000, scoped, tag = 'internal scratch']
  #allocation2 [shape = 'f32[2,8,1]{2,1,0:T(8,128)}', space=vmem, size = 0x2000, scoped, tag = 'scratch operand']
  #allocation3 [shape = 'f32[2,8,1]{2,1,0:T(8,128)}', space=vmem, size = 0x2000, scoped, tag = 'scratch operand']
  #allocation4 [shape = 'f32[2,8,8]{2,1,0:T(8,128)}', space=vmem, size = 0x2000, scoped, tag = 'scratch operand']
  #allocation5 [shape = 'bf16[2,8,8]{2,1,0:T(8,128)(2,1)}', space=vmem, size = 0x1000, scoped, tag = 'scratch operand']
  %s0 = inlined_call_operand.vmem [shape: bf16[2,4,8,8], index: 0, kind: input, shape index: {}]
  %s1 = inlined_call_operand.vmem [shape: bf16[2,2,8,8], index: 1, kind: input, shape index: {}]
  %s2 = inlined_call_operand.vmem [shape: bf16[2,2,8,8], index: 2, kind: input, shape index: {}]
  %s3 = inlined_call_operand.vmem [shape: bf16[2,4,8,8], index: 3, kind: output, shape index: {}]
  %s4 = sld [smem:[#allocation0]]
  $region61: #{_lambda_.10} parent=0
    _
  %s6 = ssub.s32 1, %s4
  %s7 = scalar_select 0, %s6, %s4
  loop: start=0, step=1, limit=6
  $region2: #{_lambda_.10} parent=0 // loop_pre_header
    _
  $region3: #{_lambda_.10} parent=0 // loop_header
    %s9 = sphi 0, %s13
    %p10 = scmp.ge.s32.totalorder %s9, 6
    %s16 = sphi 0, %s42
    %s17 = sphi 0, %s38
    %s18 = sphi 0, %s34
    %s19 = sphi 0, %s30
    %s20 = sphi 0, %s16
    %s21 = sphi 0, %s17
    %s22 = sphi 0, %s18
    %s23 = sphi 0, %s19
    %s24 = sphi 0, %s20
    %s25 = sphi 0, %s21
    %s26 = sphi 0, %s22
    %s27 = sphi 0, %s23
    %s49 = sphi 0, %s51
    %s52 = sphi 0, %s49
    %s53 = sphi 0, %s52
    %s69 = sphi 0, %s53
    %s79 = sphi 0, %s81
    %s82 = sphi 0, %s79
    %s83 = sphi 0, %s82
    %s99 = sphi 0, %s83
    %s109 = sphi 0, %s111
    %s112 = sphi 0, %s109
    %s113 = sphi 0, %s112
    %s129 = sphi 0, %s113
    %s139 = sphi 0, %s141
    %s142 = sphi 0, %s139
    %s143 = sphi 0, %s142
    %s159 = sphi 0, %s143
  $region4: #{_lambda_.10} parent=0 // loop_header_branch
    %12 = sbr.rel (%p10) target = $region8
  $region5: #{_lambda_.10} parent=0 // loop_body
    %s14 = ssub.s32 %s9, 1
    %s15 = ssub.s32 %s9, 2
    %s28 = sadd.s32 1, %s19
    %p29 = scmp.ge.s32.totalorder %s28, 1
    %s30 = scalar_select %p29, 0, %s28
    %s31 = sadd.s32 1, %s18
    %s32 = scalar_select %p29, %s31, %s18
    %p33 = scmp.ge.s32.totalorder %s32, 1
    %s34 = scalar_select %p33, 0, %s32
    %s35 = sadd.s32 1, %s17
    %s36 = scalar_select %p33, %s35, %s17
    %p37 = scmp.ge.s32.totalorder %s36, 2
    %s38 = scalar_select %p37, 0, %s36
    %s39 = sadd.s32 1, %s16
    %s40 = scalar_select %p37, %s39, %s16
    %p41 = scmp.ge.s32.totalorder %s40, 2
    %s42 = scalar_select %p41, 0, %s40
    %s43 = ssub.s32 %s16, %s42
    %s44 = ssub.s32 %s17, %s38
    %s45 = sor.u32 %s43, %s44
    %s46 = ssub.s32 %s18, %s34
    %s47 = sor.u32 %s45, %s46
    %p48 = scmp.eq.s32.totalorder %s47, 0
    %s50 = sadd.s32 %s49, 1
    %s51 = scalar_select %p48, %s49, %s50
    %p54 = pneg %p48
    %p55 = scmp.eq.s32.totalorder %s9, 3
    %p56 = por %p54, %p55
    %p57 = scmp.ne.s32.totalorder %s49, %s52
    %p58 = scmp.eq.s32.totalorder %s9, 0
    %p59 = por %p57, %p58
    %p60 = scmp.ne.s32.totalorder %s49, %s52
    %p61 = scmp.eq.s32.totalorder %s14, 3
    %p62 = por %p60, %p61
    %p63 = scmp.ne.s32.totalorder %s52, %s53
    %p64 = scmp.eq.s32.totalorder %s14, 0
    %p65 = por %p63, %p64
    %p66 = scmp.ne.s32.totalorder %s52, %s53
    %p67 = scmp.eq.s32.totalorder %s15, 3
    %p68 = por %p66, %p67
    %p70 = scmp.ne.s32.totalorder %s53, %s69
    %p71 = scmp.eq.s32.totalorder %s15, 0
    %p72 = por %p70, %p71
    %s73 = ssub.s32 %s16, %s42
    %s74 = ssub.s32 %s17, %s38
    %s75 = sor.u32 %s73, %s74
    %s76 = ssub.s32 %s19, %s30
    %s77 = sor.u32 %s75, %s76
    %p78 = scmp.eq.s32.totalorder %s77, 0
    %s80 = sadd.s32 %s79, 1
    %s81 = scalar_select %p78, %s79, %s80
    %p84 = pneg %p78
    %p85 = scmp.eq.s32.totalorder %s9, 3
    %p86 = por %p84, %p85
    %p87 = scmp.ne.s32.totalorder %s79, %s82
    %p88 = scmp.eq.s32.totalorder %s9, 0
    %p89 = por %p87, %p88
    %p90 = scmp.ne.s32.totalorder %s79, %s82
    %p91 = scmp.eq.s32.totalorder %s14, 3
    %p92 = por %p90, %p91
    %p93 = scmp.ne.s32.totalorder %s82, %s83
    %p94 = scmp.eq.s32.totalorder %s14, 0
    %p95 = por %p93, %p94
    %p96 = scmp.ne.s32.totalorder %s82, %s83
    %p97 = scmp.eq.s32.totalorder %s15, 3
    %p98 = por %p96, %p97
    %p100 = scmp.ne.s32.totalorder %s83, %s99
    %p101 = scmp.eq.s32.totalorder %s15, 0
    %p102 = por %p100, %p101
    %s103 = ssub.s32 %s16, %s42
    %s104 = ssub.s32 %s17, %s38
    %s105 = sor.u32 %s103, %s104
    %s106 = ssub.s32 %s19, %s30
    %s107 = sor.u32 %s105, %s106
    %p108 = scmp.eq.s32.totalorder %s107, 0
    %s110 = sadd.s32 %s109, 1
    %s111 = scalar_select %p108, %s109, %s110
    %p114 = pneg %p108
    %p115 = scmp.eq.s32.totalorder %s9, 3
    %p116 = por %p114, %p115
    %p117 = scmp.ne.s32.totalorder %s109, %s112
    %p118 = scmp.eq.s32.totalorder %s9, 0
    %p119 = por %p117, %p118
    %p120 = scmp.ne.s32.totalorder %s109, %s112
    %p121 = scmp.eq.s32.totalorder %s14, 3
    %p122 = por %p120, %p121
    %p123 = scmp.ne.s32.totalorder %s112, %s113
    %p124 = scmp.eq.s32.totalorder %s14, 0
    %p125 = por %p123, %p124
    %p126 = scmp.ne.s32.totalorder %s112, %s113
    %p127 = scmp.eq.s32.totalorder %s15, 3
    %p128 = por %p126, %p127
    %p130 = scmp.ne.s32.totalorder %s113, %s129
    %p131 = scmp.eq.s32.totalorder %s15, 0
    %p132 = por %p130, %p131
    %s133 = ssub.s32 %s16, %s42
    %s134 = ssub.s32 %s17, %s38
    %s135 = sor.u32 %s133, %s134
    %s136 = ssub.s32 %s18, %s34
    %s137 = sor.u32 %s135, %s136
    %p138 = scmp.eq.s32.totalorder %s137, 0
    %s140 = sadd.s32 %s139, 1
    %s141 = scalar_select %p138, %s139, %s140
    %p144 = pneg %p138
    %p145 = scmp.eq.s32.totalorder %s9, 3
    %p146 = por %p144, %p145
    %p147 = scmp.ne.s32.totalorder %s139, %s142
    %p148 = scmp.eq.s32.totalorder %s9, 0
    %p149 = por %p147, %p148
    %p150 = scmp.ne.s32.totalorder %s139, %s142
    %p151 = scmp.eq.s32.totalorder %s14, 3
    %p152 = por %p150, %p151
    %p153 = scmp.ne.s32.totalorder %s142, %s143
    %p154 = scmp.eq.s32.totalorder %s14, 0
    %p155 = por %p153, %p154
    %p156 = scmp.ne.s32.totalorder %s142, %s143
    %p157 = scmp.eq.s32.totalorder %s15, 3
    %p158 = por %p156, %p157
    %p160 = scmp.ne.s32.totalorder %s143, %s159
    %p161 = scmp.eq.s32.totalorder %s15, 0
    %p162 = por %p160, %p161
    %p163 = scmp.le.s32.totalorder 1, %s9
    %p164 = scmp.lt.s32.totalorder %s9, 5
    %p165 = pnand %p163, %p164
    %p166 = pneg %p165
    // Predicated region
    $region9: #{_lambda_.10} parent=5 // pred_check
      _
    $region10: #{_lambda_.10} parent=5 // pred_check_branch
      %168 = sbr.rel (%p165) target = $region12
    $region11: #{_lambda_.10} parent=5 // pred_region
      %s169 = ssub.s32 %s9, 1
    $region12: #{_lambda_.10} parent=5 // pred_fallthru
      _
    %p170 = scmp.lt.s32.totalorder %s9, 4
    // Predicated region
    $region13: #{_lambda_.10} parent=5 // pred_check
      %p171 = pneg %p170
    $region14: #{_lambda_.10} parent=5 // pred_check_branch
      %173 = sbr.rel (%p171) target = $region16
    $region15: #{_lambda_.10} parent=5 // pred_region
      // Predicated region
      $region17: #{_lambda_.10} parent=15 // pred_check
        %p174 = pneg %p59
      $region18: #{_lambda_.10} parent=15 // pred_check_branch
        %176 = sbr.rel (%p174) target = $region20
      $region19: #{_lambda_.10} parent=15 // pred_region
        %s177 = smul.u32 2, %s17
        %p178 = scmp.lt.s32.totalorder %s16, 1
        %s179 = scalar_select %p178, %s16, 1
        %p180 = scmp.lt.s32.totalorder %s177, 3
        %s181 = scalar_select %p180, %s177, 3
        %p182 = scmp.lt.s32.totalorder %s18, 0
        %s183 = scalar_select %p182, %s18, 0
        %s184 = sadd.s32 %s183, %s181
        %s185 = smul.addr %s179, 4
        %s186 = sadd.s32 %s184, %s185
        %s187 = smul.addr %s186, 4
        %s188 = scalar_lea.vmem %s0, %s187
        %s189 = smul.u32 2, %s17
      $region20: #{_lambda_.10} parent=15 // pred_fallthru
        _
      // Predicated region
      $region21: #{_lambda_.10} parent=15 // pred_check
        %p190 = pneg %p89
      $region22: #{_lambda_.10} parent=15 // pred_check_branch
        %192 = sbr.rel (%p190) target = $region24
      $region23: #{_lambda_.10} parent=15 // pred_region
        %p193 = scmp.lt.s32.totalorder %s16, 1
        %s194 = scalar_select %p193, %s16, 1
        %p195 = scmp.lt.s32.totalorder %s17, 1
        %s196 = scalar_select %p195, %s17, 1
        %p197 = scmp.lt.s32.totalorder %s19, 0
        %s198 = scalar_select %p197, %s19, 0
        %s199 = sadd.s32 %s198, %s196
        %s200 = smul.addr %s194, 2
        %s201 = sadd.s32 %s199, %s200
        %s202 = smul.addr %s201, 4
        %s203 = scalar_lea.vmem %s1, %s202
      $region24: #{_lambda_.10} parent=15 // pred_fallthru
        _
      // Predicated region
      $region25: #{_lambda_.10} parent=15 // pred_check
        %p204 = pneg %p119
      $region26: #{_lambda_.10} parent=15 // pred_check_branch
        %206 = sbr.rel (%p204) target = $region28
      $region27: #{_lambda_.10} parent=15 // pred_region
        %p207 = scmp.lt.s32.totalorder %s16, 1
        %s208 = scalar_select %p207, %s16, 1
        %p209 = scmp.lt.s32.totalorder %s17, 1
        %s210 = scalar_select %p209, %s17, 1
        %p211 = scmp.lt.s32.totalorder %s19, 0
        %s212 = scalar_select %p211, %s19, 0
        %s213 = sadd.s32 %s212, %s210
        %s214 = smul.addr %s208, 2
        %s215 = sadd.s32 %s213, %s214
        %s216 = smul.addr %s215, 4
        %s217 = scalar_lea.vmem %s2, %s216
      $region28: #{_lambda_.10} parent=15 // pred_fallthru
        _
    $region16: #{_lambda_.10} parent=5 // pred_fallthru
      _
    %p218 = scmp.le.s32.totalorder 1, %s9
    %p219 = scmp.lt.s32.totalorder %s9, 5
    %p220 = pnand %p218, %p219
    %p221 = pneg %p220
    // Predicated region
    $region29: #{_lambda_.10} parent=5 // pred_check
      _
    $region30: #{_lambda_.10} parent=5 // pred_check_branch
      %223 = sbr.rel (%p220) target = $region32
    $region31: #{_lambda_.10} parent=5 // pred_region
      %s224 = ssub.s32 %s9, 1
      %s225 = smul.u32 2, %s21
      %p226 = scmp.lt.s32.totalorder %s20, 1
      %s227 = scalar_select %p226, %s20, 1
      %p228 = scmp.lt.s32.totalorder %s225, 3
      %s229 = scalar_select %p228, %s225, 3
      %p230 = scmp.lt.s32.totalorder %s22, 0
      %s231 = scalar_select %p230, %s22, 0
      %s232 = sadd.s32 %s231, %s229
      %s233 = smul.addr %s227, 4
      %s234 = sadd.s32 %s232, %s233
      %s235 = smul.addr %s234, 4
      %s236 = scalar_lea.vmem %s0, %s235
      %p237 = pneg %p65
      %p238 = pneg %p62
      %p239 = scmp.lt.s32.totalorder %s20, 1
      %s240 = scalar_select %p239, %s20, 1
      %p241 = scmp.lt.s32.totalorder %s21, 1
      %s242 = scalar_select %p241, %s21, 1
      %p243 = scmp.lt.s32.totalorder %s23, 0
      %s244 = scalar_select %p243, %s23, 0
      %s245 = sadd.s32 %s244, %s242
      %s246 = smul.addr %s240, 2
      %s247 = sadd.s32 %s245, %s246
      %s248 = smul.addr %s247, 4
      %s249 = scalar_lea.vmem %s1, %s248
      %p250 = pneg %p95
      %p251 = pneg %p92
      %p252 = scmp.lt.s32.totalorder %s20, 1
      %s253 = scalar_select %p252, %s20, 1
      %p254 = scmp.lt.s32.totalorder %s21, 1
      %s255 = scalar_select %p254, %s21, 1
      %p256 = scmp.lt.s32.totalorder %s23, 0
      %s257 = scalar_select %p256, %s23, 0
      %s258 = sadd.s32 %s257, %s255
      %s259 = smul.addr %s253, 2
      %s260 = sadd.s32 %s258, %s259
      %s261 = smul.addr %s260, 4
      %s262 = scalar_lea.vmem %s2, %s261
      %p263 = pneg %p125
      %p264 = pneg %p122
      %p265 = pneg %p155
      %p266 = pneg %p152
      %s267 = smul.u32 2, %s21
      %p268 = scmp.lt.s32.totalorder %s20, 1
      %s269 = scalar_select %p268, %s20, 1
      %p270 = scmp.lt.s32.totalorder %s267, 3
      %s271 = scalar_select %p270, %s267, 3
      %p272 = scmp.lt.s32.totalorder %s22, 0
      %s273 = scalar_select %p272, %s22, 0
      %s274 = sadd.s32 %s273, %s271
      %s275 = smul.addr %s269, 4
      %s276 = sadd.s32 %s274, %s275
      %s277 = smul.addr %s276, 4
      %s278 = scalar_lea.vmem %s3, %s277
      %s279 = smul.u32 2, %s21
      %p280 = scmp.lt.s32.totalorder %s20, 1
      %s281 = scalar_select %p280, %s20, 1
      %p282 = scmp.lt.s32.totalorder %s279, 3
      %s283 = scalar_select %p282, %s279, 3
      %p284 = scmp.lt.s32.totalorder %s22, 0
      %s285 = scalar_select %p284, %s22, 0
      %s286 = sadd.s32 %s285, %s283
      %s287 = smul.addr %s281, 4
      %s288 = sadd.s32 %s286, %s287
      %s289 = smul.addr %s288, 4
      %s290 = scalar_lea.vmem %s0, %s289
      %s291 = smul.u32 2, %s21
      %p292 = scmp.lt.s32.totalorder %s20, 1
      %s293 = scalar_select %p292, %s20, 1
      %p294 = scmp.lt.s32.totalorder %s21, 1
      %s295 = scalar_select %p294, %s21, 1
      %p296 = scmp.lt.s32.totalorder %s23, 0
      %s297 = scalar_select %p296, %s23, 0
      %s298 = sadd.s32 %s297, %s295
      %s299 = smul.addr %s293, 2
      %s300 = sadd.s32 %s298, %s299
      %s301 = smul.addr %s300, 4
      %s302 = scalar_lea.vmem %s1, %s301
      %p303 = scmp.lt.s32.totalorder %s20, 1
      %s304 = scalar_select %p303, %s20, 1
      %p305 = scmp.lt.s32.totalorder %s21, 1
      %s306 = scalar_select %p305, %s21, 1
      %p307 = scmp.lt.s32.totalorder %s23, 0
      %s308 = scalar_select %p307, %s23, 0
      %s309 = sadd.s32 %s308, %s306
      %s310 = smul.addr %s304, 2
      %s311 = sadd.s32 %s309, %s310
      %s312 = smul.addr %s311, 4
      %s313 = scalar_lea.vmem %s2, %s312
      %s314 = smul.u32 2, %s21
      %p315 = scmp.lt.s32.totalorder %s20, 1
      %s316 = scalar_select %p315, %s20, 1
      %p317 = scmp.lt.s32.totalorder %s314, 3
      %s318 = scalar_select %p317, %s314, 3
      %p319 = scmp.lt.s32.totalorder %s22, 0
      %s320 = scalar_select %p319, %s22, 0
      %s321 = sadd.s32 %s320, %s318
      %s322 = smul.addr %s316, 4
      %s323 = sadd.s32 %s321, %s322
      %s324 = smul.addr %s323, 4
      %s325 = scalar_lea.vmem %s3, %s324
      %s326 = smul.u32 2, %s21
      %p328 = scmp.eq.s32.totalorder %s23, 0
      // Predicated region
      $region33: #{_lambda_.10} parent=31 // pred_check
        %p329 = pneg %p328
      $region34: #{_lambda_.10} parent=31 // pred_check_branch
        %331 = sbr.rel (%p329) target = $region36
      $region35: #{_lambda_.10} parent=31 // pred_region
        %vm332 = vcmask 7168
        %333 = vst.msk [vmem:[#allocation2] sm:$0xff] %vm332, -1e+30
        %334 = vst.msk [vmem:[#allocation2 + $0x8] sm:$0xff] %vm332, -1e+30
        %335 = vst.msk [vmem:[#allocation3] sm:$0xff] %vm332, 0.0
        %336 = vst.msk [vmem:[#allocation3 + $0x8] sm:$0xff] %vm332, 0.0
        %vm337 = vcmask 64512
        %338 = vst.msk [vmem:[#allocation4] sm:$0xff] %vm337, 0.0
        %339 = vst.msk [vmem:[#allocation4 + $0x8] sm:$0xff] %vm337, 0.0
        %v340 = vld [vmem:[%s290] sm:$0xf]
        %v341 = vld [vmem:[%s290 + $0x4] sm:$0xf]
        %v342 = vunpack.c.l.bf16 %v340
        %v343 = vunpack.c.l.bf16 %v341
        %v344 = vmul.f32 %v342, 0.35355338
        %v345 = vmul.f32 %v343, 0.35355338
        %v346 = vpack.c.bf16 %v344, %v344
        %v347 = vpack.c.bf16 %v345, %v345
        %vm348 = vcmask 60416
        %349 = vst.msk [vmem:[#allocation5] sm:$0xf] %vm348, %v346
        %350 = vst.msk [vmem:[#allocation5 + $0x4] sm:$0xf] %vm348, %v347
      $region36: #{_lambda_.10} parent=31 // pred_fallthru
        _
      %s351 = smul.u32 %s22, 8
      %s352 = sadd.s32 %s351, 7
      %s353 = smul.u32 %s23, 8
      %p354 = scmp.ge.s32.totalorder %s352, %s353
      %s355 = sadd.s32 %s23, 1
      %s356 = smul.u32 %s355, 8
      %p357 = scmp.ge.s32.totalorder %s351, %s356
      // Predicated region
      $region37: #{_lambda_.10} parent=31 // pred_check
        %p358 = pneg %p357
      $region38: #{_lambda_.10} parent=31 // pred_check_branch
        %360 = sbr.rel (%p358) target = $region40
      $region39: #{_lambda_.10} parent=31 // pred_region
        %v361 = vld [vmem:[%s302] sm:$0xf]
        %v362 = vld [vmem:[#allocation5] sm:$0xf]
        %vm363 = vcmask 64512
        %v365 = vsel %vm363, %v362, 0
        %v368 = vsel %vm363, %v361, 0
        %370 = vmatprep.subr.bf16.mxu0 0
        %371 = vmatpush1.bf16.xpose.msra.mxu0 0
        %372 = vmatprep.subr.bf16.mxu0 0
        %373 = vmatpush1.bf16.xpose.msra.mxu0 0
        %374 = vmatprep.subr.bf16.mxu0 0
        %375 = vmatpush1.bf16.xpose.msra.mxu0 0
        %376 = vmatprep.subr.bf16.mxu0 0
        %377 = vmatpush1.bf16.xpose.msra.mxu0 0
        %378 = vmatprep.subr.bf16.mxu0 0
        %379 = vmatpush1.bf16.xpose.msra.mxu0 0
        %380 = vmatprep.subr.bf16.mxu0 0
        %381 = vmatpush1.bf16.xpose.msra.mxu0 0
        %382 = vmatprep.subr.bf16.mxu0 0
        %383 = vmatpush1.bf16.xpose.msra.mxu0 0
        %384 = vmatprep.subr.bf16.mxu0 0
        %385 = vmatpush1.bf16.xpose.msra.mxu0 %v368
        %386 = vmatprep.subr.bf16.mxu0 0
        %387 = vmatpush2.bf16.xpose.msra.mxu0 0
        %388 = vmatprep.subr.bf16.mxu0 0
        %389 = vmatpush2.bf16.xpose.msra.mxu0 0
        %390 = vmatprep.subr.bf16.mxu0 0
        %391 = vmatpush2.bf16.xpose.msra.mxu0 0
        %392 = vmatprep.subr.bf16.mxu0 0
        %393 = vmatpush2.bf16.xpose.msra.mxu0 0
        %394 = vmatprep.subr.bf16.mxu0 0
        %395 = vmatpush2.bf16.xpose.msra.mxu0 0
        %396 = vmatprep.subr.bf16.mxu0 0
        %397 = vmatpush2.bf16.xpose.msra.mxu0 0
        %398 = vmatprep.subr.bf16.mxu0 0
        %399 = vmatpush2.bf16.xpose.msra.mxu0 0
        %400 = vmatprep.subr.bf16.mxu0 0
        %401 = vmatpush2.bf16.xpose.msra.mxu0 0
        %402 = vmatprep.mubr.bf16.mxu0 0
        %403 = vmatmul.mubr.bf16.gmra.mxu0 %v365
        %v404 = vpop.f32.mrf.mxu0
        %v405 = vadd.f32 0.0, %v404
        %v406 = vpop.f32.mrf.mxu0
        %v407 = vpop.f32.mrf.mxu0
        %v408 = vpop.f32.mrf.mxu0
        %409 = vdwg.mxu0
        %v410 = vld [vmem:[#allocation2] sm:$0xff]
        %v411 = vsel %vm363, %v405, -inf
        %412 = vmax.xlane.f32.xlu0 %v411
        %v413 = vpop.xlane.xlu0 %412
        %v414 = vmax.f32 %v410, %v413
        %v415 = vsub.f32 %v410, %v414
        %v416 = vmul.f32 %v415, 1.442695
        %v417 = vpow.pop %v416
        %419 = vset.pattern.permute.xlu0 0
        %420 = vperm.xlu0 %419, %v414
        %v421 = vpop.permute.xlu0 %420
        %v423 = vsub.f32 %v405, %v421
        %v424 = vmul.f32 %v423, 1.442695
        %v425 = vpow.pop %v424
        %v426 = vld [vmem:[#allocation3] sm:$0xff]
        %v427 = vmul.f32 %v417, %v426
        %v428 = vsel %vm363, %v425, 0.0
        %429 = vadd.xlane.f32.xlu0 %v428
        %v430 = vpop.xlane.xlu0 %429
        %v431 = vadd.f32 %v427, %v430
        %vm432 = vcmask 7168
        %433 = vst.msk [vmem:[#allocation3] sm:$0xff] %vm432, %v431
        %v434 = vld [vmem:[#allocation4] sm:$0xff]
        %436 = vset.pattern.permute.xlu0 0
        %437 = vperm.xlu0 %436, %v417
        %v438 = vpop.permute.xlu0 %437
        %v440 = vmul.f32 %v438, %v434
        %v441 = vpack.c.bf16 %v425, %v425
        %v442 = vld [vmem:[%s313] sm:$0xf]
        %v444 = vsel %vm363, %v441, 0
        %vm446 = vcmask 1043456
        %v448 = vsel %vm446, %v442, 0
        %450 = vmatprep.subr.bf16.mxu0 0
        %451 = vmatpush1.bf16.msra.mxu0 0
        %452 = vmatprep.subr.bf16.mxu0 0
        %453 = vmatpush1.bf16.msra.mxu0 0
        %454 = vmatprep.subr.bf16.mxu0 0
        %455 = vmatpush1.bf16.msra.mxu0 0
        %456 = vmatprep.subr.bf16.mxu0 0
        %457 = vmatpush1.bf16.msra.mxu0 0
        %458 = vmatprep.subr.bf16.mxu0 0
        %459 = vmatpush1.bf16.msra.mxu0 0
        %460 = vmatprep.subr.bf16.mxu0 0
        %461 = vmatpush1.bf16.msra.mxu0 0
        %462 = vmatprep.subr.bf16.mxu0 0
        %463 = vmatpush1.bf16.msra.mxu0 0
        %464 = vmatprep.subr.bf16.mxu0 0
        %465 = vmatpush1.bf16.msra.mxu0 %v448
        %466 = vmatprep.subr.bf16.mxu0 0
        %467 = vmatpush2.bf16.msra.mxu0 0
        %468 = vmatprep.subr.bf16.mxu0 0
        %469 = vmatpush2.bf16.msra.mxu0 0
        %470 = vmatprep.subr.bf16.mxu0 0
        %471 = vmatpush2.bf16.msra.mxu0 0
        %472 = vmatprep.subr.bf16.mxu0 0
        %473 = vmatpush2.bf16.msra.mxu0 0
        %474 = vmatprep.subr.bf16.mxu0 0
        %475 = vmatpush2.bf16.msra.mxu0 0
        %476 = vmatprep.subr.bf16.mxu0 0
        %477 = vmatpush2.bf16.msra.mxu0 0
        %478 = vmatprep.subr.bf16.mxu0 0
        %479 = vmatpush2.bf16.msra.mxu0 0
        %480 = vmatprep.subr.bf16.mxu0 0
        %481 = vmatpush2.bf16.msra.mxu0 0
        %482 = vmatprep.mubr.bf16.mxu0 0
        %483 = vmatmul.mubr.bf16.gmra.mxu0 %v444
        %v484 = vpop.f32.mrf.mxu0
        %v485 = vadd.f32 0.0, %v484
        %v486 = vpop.f32.mrf.mxu0
        %v487 = vpop.f32.mrf.mxu0
        %v488 = vpop.f32.mrf.mxu0
        %489 = vdwg.mxu0
        %v490 = vadd.f32 %v440, %v485
        %491 = vst.msk [vmem:[#allocation4] sm:$0xff] %vm363, %v490
        %492 = vst.msk [vmem:[#allocation2] sm:$0xff] %vm432, %v414
        %s493 = scalar_lea.vmem [#allocation5], 4
        %v494 = vld [vmem:[%s493] sm:$0xf]
        %v496 = vsel %vm363, %v494, 0
        %498 = vmatprep.subr.bf16.mxu0 0
        %499 = vmatpush1.bf16.xpose.msra.mxu0 0
        %500 = vmatprep.subr.bf16.mxu0 0
        %501 = vmatpush1.bf16.xpose.msra.mxu0 0
        %502 = vmatprep.subr.bf16.mxu0 0
        %503 = vmatpush1.bf16.xpose.msra.mxu0 0
        %504 = vmatprep.subr.bf16.mxu0 0
        %505 = vmatpush1.bf16.xpose.msra.mxu0 0
        %506 = vmatprep.subr.bf16.mxu0 0
        %507 = vmatpush1.bf16.xpose.msra.mxu0 0
        %508 = vmatprep.subr.bf16.mxu0 0
        %509 = vmatpush1.bf16.xpose.msra.mxu0 0
        %510 = vmatprep.subr.bf16.mxu0 0
        %511 = vmatpush1.bf16.xpose.msra.mxu0 0
        %512 = vmatprep.subr.bf16.mxu0 0
        %513 = vmatpush1.bf16.xpose.msra.mxu0 %v368
        %514 = vmatprep.subr.bf16.mxu0 0
        %515 = vmatpush2.bf16.xpose.msra.mxu0 0
        %516 = vmatprep.subr.bf16.mxu0 0
        %517 = vmatpush2.bf16.xpose.msra.mxu0 0
        %518 = vmatprep.subr.bf16.mxu0 0
        %519 = vmatpush2.bf16.xpose.msra.mxu0 0
        %520 = vmatprep.subr.bf16.mxu0 0
        %521 = vmatpush2.bf16.xpose.msra.mxu0 0
        %522 = vmatprep.subr.bf16.mxu0 0
        %523 = vmatpush2.bf16.xpose.msra.mxu0 0
        %524 = vmatprep.subr.bf16.mxu0 0
        %525 = vmatpush2.bf16.xpose.msra.mxu0 0
        %526 = vmatprep.subr.bf16.mxu0 0
        %527 = vmatpush2.bf16.xpose.msra.mxu0 0
        %528 = vmatprep.subr.bf16.mxu0 0
        %529 = vmatpush2.bf16.xpose.msra.mxu0 0
        %530 = vmatprep.mubr.bf16.mxu0 0
        %531 = vmatmul.mubr.bf16.gmra.mxu0 %v496
        %v532 = vpop.f32.mrf.mxu0
        %v533 = vadd.f32 0.0, %v532
        %v534 = vpop.f32.mrf.mxu0
        %v535 = vpop.f32.mrf.mxu0
        %v536 = vpop.f32.mrf.mxu0
        %537 = vdwg.mxu0
        %s538 = scalar_lea.vmem [#allocation2], 8
        %v539 = vld [vmem:[%s538] sm:$0xff]
        %v540 = vsel %vm363, %v533, -inf
        %541 = vmax.xlane.f32.xlu0 %v540
        %v542 = vpop.xlane.xlu0 %541
        %v543 = vmax.f32 %v539, %v542
        %v544 = vsub.f32 %v539, %v543
        %v545 = vmul.f32 %v544, 1.442695
        %v546 = vpow.pop %v545
        %548 = vset.pattern.permute.xlu0 0
        %549 = vperm.xlu0 %548, %v543
        %v550 = vpop.permute.xlu0 %549
        %v552 = vsub.f32 %v533, %v550
        %v553 = vmul.f32 %v552, 1.442695
        %v554 = vpow.pop %v553
        %s555 = scalar_lea.vmem [#allocation3], 8
        %v556 = vld [vmem:[%s555] sm:$0xff]
        %v557 = vmul.f32 %v546, %v556
        %v558 = vsel %vm363, %v554, 0.0
        %559 = vadd.xlane.f32.xlu0 %v558
        %v560 = vpop.xlane.xlu0 %559
        %v561 = vadd.f32 %v557, %v560
        %562 = vst.msk [vmem:[%s555] sm:$0xff] %vm432, %v561
        %s563 = scalar_lea.vmem [#allocation4], 8
        %v564 = vld [vmem:[%s563] sm:$0xff]
        %566 = vset.pattern.permute.xlu0 0
        %567 = vperm.xlu0 %566, %v546
        %v568 = vpop.permute.xlu0 %567
        %v570 = vmul.f32 %v568, %v564
        %v571 = vpack.c.bf16 %v554, %v554
        %v572 = vld [vmem:[%s313] sm:$0xf]
        %v574 = vsel %vm363, %v571, 0
        %v577 = vsel %vm446, %v572, 0
        %579 = vmatprep.subr.bf16.mxu0 0
        %580 = vmatpush1.bf16.msra.mxu0 0
        %581 = vmatprep.subr.bf16.mxu0 0
        %582 = vmatpush1.bf16.msra.mxu0 0
        %583 = vmatprep.subr.bf16.mxu0 0
        %584 = vmatpush1.bf16.msra.mxu0 0
        %585 = vmatprep.subr.bf16.mxu0 0
        %586 = vmatpush1.bf16.msra.mxu0 0
        %587 = vmatprep.subr.bf16.mxu0 0
        %588 = vmatpush1.bf16.msra.mxu0 0
        %589 = vmatprep.subr.bf16.mxu0 0
        %590 = vmatpush1.bf16.msra.mxu0 0
        %591 = vmatprep.subr.bf16.mxu0 0
        %592 = vmatpush1.bf16.msra.mxu0 0
        %593 = vmatprep.subr.bf16.mxu0 0
        %594 = vmatpush1.bf16.msra.mxu0 %v577
        %595 = vmatprep.subr.bf16.mxu0 0
        %596 = vmatpush2.bf16.msra.mxu0 0
        %597 = vmatprep.subr.bf16.mxu0 0
        %598 = vmatpush2.bf16.msra.mxu0 0
        %599 = vmatprep.subr.bf16.mxu0 0
        %600 = vmatpush2.bf16.msra.mxu0 0
        %601 = vmatprep.subr.bf16.mxu0 0
        %602 = vmatpush2.bf16.msra.mxu0 0
        %603 = vmatprep.subr.bf16.mxu0 0
        %604 = vmatpush2.bf16.msra.mxu0 0
        %605 = vmatprep.subr.bf16.mxu0 0
        %606 = vmatpush2.bf16.msra.mxu0 0
        %607 = vmatprep.subr.bf16.mxu0 0
        %608 = vmatpush2.bf16.msra.mxu0 0
        %609 = vmatprep.subr.bf16.mxu0 0
        %610 = vmatpush2.bf16.msra.mxu0 0
        %611 = vmatprep.mubr.bf16.mxu0 0
        %612 = vmatmul.mubr.bf16.gmra.mxu0 %v574
        %v613 = vpop.f32.mrf.mxu0
        %v614 = vadd.f32 0.0, %v613
        %v615 = vpop.f32.mrf.mxu0
        %v616 = vpop.f32.mrf.mxu0
        %v617 = vpop.f32.mrf.mxu0
        %618 = vdwg.mxu0
        %v619 = vadd.f32 %v570, %v614
        %620 = vst.msk [vmem:[%s563] sm:$0xff] %vm363, %v619
        %621 = vst.msk [vmem:[%s538] sm:$0xff] %vm432, %v543
      $region40: #{_lambda_.10} parent=31 // pred_fallthru
        _
      %p622 = scmp.lt.s32.totalorder %s351, %s356
      %p623 = pnand %p354, %p622
      %p624 = pneg %p623
      // Predicated region
      $region41: #{_lambda_.10} parent=31 // pred_check
        _
      $region42: #{_lambda_.10} parent=31 // pred_check_branch
        %626 = sbr.rel (%p623) target = $region44
      $region43: #{_lambda_.10} parent=31 // pred_region
        %v627 = vld [vmem:[%s302] sm:$0xf]
        %v628 = vlaneseq
        %v629 = vshrl.u32 %v628, 7
        %v630 = vstv %s351
        %v631 = vadd.s32 %v630, %v629
        %v632 = vlaneseq
        %v633 = vand.u32 %v632, 127
        %v634 = vstv %s353
        %v635 = vadd.s32 %v634, %v633
        %vm636 = vcmp.ge.s32.totalorder %v631, %v635
        %v637 = vld [vmem:[#allocation5] sm:$0xf]
        %vm638 = vcmask 64512
        %v640 = vsel %vm638, %v637, 0
        %v643 = vsel %vm638, %v627, 0
        %645 = vmatprep.subr.bf16.mxu0 0
        %646 = vmatpush1.bf16.xpose.msra.mxu0 0
        %647 = vmatprep.subr.bf16.mxu0 0
        %648 = vmatpush1.bf16.xpose.msra.mxu0 0
        %649 = vmatprep.subr.bf16.mxu0 0
        %650 = vmatpush1.bf16.xpose.msra.mxu0 0
        %651 = vmatprep.subr.bf16.mxu0 0
        %652 = vmatpush1.bf16.xpose.msra.mxu0 0
        %653 = vmatprep.subr.bf16.mxu0 0
        %654 = vmatpush1.bf16.xpose.msra.mxu0 0
        %655 = vmatprep.subr.bf16.mxu0 0
        %656 = vmatpush1.bf16.xpose.msra.mxu0 0
        %657 = vmatprep.subr.bf16.mxu0 0
        %658 = vmatpush1.bf16.xpose.msra.mxu0 0
        %659 = vmatprep.subr.bf16.mxu0 0
        %660 = vmatpush1.bf16.xpose.msra.mxu0 %v643
        %661 = vmatprep.subr.bf16.mxu0 0
        %662 = vmatpush2.bf16.xpose.msra.mxu0 0
        %663 = vmatprep.subr.bf16.mxu0 0
        %664 = vmatpush2.bf16.xpose.msra.mxu0 0
        %665 = vmatprep.subr.bf16.mxu0 0
        %666 = vmatpush2.bf16.xpose.msra.mxu0 0
        %667 = vmatprep.subr.bf16.mxu0 0
        %668 = vmatpush2.bf16.xpose.msra.mxu0 0
        %669 = vmatprep.subr.bf16.mxu0 0
        %670 = vmatpush2.bf16.xpose.msra.mxu0 0
        %671 = vmatprep.subr.bf16.mxu0 0
        %672 = vmatpush2.bf16.xpose.msra.mxu0 0
        %673 = vmatprep.subr.bf16.mxu0 0
        %674 = vmatpush2.bf16.xpose.msra.mxu0 0
        %675 = vmatprep.subr.bf16.mxu0 0
        %676 = vmatpush2.bf16.xpose.msra.mxu0 0
        %677 = vmatprep.mubr.bf16.mxu0 0
        %678 = vmatmul.mubr.bf16.gmra.mxu0 %v640
        %v679 = vpop.f32.mrf.mxu0
        %v680 = vadd.f32 0.0, %v679
        %v681 = vpop.f32.mrf.mxu0
        %v682 = vpop.f32.mrf.mxu0
        %v683 = vpop.f32.mrf.mxu0
        %684 = vdwg.mxu0
        %v685 = vsel %vm636, %v680, -1e+30
        %v686 = vld [vmem:[#allocation2] sm:$0xff]
        %v687 = vsel %vm638, %v685, -inf
        %688 = vmax.xlane.f32.xlu0 %v687
        %v689 = vpop.xlane.xlu0 %688
        %v690 = vmax.f32 %v686, %v689
        %v691 = vsub.f32 %v686, %v690
        %v692 = vmul.f32 %v691, 1.442695
        %v693 = vpow.pop %v692
        %695 = vset.pattern.permute.xlu0 0
        %696 = vperm.xlu0 %695, %v690
        %v697 = vpop.permute.xlu0 %696
        %v699 = vsub.f32 %v685, %v697
        %v700 = vmul.f32 %v699, 1.442695
        %v701 = vpow.pop %v700
        %v702 = vld [vmem:[#allocation3] sm:$0xff]
        %v703 = vmul.f32 %v693, %v702
        %v704 = vsel %vm638, %v701, 0.0
        %705 = vadd.xlane.f32.xlu0 %v704
        %v706 = vpop.xlane.xlu0 %705
        %v707 = vadd.f32 %v703, %v706
        %vm708 = vcmask 7168
        %709 = vst.msk [vmem:[#allocation3] sm:$0xff] %vm708, %v707
        %v710 = vld [vmem:[#allocation4] sm:$0xff]
        %712 = vset.pattern.permute.xlu0 0
        %713 = vperm.xlu0 %712, %v693
        %v714 = vpop.permute.xlu0 %713
        %v716 = vmul.f32 %v714, %v710
        %v717 = vpack.c.bf16 %v701, %v701
        %v718 = vld [vmem:[%s313] sm:$0xf]
        %v720 = vsel %vm638, %v717, 0
        %vm722 = vcmask 1043456
        %v724 = vsel %vm722, %v718, 0
        %726 = vmatprep.subr.bf16.mxu0 0
        %727 = vmatpush1.bf16.msra.mxu0 0
        %728 = vmatprep.subr.bf16.mxu0 0
        %729 = vmatpush1.bf16.msra.mxu0 0
        %730 = vmatprep.subr.bf16.mxu0 0
        %731 = vmatpush1.bf16.msra.mxu0 0
        %732 = vmatprep.subr.bf16.mxu0 0
        %733 = vmatpush1.bf16.msra.mxu0 0
        %734 = vmatprep.subr.bf16.mxu0 0
        %735 = vmatpush1.bf16.msra.mxu0 0
        %736 = vmatprep.subr.bf16.mxu0 0
        %737 = vmatpush1.bf16.msra.mxu0 0
        %738 = vmatprep.subr.bf16.mxu0 0
        %739 = vmatpush1.bf16.msra.mxu0 0
        %740 = vmatprep.subr.bf16.mxu0 0
        %741 = vmatpush1.bf16.msra.mxu0 %v724
        %742 = vmatprep.subr.bf16.mxu0 0
        %743 = vmatpush2.bf16.msra.mxu0 0
        %744 = vmatprep.subr.bf16.mxu0 0
        %745 = vmatpush2.bf16.msra.mxu0 0
        %746 = vmatprep.subr.bf16.mxu0 0
        %747 = vmatpush2.bf16.msra.mxu0 0
        %748 = vmatprep.subr.bf16.mxu0 0
        %749 = vmatpush2.bf16.msra.mxu0 0
        %750 = vmatprep.subr.bf16.mxu0 0
        %751 = vmatpush2.bf16.msra.mxu0 0
        %752 = vmatprep.subr.bf16.mxu0 0
        %753 = vmatpush2.bf16.msra.mxu0 0
        %754 = vmatprep.subr.bf16.mxu0 0
        %755 = vmatpush2.bf16.msra.mxu0 0
        %756 = vmatprep.subr.bf16.mxu0 0
        %757 = vmatpush2.bf16.msra.mxu0 0
        %758 = vmatprep.mubr.bf16.mxu0 0
        %759 = vmatmul.mubr.bf16.gmra.mxu0 %v720
        %v760 = vpop.f32.mrf.mxu0
        %v761 = vadd.f32 0.0, %v760
        %v762 = vpop.f32.mrf.mxu0
        %v763 = vpop.f32.mrf.mxu0
        %v764 = vpop.f32.mrf.mxu0
        %765 = vdwg.mxu0
        %v766 = vadd.f32 %v716, %v761
        %767 = vst.msk [vmem:[#allocation4] sm:$0xff] %vm638, %v766
        %768 = vst.msk [vmem:[#allocation2] sm:$0xff] %vm708, %v690
        %s769 = scalar_lea.vmem [#allocation5], 4
        %v770 = vld [vmem:[%s769] sm:$0xf]
        %v772 = vsel %vm638, %v770, 0
        %774 = vmatprep.subr.bf16.mxu0 0
        %775 = vmatpush1.bf16.xpose.msra.mxu0 0
        %776 = vmatprep.subr.bf16.mxu0 0
        %777 = vmatpush1.bf16.xpose.msra.mxu0 0
        %778 = vmatprep.subr.bf16.mxu0 0
        %779 = vmatpush1.bf16.xpose.msra.mxu0 0
        %780 = vmatprep.subr.bf16.mxu0 0
        %781 = vmatpush1.bf16.xpose.msra.mxu0 0
        %782 = vmatprep.subr.bf16.mxu0 0
        %783 = vmatpush1.bf16.xpose.msra.mxu0 0
        %784 = vmatprep.subr.bf16.mxu0 0
        %785 = vmatpush1.bf16.xpose.msra.mxu0 0
        %786 = vmatprep.subr.bf16.mxu0 0
        %787 = vmatpush1.bf16.xpose.msra.mxu0 0
        %788 = vmatprep.subr.bf16.mxu0 0
        %789 = vmatpush1.bf16.xpose.msra.mxu0 %v643
        %790 = vmatprep.subr.bf16.mxu0 0
        %791 = vmatpush2.bf16.xpose.msra.mxu0 0
        %792 = vmatprep.subr.bf16.mxu0 0
        %793 = vmatpush2.bf16.xpose.msra.mxu0 0
        %794 = vmatprep.subr.bf16.mxu0 0
        %795 = vmatpush2.bf16.xpose.msra.mxu0 0
        %796 = vmatprep.subr.bf16.mxu0 0
        %797 = vmatpush2.bf16.xpose.msra.mxu0 0
        %798 = vmatprep.subr.bf16.mxu0 0
        %799 = vmatpush2.bf16.xpose.msra.mxu0 0
        %800 = vmatprep.subr.bf16.mxu0 0
        %801 = vmatpush2.bf16.xpose.msra.mxu0 0
        %802 = vmatprep.subr.bf16.mxu0 0
        %803 = vmatpush2.bf16.xpose.msra.mxu0 0
        %804 = vmatprep.subr.bf16.mxu0 0
        %805 = vmatpush2.bf16.xpose.msra.mxu0 0
        %806 = vmatprep.mubr.bf16.mxu0 0
        %807 = vmatmul.mubr.bf16.gmra.mxu0 %v772
        %v808 = vpop.f32.mrf.mxu0
        %v809 = vadd.f32 0.0, %v808
        %v810 = vpop.f32.mrf.mxu0
        %v811 = vpop.f32.mrf.mxu0
        %v812 = vpop.f32.mrf.mxu0
        %813 = vdwg.mxu0
        %v814 = vsel %vm636, %v809, -1e+30
        %s815 = scalar_lea.vmem [#allocation2], 8
        %v816 = vld [vmem:[%s815] sm:$0xff]
        %v817 = vsel %vm638, %v814, -inf
        %818 = vmax.xlane.f32.xlu0 %v817
        %v819 = vpop.xlane.xlu0 %818
        %v820 = vmax.f32 %v816, %v819
        %v821 = vsub.f32 %v816, %v820
        %v822 = vmul.f32 %v821, 1.442695
        %v823 = vpow.pop %v822
        %825 = vset.pattern.permute.xlu0 0
        %826 = vperm.xlu0 %825, %v820
        %v827 = vpop.permute.xlu0 %826
        %v829 = vsub.f32 %v814, %v827
        %v830 = vmul.f32 %v829, 1.442695
        %v831 = vpow.pop %v830
        %s832 = scalar_lea.vmem [#allocation3], 8
        %v833 = vld [vmem:[%s832] sm:$0xff]
        %v834 = vmul.f32 %v823, %v833
        %v835 = vsel %vm638, %v831, 0.0
        %836 = vadd.xlane.f32.xlu0 %v835
        %v837 = vpop.xlane.xlu0 %836
        %v838 = vadd.f32 %v834, %v837
        %839 = vst.msk [vmem:[%s832] sm:$0xff] %vm708, %v838
        %s840 = scalar_lea.vmem [#allocation4], 8
        %v841 = vld [vmem:[%s840] sm:$0xff]
        %843 = vset.pattern.permute.xlu0 0
        %844 = vperm.xlu0 %843, %v823
        %v845 = vpop.permute.xlu0 %844
        %v847 = vmul.f32 %v845, %v841
        %v848 = vpack.c.bf16 %v831, %v831
        %v849 = vld [vmem:[%s313] sm:$0xf]
        %v851 = vsel %vm638, %v848, 0
        %v854 = vsel %vm722, %v849, 0
        %856 = vmatprep.subr.bf16.mxu0 0
        %857 = vmatpush1.bf16.msra.mxu0 0
        %858 = vmatprep.subr.bf16.mxu0 0
        %859 = vmatpush1.bf16.msra.mxu0 0
        %860 = vmatprep.subr.bf16.mxu0 0
        %861 = vmatpush1.bf16.msra.mxu0 0
        %862 = vmatprep.subr.bf16.mxu0 0
        %863 = vmatpush1.bf16.msra.mxu0 0
        %864 = vmatprep.subr.bf16.mxu0 0
        %865 = vmatpush1.bf16.msra.mxu0 0
        %866 = vmatprep.subr.bf16.mxu0 0
        %867 = vmatpush1.bf16.msra.mxu0 0
        %868 = vmatprep.subr.bf16.mxu0 0
        %869 = vmatpush1.bf16.msra.mxu0 0
        %870 = vmatprep.subr.bf16.mxu0 0
        %871 = vmatpush1.bf16.msra.mxu0 %v854
        %872 = vmatprep.subr.bf16.mxu0 0
        %873 = vmatpush2.bf16.msra.mxu0 0
        %874 = vmatprep.subr.bf16.mxu0 0
        %875 = vmatpush2.bf16.msra.mxu0 0
        %876 = vmatprep.subr.bf16.mxu0 0
        %877 = vmatpush2.bf16.msra.mxu0 0
        %878 = vmatprep.subr.bf16.mxu0 0
        %879 = vmatpush2.bf16.msra.mxu0 0
        %880 = vmatprep.subr.bf16.mxu0 0
        %881 = vmatpush2.bf16.msra.mxu0 0
        %882 = vmatprep.subr.bf16.mxu0 0
        %883 = vmatpush2.bf16.msra.mxu0 0
        %884 = vmatprep.subr.bf16.mxu0 0
        %885 = vmatpush2.bf16.msra.mxu0 0
        %886 = vmatprep.subr.bf16.mxu0 0
        %887 = vmatpush2.bf16.msra.mxu0 0
        %888 = vmatprep.mubr.bf16.mxu0 0
        %889 = vmatmul.mubr.bf16.gmra.mxu0 %v851
        %v890 = vpop.f32.mrf.mxu0
        %v891 = vadd.f32 0.0, %v890
        %v892 = vpop.f32.mrf.mxu0
        %v893 = vpop.f32.mrf.mxu0
        %v894 = vpop.f32.mrf.mxu0
        %895 = vdwg.mxu0
        %v896 = vadd.f32 %v847, %v891
        %897 = vst.msk [vmem:[%s840] sm:$0xff] %vm638, %v896
        %898 = vst.msk [vmem:[%s815] sm:$0xff] %vm708, %v820
      $region44: #{_lambda_.10} parent=31 // pred_fallthru
        _
      // Predicated region
      $region45: #{_lambda_.10} parent=31 // pred_check
        %p899 = pneg %p328
      $region46: #{_lambda_.10} parent=31 // pred_check_branch
        %901 = sbr.rel (%p899) target = $region48
      $region47: #{_lambda_.10} parent=31 // pred_region
        %v902 = vld [vmem:[#allocation4] sm:$0xff]
        %v903 = vld [vmem:[#allocation4 + $0x8] sm:$0xff]
        %v904 = vld [vmem:[#allocation3] sm:$0xff]
        %v905 = vld [vmem:[#allocation3 + $0x8] sm:$0xff]
        %v906 = vrcp.pop %v904
        %v907 = vrcp.pop %v905
        %909 = vset.pattern.permute.xlu0 0
        %910 = vperm.xlu0 %909, %v906
        %v911 = vpop.permute.xlu0 %910
        %914 = vset.pattern.permute.xlu0 0
        %915 = vperm.xlu0 %914, %v907
        %v916 = vpop.permute.xlu0 %915
        %v918 = vmul.f32 %v902, %v911
        %v919 = vmul.f32 %v903, %v916
        %v920 = vpack.c.bf16 %v918, %v918
        %v921 = vpack.c.bf16 %v919, %v919
        %vm922 = vcmask 60416
        %923 = vst.msk [vmem:[%s325] sm:$0xf] %vm922, %v920
        %924 = vst.msk [vmem:[%s325 + $0x4] sm:$0xf] %vm922, %v921
      $region48: #{_lambda_.10} parent=31 // pred_fallthru
        _
      %s925 = smul.u32 2, %s21
      %p926 = scmp.lt.s32.totalorder %s20, 1
      %s927 = scalar_select %p926, %s20, 1
      %p928 = scmp.lt.s32.totalorder %s925, 3
      %s929 = scalar_select %p928, %s925, 3
      %p930 = scmp.lt.s32.totalorder %s22, 0
      %s931 = scalar_select %p930, %s22, 0
      %s932 = sadd.s32 %s931, %s929
      %s933 = smul.addr %s927, 4
      %s934 = sadd.s32 %s932, %s933
      %s935 = smul.addr %s934, 4
      %s936 = scalar_lea.vmem %s3, %s935
      // Predicated region
      $region49: #{_lambda_.10} parent=31 // pred_check
        %p937 = pneg %p152
      $region50: #{_lambda_.10} parent=31 // pred_check_branch
        %939 = sbr.rel (%p937) target = $region52
      $region51: #{_lambda_.10} parent=31 // pred_region
        %s940 = smul.u32 2, %s21
      $region52: #{_lambda_.10} parent=31 // pred_fallthru
        _
    $region32: #{_lambda_.10} parent=5 // pred_fallthru
      _
    %p941 = scmp.le.s32.totalorder 2, %s9
    // Predicated region
    $region53: #{_lambda_.10} parent=5 // pred_check
      %p942 = pneg %p941
    $region54: #{_lambda_.10} parent=5 // pred_check_branch
      %944 = sbr.rel (%p942) target = $region56
    $region55: #{_lambda_.10} parent=5 // pred_region
      %s945 = ssub.s32 %s9, 2
      // Predicated region
      $region57: #{_lambda_.10} parent=55 // pred_check
        %p946 = pneg %p158
      $region58: #{_lambda_.10} parent=55 // pred_check_branch
        %948 = sbr.rel (%p946) target = $region60
      $region59: #{_lambda_.10} parent=55 // pred_region
        %s949 = smul.u32 2, %s25
        %p950 = scmp.lt.s32.totalorder %s24, 1
        %s951 = scalar_select %p950, %s24, 1
        %p952 = scmp.lt.s32.totalorder %s949, 3
        %s953 = scalar_select %p952, %s949, 3
        %p954 = scmp.lt.s32.totalorder %s26, 0
        %s955 = scalar_select %p954, %s26, 0
        %s956 = sadd.s32 %s955, %s953
        %s957 = smul.addr %s951, 4
        %s958 = sadd.s32 %s956, %s957
        %s959 = smul.addr %s958, 4
        %s960 = scalar_lea.vmem %s3, %s959
      $region60: #{_lambda_.10} parent=55 // pred_fallthru
        _
    $region56: #{_lambda_.10} parent=5 // pred_fallthru
      _
  $region6: #{_lambda_.10} parent=0 // loop_footer
    %s13 = sadd.s32 1, %s9
  $region7: #{_lambda_.10} parent=0 // loop_footer_branch
    %8 = sbr.rel target = $region3
  $region8: #{_lambda_.10} parent=0 // loop_exit
    _

</llo_original>
